<compile_context>
chip_gen: v5e
topology: v5e:2x2
jax: 0.10.0
libtpu: 0.0.40
codegen_flags: <defaults>
</compile_context>

<pallas_src>
import functools

import jax
import jax.numpy as jnp
from jax import lax
from jax.experimental import pallas as pl
from jax.experimental.pallas import tpu as pltpu


def _round_up(v, m):
    return (v + m - 1) // m * m


# ----------------------------------------------------------------------------
# Fused kernel: Conv2d(bias=False) + BatchNorm2d(training) + ReLU
# ----------------------------------------------------------------------------
def _fused_conv_bn_relu_kernel(x_ref, w_ref, o_ref, xpad_ref, col_ref, *,
                               N, H, W, Cin, Kh, Kw, sh, sw, ph, pw,
                               Ho, Wo, eps):
    """x_ref:    (N, H, W, Cin)          unpadded NHWC input
    w_ref:    (Kh*Kw*Cin, Cpad)       im2col weight, out-channels zero-padded
    o_ref:    (N*Ho*Wo, Cpad)         lane-dense output (real channels first)
    xpad_ref: (N, H+2ph, W+2pw, Cin)  VMEM scratch: in-kernel zero padding
    col_ref:  (N*Ho*Wo, Kh*Kw*Cin)    VMEM scratch: im2col patch matrix
    """
    # ---- in-kernel zero padding: memset border, copy interior --------------
    xpad_ref[...] = jnp.zeros_like(xpad_ref)
    xpad_ref[:, ph:ph + H, pw:pw + W, :] = x_ref[...].astype(jnp.float32)
    x = xpad_ref[...]

    # ---- im2col: build one (M, Kh*Kw*Cin) patch matrix in VMEM --------------
    M = N * Ho * Wo
    for kh in range(Kh):
        for kw in range(Kw):
            sl = x[:, kh:kh + (Ho - 1) * sh + 1:sh,
                   kw:kw + (Wo - 1) * sw + 1:sw, :]          # (N, Ho, Wo, Cin)
            c0 = (kh * Kw + kw) * Cin
            col_ref[:, c0:c0 + Cin] = sl.reshape(M, Cin)
    patches = col_ref[...]                                    # (M, Kh*Kw*Cin)

    # ---- single MXU matmul, f32 accumulation --------------------------------
    acc = jnp.dot(patches, w_ref[...],
                  preferred_element_type=jnp.float32,
                  precision=lax.Precision.HIGHEST)            # (M, Cpad)

    # ---- BatchNorm2d (training mode): biased batch stats over (N, H, W) -----
    mean = jnp.mean(acc, axis=0, keepdims=True)
    var = jnp.mean(jnp.square(acc - mean), axis=0, keepdims=True)
    y = (acc - mean) * lax.rsqrt(var + eps)

    # ---- ReLU + lane-dense (128-wide) store ----------------------------------
    o_ref[...] = jnp.maximum(y, 0.0)


# ----------------------------------------------------------------------------
# Public wrapper (NCHW in / NCHW out, PyTorch Conv2d weight layout)
# ----------------------------------------------------------------------------
def basic_conv2d_forward(x_nchw, weight_oihw, *, stride=1, padding=0, eps=1e-3):
    """BasicConv2d.forward: Conv2d(bias=False) -> BatchNorm2d(train) -> ReLU."""
    N, Cin, H, W = x_nchw.shape
    Cout, Cin_w, Kh, Kw = weight_oihw.shape
    assert Cin_w == Cin
    sh, sw = (stride, stride) if isinstance(stride, int) else tuple(stride)
    ph, pw = (padding, padding) if isinstance(padding, int) else tuple(padding)
    Hp, Wp = H + 2 * ph, W + 2 * pw
    Ho = (Hp - Kh) // sh + 1
    Wo = (Wp - Kw) // sw + 1
    M = N * Ho * Wo
    Cpad = _round_up(Cout, 128)     # lane-dense output stores

    # NCHW -> NHWC (channels on the lane dimension).
    x = jnp.transpose(x_nchw, (0, 2, 3, 1)).astype(jnp.float32)
    # (Cout, Cin, Kh, Kw) -> (Kh, Kw, Cin, Cout) -> (Kh*Kw*Cin, Cout): row order
    # matches the (kh, kw, cin) im2col column order; zero-pad Cout -> Cpad.
    w = jnp.transpose(weight_oihw, (2, 3, 1, 0)).reshape(Kh * Kw * Cin, Cout)
    w = jnp.pad(w.astype(jnp.float32), ((0, 0), (0, Cpad - Cout)))

    kern = functools.partial(
        _fused_conv_bn_relu_kernel,
        N=N, H=H, W=W, Cin=Cin, Kh=Kh, Kw=Kw, sh=sh, sw=sw, ph=ph, pw=pw,
        Ho=Ho, Wo=Wo, eps=eps)

    # Single-step grid: the whole (small) problem is fused into one kernel so
    # conv, BN statistics and ReLU share VMEM with zero intermediate HBM traffic.
    # TODO(synk): for large N*H*W, switch to a two-pass grid reduction for the BN
    # statistics and H-strip tiling (v7x 64 MiB VMEM / 2-TC pipelining).
    out2d = pl.pallas_call(
        kern,
        out_shape=jax.ShapeDtypeStruct((M, Cpad), jnp.float32),
        grid=(1,),
        in_specs=[
            pl.BlockSpec((N, H, W, Cin), lambda i: (0, 0, 0, 0)),
            pl.BlockSpec((Kh * Kw * Cin, Cpad), lambda i: (0, 0)),
        ],
        out_specs=pl.BlockSpec((M, Cpad), lambda i: (0, 0)),
        scratch_shapes=[
            pltpu.VMEM((N, Hp, Wp, Cin), jnp.float32),       # padded input
            pltpu.VMEM((M, Kh * Kw * Cin), jnp.float32),     # im2col patches
        ],
        compiler_params=pltpu.CompilerParams(
            dimension_semantics=("arbitrary",)),
    )(x, w)

    # Cheap XLA glue: drop channel padding, restore NCHW.
    out = out2d[:, :Cout].reshape(N, Ho, Wo, Cout)
    return jnp.transpose(out, (0, 3, 1, 2))


# ----------------------------------------------------------------------------
# Pure-JAX reference (same semantics) for a correctness check
# ----------------------------------------------------------------------------
def _reference(x_nchw, weight_oihw, *, stride, padding, eps):
    sh, sw = (stride, stride) if isinstance(stride, int) else tuple(stride)
    ph, pw = (padding, padding) if isinstance(padding, int) else tuple(padding)
    y = lax.conv_general_dilated(
        x_nchw.astype(jnp.float32), weight_oihw.astype(jnp.float32),
        window_strides=(sh, sw), padding=((ph, ph), (pw, pw)),
        dimension_numbers=("NCHW", "OIHW", "NCHW"),
        precision=lax.Precision.HIGHEST)
    mean = jnp.mean(y, axis=(0, 2, 3), keepdims=True)
    var = jnp.mean(jnp.square(y - mean), axis=(0, 2, 3), keepdims=True)
    return jnp.maximum((y - mean) * lax.rsqrt(var + eps), 0.0)


# ----------------------------------------------------------------------------
if __name__ == "__main__":
    key = jax.random.PRNGKey(0)
    k_x, k_w = jax.random.split(key)

    N, Cin, Cout, S, K = 2, 4, 8, 16, 3
    x = jax.random.normal(k_x, (N, Cin, S, S), jnp.float32)
    weight = jax.random.normal(k_w, (Cout, Cin, K, K), jnp.float32) * 0.1

    fwd = jax.jit(functools.partial(basic_conv2d_forward, stride=1, padding=1))
    out = jax.block_until_ready(fwd(x, weight))

    assert out.shape == (N, Cout, S, S), out.shape
    assert bool(jnp.all(jnp.isfinite(out)))

    ref = _reference(x, weight, stride=1, padding=1, eps=1e-3)
    max_err = float(jnp.max(jnp.abs(out - ref)))
    assert bool(jnp.allclose(out, ref, atol=2e-3, rtol=2e-3)), max_err

    print("KERNEL_OK")
</pallas_src>

<mosaic_0001>
module attributes {stable_mosaic.version = 11 : i64} {
  func.func @_fused_conv_bn_relu_kernel(%arg0: i32, %arg1: memref<2x16x16x4xf32, #tpu.memory_space<vmem>>, %arg2: memref<36x128xf32, #tpu.memory_space<vmem>>, %arg3: memref<512x128xf32, #tpu.memory_space<vmem>>, %arg4: memref<2x18x18x4xf32, #tpu.memory_space<vmem>>, %arg5: memref<512x36xf32, #tpu.memory_space<vmem>>) attributes {dimension_semantics = [#tpu.dimension_semantics<arbitrary>], iteration_bounds = array<i64: 1>, scalar_prefetch = 0 : i64, scratch_operands = 2 : i64, tpu.core_type = #tpu.core_type<tc>, window_params = [{pipeline_mode = #tpu.pipeline_mode<synchronous>, transform_indices = @transform_0, window_bounds = array<i64: 2, 16, 16, 4>}, {pipeline_mode = #tpu.pipeline_mode<synchronous>, transform_indices = @transform_1, window_bounds = array<i64: 36, 128>}, {pipeline_mode = #tpu.pipeline_mode<synchronous>, transform_indices = @transform_2, window_bounds = array<i64: 512, 128>}]} {
    %cst = arith.constant 0.000000e+00 : f32
    %0 = vector.broadcast %cst : f32 to vector<2x18x18x4xf32>
    %c0 = arith.constant 0 : index
    %c0_0 = arith.constant 0 : index
    %c0_1 = arith.constant 0 : index
    %c0_2 = arith.constant 0 : index
    %1 = vector.load %arg4[%c0, %c0_0, %c0_1, %c0_2] : memref<2x18x18x4xf32, #tpu.memory_space<vmem>>, vector<2x18x18x4xf32>
    tpu.vector_store %arg4[%c0, %c0_0, %c0_1, %c0_2], %0 {strides = array<i32>} : memref<2x18x18x4xf32, #tpu.memory_space<vmem>>, vector<2x18x18x4xf32>,
    %c0_3 = arith.constant 0 : index
    %c0_4 = arith.constant 0 : index
    %c0_5 = arith.constant 0 : index
    %c0_6 = arith.constant 0 : index
    %2 = vector.load %arg1[%c0_3, %c0_4, %c0_5, %c0_6] : memref<2x16x16x4xf32, #tpu.memory_space<vmem>>, vector<2x16x16x4xf32>
    %c0_7 = arith.constant 0 : index
    %c1 = arith.constant 1 : index
    %c1_8 = arith.constant 1 : index
    %c0_9 = arith.constant 0 : index
    %3 = vector.load %arg4[%c0_7, %c1, %c1_8, %c0_9] : memref<2x18x18x4xf32, #tpu.memory_space<vmem>>, vector<2x16x16x4xf32>
    tpu.vector_store %arg4[%c0_7, %c1, %c1_8, %c0_9], %2 {strides = array<i32>} : memref<2x18x18x4xf32, #tpu.memory_space<vmem>>, vector<2x16x16x4xf32>,
    %c0_10 = arith.constant 0 : index
    %c0_11 = arith.constant 0 : index
    %c0_12 = arith.constant 0 : index
    %c0_13 = arith.constant 0 : index
    %4 = vector.load %arg4[%c0_10, %c0_11, %c0_12, %c0_13] : memref<2x18x18x4xf32, #tpu.memory_space<vmem>>, vector<2x18x18x4xf32>
    %5 = vector.extract_strided_slice %4 {offsets = [0, 0, 0, 0], sizes = [2, 16, 16, 4], strides = [1, 1, 1, 1]} : vector<2x18x18x4xf32> to vector<2x16x16x4xf32>
    %6 = vector.shape_cast %5 : vector<2x16x16x4xf32> to vector<512x4xf32>
    %c0_14 = arith.constant 0 : index
    %c0_15 = arith.constant 0 : index
    %7 = vector.load %arg5[%c0_14, %c0_15] : memref<512x36xf32, #tpu.memory_space<vmem>>, vector<512x4xf32>
    tpu.vector_store %arg5[%c0_14, %c0_15], %6 {strides = array<i32>} : memref<512x36xf32, #tpu.memory_space<vmem>>, vector<512x4xf32>,
    %8 = vector.extract_strided_slice %4 {offsets = [0, 0, 1, 0], sizes = [2, 16, 16, 4], strides = [1, 1, 1, 1]} : vector<2x18x18x4xf32> to vector<2x16x16x4xf32>
    %9 = vector.shape_cast %8 : vector<2x16x16x4xf32> to vector<512x4xf32>
    %c0_16 = arith.constant 0 : index
    %c4 = arith.constant 4 : index
    %10 = vector.load %arg5[%c0_16, %c4] : memref<512x36xf32, #tpu.memory_space<vmem>>, vector<512x4xf32>
    tpu.vector_store %arg5[%c0_16, %c4], %9 {strides = array<i32>} : memref<512x36xf32, #tpu.memory_space<vmem>>, vector<512x4xf32>,
    %11 = vector.extract_strided_slice %4 {offsets = [0, 0, 2, 0], sizes = [2, 16, 16, 4], strides = [1, 1, 1, 1]} : vector<2x18x18x4xf32> to vector<2x16x16x4xf32>
    %12 = vector.shape_cast %11 : vector<2x16x16x4xf32> to vector<512x4xf32>
    %c0_17 = arith.constant 0 : index
    %c8 = arith.constant 8 : index
    %13 = vector.load %arg5[%c0_17, %c8] : memref<512x36xf32, #tpu.memory_space<vmem>>, vector<512x4xf32>
    tpu.vector_store %arg5[%c0_17, %c8], %12 {strides = array<i32>} : memref<512x36xf32, #tpu.memory_space<vmem>>, vector<512x4xf32>,
    %14 = vector.extract_strided_slice %4 {offsets = [0, 1, 0, 0], sizes = [2, 16, 16, 4], strides = [1, 1, 1, 1]} : vector<2x18x18x4xf32> to vector<2x16x16x4xf32>
    %15 = vector.shape_cast %14 : vector<2x16x16x4xf32> to vector<512x4xf32>
    %c0_18 = arith.constant 0 : index
    %c12 = arith.constant 12 : index
    %16 = vector.load %arg5[%c0_18, %c12] : memref<512x36xf32, #tpu.memory_space<vmem>>, vector<512x4xf32>
    tpu.vector_store %arg5[%c0_18, %c12], %15 {strides = array<i32>} : memref<512x36xf32, #tpu.memory_space<vmem>>, vector<512x4xf32>,
    %17 = vector.extract_strided_slice %4 {offsets = [0, 1, 1, 0], sizes = [2, 16, 16, 4], strides = [1, 1, 1, 1]} : vector<2x18x18x4xf32> to vector<2x16x16x4xf32>
    %18 = vector.shape_cast %17 : vector<2x16x16x4xf32> to vector<512x4xf32>
    %c0_19 = arith.constant 0 : index
    %c16 = arith.constant 16 : index
    %19 = vector.load %arg5[%c0_19, %c16] : memref<512x36xf32, #tpu.memory_space<vmem>>, vector<512x4xf32>
    tpu.vector_store %arg5[%c0_19, %c16], %18 {strides = array<i32>} : memref<512x36xf32, #tpu.memory_space<vmem>>, vector<512x4xf32>,
    %20 = vector.extract_strided_slice %4 {offsets = [0, 1, 2, 0], sizes = [2, 16, 16, 4], strides = [1, 1, 1, 1]} : vector<2x18x18x4xf32> to vector<2x16x16x4xf32>
    %21 = vector.shape_cast %20 : vector<2x16x16x4xf32> to vector<512x4xf32>
    %c0_20 = arith.constant 0 : index
    %c20 = arith.constant 20 : index
    %22 = vector.load %arg5[%c0_20, %c20] : memref<512x36xf32, #tpu.memory_space<vmem>>, vector<512x4xf32>
    tpu.vector_store %arg5[%c0_20, %c20], %21 {strides = array<i32>} : memref<512x36xf32, #tpu.memory_space<vmem>>, vector<512x4xf32>,
    %23 = vector.extract_strided_slice %4 {offsets = [0, 2, 0, 0], sizes = [2, 16, 16, 4], strides = [1, 1, 1, 1]} : vector<2x18x18x4xf32> to vector<2x16x16x4xf32>
    %24 = vector.shape_cast %23 : vector<2x16x16x4xf32> to vector<512x4xf32>
    %c0_21 = arith.constant 0 : index
    %c24 = arith.constant 24 : index
    %25 = vector.load %arg5[%c0_21, %c24] : memref<512x36xf32, #tpu.memory_space<vmem>>, vector<512x4xf32>
    tpu.vector_store %arg5[%c0_21, %c24], %24 {strides = array<i32>} : memref<512x36xf32, #tpu.memory_space<vmem>>, vector<512x4xf32>,
    %26 = vector.extract_strided_slice %4 {offsets = [0, 2, 1, 0], sizes = [2, 16, 16, 4], strides = [1, 1, 1, 1]} : vector<2x18x18x4xf32> to vector<2x16x16x4xf32>
    %27 = vector.shape_cast %26 : vector<2x16x16x4xf32> to vector<512x4xf32>
    %c0_22 = arith.constant 0 : index
    %c28 = arith.constant 28 : index
    %28 = vector.load %arg5[%c0_22, %c28] : memref<512x36xf32, #tpu.memory_space<vmem>>, vector<512x4xf32>
    tpu.vector_store %arg5[%c0_22, %c28], %27 {strides = array<i32>} : memref<512x36xf32, #tpu.memory_space<vmem>>, vector<512x4xf32>,
    %29 = vector.extract_strided_slice %4 {offsets = [0, 2, 2, 0], sizes = [2, 16, 16, 4], strides = [1, 1, 1, 1]} : vector<2x18x18x4xf32> to vector<2x16x16x4xf32>
    %30 = vector.shape_cast %29 : vector<2x16x16x4xf32> to vector<512x4xf32>
    %c0_23 = arith.constant 0 : index
    %c32 = arith.constant 32 : index
    %31 = vector.load %arg5[%c0_23, %c32] : memref<512x36xf32, #tpu.memory_space<vmem>>, vector<512x4xf32>
    tpu.vector_store %arg5[%c0_23, %c32], %30 {strides = array<i32>} : memref<512x36xf32, #tpu.memory_space<vmem>>, vector<512x4xf32>,
    %c0_24 = arith.constant 0 : index
    %c0_25 = arith.constant 0 : index
    %32 = vector.load %arg5[%c0_24, %c0_25] : memref<512x36xf32, #tpu.memory_space<vmem>>, vector<512x36xf32>
    %c0_26 = arith.constant 0 : index
    %c0_27 = arith.constant 0 : index
    %33 = vector.load %arg2[%c0_26, %c0_27] : memref<36x128xf32, #tpu.memory_space<vmem>>, vector<36x128xf32>
    %cst_28 = arith.constant dense<0.000000e+00> : vector<512x128xf32>
    %34 = tpu.matmul %32, %33, %cst_28 {dimension_numbers = #tpu.dot_dimension_numbers<[1], [0], [0], [1], [0, 0, 1, 1], [], []>, precision = #tpu.contract_precision<fp32>} : vector<512x36xf32>, vector<36x128xf32>, vector<512x128xf32> -> vector<512x128xf32>
    %cst_29 = arith.constant dense<0.000000e+00> : vector<128xf32>
    %35 = vector.multi_reduction <add>, %34, %cst_29 [0] : vector<512x128xf32> to vector<128xf32>
    %36 = vector.shape_cast %35 : vector<128xf32> to vector<1x128xf32>
    %cst_30 = arith.constant 5.120000e+02 : f32
    %37 = vector.broadcast %cst_30 : f32 to vector<1x128xf32>
    %38 = arith.divf %36, %37 : vector<1x128xf32>
    %39 = vector.broadcast %38 : vector<1x128xf32> to vector<512x128xf32>
    %40 = arith.subf %34, %39 : vector<512x128xf32>
    %41 = arith.mulf %40, %40 : vector<512x128xf32>
    %cst_31 = arith.constant dense<0.000000e+00> : vector<128xf32>
    %42 = vector.multi_reduction <add>, %41, %cst_31 [0] : vector<512x128xf32> to vector<128xf32>
    %43 = vector.shape_cast %42 : vector<128xf32> to vector<1x128xf32>
    %cst_32 = arith.constant 5.120000e+02 : f32
    %44 = vector.broadcast %cst_32 : f32 to vector<1x128xf32>
    %45 = arith.divf %43, %44 : vector<1x128xf32>
    %46 = vector.broadcast %38 : vector<1x128xf32> to vector<512x128xf32>
    %47 = arith.subf %34, %46 : vector<512x128xf32>
    %cst_33 = arith.constant 1.000000e-03 : f32
    %48 = vector.broadcast %cst_33 : f32 to vector<1x128xf32>
    %49 = arith.addf %45, %48 : vector<1x128xf32>
    %50 = math.rsqrt %49 : vector<1x128xf32>
    %51 = vector.broadcast %50 : vector<1x128xf32> to vector<512x128xf32>
    %52 = arith.mulf %47, %51 : vector<512x128xf32>
    %cst_34 = arith.constant 0.000000e+00 : f32
    %53 = vector.broadcast %cst_34 : f32 to vector<512x128xf32>
    %54 = arith.maximumf %52, %53 : vector<512x128xf32>
    %c0_35 = arith.constant 0 : index
    %c0_36 = arith.constant 0 : index
    %55 = vector.load %arg3[%c0_35, %c0_36] : memref<512x128xf32, #tpu.memory_space<vmem>>, vector<512x128xf32>
    tpu.vector_store %arg3[%c0_35, %c0_36], %54 {strides = array<i32>} : memref<512x128xf32, #tpu.memory_space<vmem>>, vector<512x128xf32>,
    return
  }
  func.func @transform_0(%arg0: i32) -> (i32, i32, i32, i32) {
    %c0_i32 = arith.constant 0 : i32
    %c0_i32_0 = arith.constant 0 : i32
    %c0_i32_1 = arith.constant 0 : i32
    %c0_i32_2 = arith.constant 0 : i32
    %c0_i32_3 = arith.constant 0 : i32
    return %c0_i32, %c0_i32_0, %c0_i32_1, %c0_i32_2 : i32, i32, i32, i32
  }
  func.func @transform_1(%arg0: i32) -> (i32, i32) {
    %c0_i32 = arith.constant 0 : i32
    %c0_i32_0 = arith.constant 0 : i32
    %c0_i32_1 = arith.constant 0 : i32
    return %c0_i32, %c0_i32_0 : i32, i32
  }
  func.func @transform_2(%arg0: i32) -> (i32, i32) {
    %c0_i32 = arith.constant 0 : i32
    %c0_i32_0 = arith.constant 0 : i32
    %c0_i32_1 = arith.constant 0 : i32
    return %c0_i32, %c0_i32_0 : i32, i32
  }
}

</mosaic_0001>

<llo_original>
// kernel: basic_conv2d_forward.1
$region0: #{basic_conv2d_forward.1}
  #allocation0 [shape = 'u32[]', space=smem, size = 0x4, offset = 0x4, fixed_abs, tag = 'smem constant byte address 0x4 - core index']
  #allocation1 [shape = 'u32[72,128]{1,0:T(1,128)}', space=vmem, size = 0x9000, scoped, tag = 'internal scratch']
  #allocation2 [shape = 'f32[2,18,18,4]{3,2,1,0:T(8,128)}', space=vmem, size = 0x6c000, scoped, tag = 'scratch operand']
  #allocation3 [shape = 'f32[512,36]{1,0:T(8,128)}', space=vmem, size = 0x40000, scoped, tag = 'scratch operand']
  %s0 = inlined_call_operand.vmem [shape: f32[2,16,16,4], index: 0, kind: input, shape index: {}]
  %s1 = inlined_call_operand.vmem [shape: f32[36,128], index: 1, kind: input, shape index: {}]
  %s2 = inlined_call_operand.vmem [shape: f32[512,128], index: 2, kind: output, shape index: {}]
  %s3 = sld [smem:[#allocation0]]
  $region18: #{basic_conv2d_forward.1} parent=0
    _
  %s5 = ssub.s32 1, %s3
  %s6 = scalar_select 0, %s5, %s3
  // Predicated region
  $region2: #{basic_conv2d_forward.1} parent=0 // pred_check
    _
  $region3: #{basic_conv2d_forward.1} parent=0 // pred_check_branch
    %8 = sbr.rel (0) target = $region5
  $region4: #{basic_conv2d_forward.1} parent=0 // pred_region
    _
  $region5: #{basic_conv2d_forward.1} parent=0 // pred_fallthru
    _
  // Predicated region
  $region6: #{basic_conv2d_forward.1} parent=0 // pred_check
    _
  $region7: #{basic_conv2d_forward.1} parent=0 // pred_check_branch
    %10 = sbr.rel (0) target = $region9
  $region8: #{basic_conv2d_forward.1} parent=0 // pred_region
    _
  $region9: #{basic_conv2d_forward.1} parent=0 // pred_fallthru
    _
  %vm11 = vcmask 31744
  %12 = vst.msk [vmem:[#allocation2] sm:$0xff] %vm11, 0.0
  %13 = vst.msk [vmem:[#allocation2 + $0x8] sm:$0xff] %vm11, 0.0
  %vm14 = vcmask 25600
  %15 = vst.msk [vmem:[#allocation2 + $0x10] sm:$0x3] %vm14, 0.0
  %16 = vst.msk [vmem:[#allocation2 + $0x18] sm:$0xff] %vm11, 0.0
  %17 = vst.msk [vmem:[#allocation2 + $0x20] sm:$0xff] %vm11, 0.0
  %18 = vst.msk [vmem:[#allocation2 + $0x28] sm:$0x3] %vm14, 0.0
  %19 = vst.msk [vmem:[#allocation2 + $0x30] sm:$0xff] %vm11, 0.0
  %20 = vst.msk [vmem:[#allocation2 + $0x38] sm:$0xff] %vm11, 0.0
  %21 = vst.msk [vmem:[#allocation2 + $0x40] sm:$0x3] %vm14, 0.0
  %22 = vst.msk [vmem:[#allocation2 + $0x48] sm:$0xff] %vm11, 0.0
  %23 = vst.msk [vmem:[#allocation2 + $0x50] sm:$0xff] %vm11, 0.0
  %24 = vst.msk [vmem:[#allocation2 + $0x58] sm:$0x3] %vm14, 0.0
  %25 = vst.msk [vmem:[#allocation2 + $0x60] sm:$0xff] %vm11, 0.0
  %26 = vst.msk [vmem:[#allocation2 + $0x68] sm:$0xff] %vm11, 0.0
  %27 = vst.msk [vmem:[#allocation2 + $0x70] sm:$0x3] %vm14, 0.0
  %28 = vst.msk [vmem:[#allocation2 + $0x78] sm:$0xff] %vm11, 0.0
  %29 = vst.msk [vmem:[#allocation2 + $0x80] sm:$0xff] %vm11, 0.0
  %30 = vst.msk [vmem:[#allocation2 + $0x88] sm:$0x3] %vm14, 0.0
  %31 = vst.msk [vmem:[#allocation2 + $0x90] sm:$0xff] %vm11, 0.0
  %32 = vst.msk [vmem:[#allocation2 + $0x98] sm:$0xff] %vm11, 0.0
  %33 = vst.msk [vmem:[#allocation2 + $0xa0] sm:$0x3] %vm14, 0.0
  %34 = vst.msk [vmem:[#allocation2 + $0xa8] sm:$0xff] %vm11, 0.0
  %35 = vst.msk [vmem:[#allocation2 + $0xb0] sm:$0xff] %vm11, 0.0
  %36 = vst.msk [vmem:[#allocation2 + $0xb8] sm:$0x3] %vm14, 0.0
  %37 = vst.msk [vmem:[#allocation2 + $0xc0] sm:$0xff] %vm11, 0.0
  %38 = vst.msk [vmem:[#allocation2 + $0xc8] sm:$0xff] %vm11, 0.0
  %39 = vst.msk [vmem:[#allocation2 + $0xd0] sm:$0x3] %vm14, 0.0
  %40 = vst.msk [vmem:[#allocation2 + $0xd8] sm:$0xff] %vm11, 0.0
  %41 = vst.msk [vmem:[#allocation2 + $0xe0] sm:$0xff] %vm11, 0.0
  %42 = vst.msk [vmem:[#allocation2 + $0xe8] sm:$0x3] %vm14, 0.0
  %43 = vst.msk [vmem:[#allocation2 + $0xf0] sm:$0xff] %vm11, 0.0
  %44 = vst.msk [vmem:[#allocation2 + $0xf8] sm:$0xff] %vm11, 0.0
  %45 = vst.msk [vmem:[#allocation2 + $0x100] sm:$0x3] %vm14, 0.0
  %46 = vst.msk [vmem:[#allocation2 + $0x108] sm:$0xff] %vm11, 0.0
  %47 = vst.msk [vmem:[#allocation2 + $0x110] sm:$0xff] %vm11, 0.0
  %48 = vst.msk [vmem:[#allocation2 + $0x118] sm:$0x3] %vm14, 0.0
  %49 = vst.msk [vmem:[#allocation2 + $0x120] sm:$0xff] %vm11, 0.0
  %50 = vst.msk [vmem:[#allocation2 + $0x128] sm:$0xff] %vm11, 0.0
  %51 = vst.msk [vmem:[#allocation2 + $0x130] sm:$0x3] %vm14, 0.0
  %52 = vst.msk [vmem:[#allocation2 + $0x138] sm:$0xff] %vm11, 0.0
  %53 = vst.msk [vmem:[#allocation2 + $0x140] sm:$0xff] %vm11, 0.0
  %54 = vst.msk [vmem:[#allocation2 + $0x148] sm:$0x3] %vm14, 0.0
  %55 = vst.msk [vmem:[#allocation2 + $0x150] sm:$0xff] %vm11, 0.0
  %56 = vst.msk [vmem:[#allocation2 + $0x158] sm:$0xff] %vm11, 0.0
  %57 = vst.msk [vmem:[#allocation2 + $0x160] sm:$0x3] %vm14, 0.0
  %58 = vst.msk [vmem:[#allocation2 + $0x168] sm:$0xff] %vm11, 0.0
  %59 = vst.msk [vmem:[#allocation2 + $0x170] sm:$0xff] %vm11, 0.0
  %60 = vst.msk [vmem:[#allocation2 + $0x178] sm:$0x3] %vm14, 0.0
  %61 = vst.msk [vmem:[#allocation2 + $0x180] sm:$0xff] %vm11, 0.0
  %62 = vst.msk [vmem:[#allocation2 + $0x188] sm:$0xff] %vm11, 0.0
  %63 = vst.msk [vmem:[#allocation2 + $0x190] sm:$0x3] %vm14, 0.0
  %64 = vst.msk [vmem:[#allocation2 + $0x198] sm:$0xff] %vm11, 0.0
  %65 = vst.msk [vmem:[#allocation2 + $0x1a0] sm:$0xff] %vm11, 0.0
  %66 = vst.msk [vmem:[#allocation2 + $0x1a8] sm:$0x3] %vm14, 0.0
  %67 = vst.msk [vmem:[#allocation2 + $0x1b0] sm:$0xff] %vm11, 0.0
  %68 = vst.msk [vmem:[#allocation2 + $0x1b8] sm:$0xff] %vm11, 0.0
  %69 = vst.msk [vmem:[#allocation2 + $0x1c0] sm:$0x3] %vm14, 0.0
  %70 = vst.msk [vmem:[#allocation2 + $0x1c8] sm:$0xff] %vm11, 0.0
  %71 = vst.msk [vmem:[#allocation2 + $0x1d0] sm:$0xff] %vm11, 0.0
  %72 = vst.msk [vmem:[#allocation2 + $0x1d8] sm:$0x3] %vm14, 0.0
  %73 = vst.msk [vmem:[#allocation2 + $0x1e0] sm:$0xff] %vm11, 0.0
  %74 = vst.msk [vmem:[#allocation2 + $0x1e8] sm:$0xff] %vm11, 0.0
  %75 = vst.msk [vmem:[#allocation2 + $0x1f0] sm:$0x3] %vm14, 0.0
  %76 = vst.msk [vmem:[#allocation2 + $0x1f8] sm:$0xff] %vm11, 0.0
  %77 = vst.msk [vmem:[#allocation2 + $0x200] sm:$0xff] %vm11, 0.0
  %78 = vst.msk [vmem:[#allocation2 + $0x208] sm:$0x3] %vm14, 0.0
  %79 = vst.msk [vmem:[#allocation2 + $0x210] sm:$0xff] %vm11, 0.0
  %80 = vst.msk [vmem:[#allocation2 + $0x218] sm:$0xff] %vm11, 0.0
  %81 = vst.msk [vmem:[#allocation2 + $0x220] sm:$0x3] %vm14, 0.0
  %82 = vst.msk [vmem:[#allocation2 + $0x228] sm:$0xff] %vm11, 0.0
  %83 = vst.msk [vmem:[#allocation2 + $0x230] sm:$0xff] %vm11, 0.0
  %84 = vst.msk [vmem:[#allocation2 + $0x238] sm:$0x3] %vm14, 0.0
  %85 = vst.msk [vmem:[#allocation2 + $0x240] sm:$0xff] %vm11, 0.0
  %86 = vst.msk [vmem:[#allocation2 + $0x248] sm:$0xff] %vm11, 0.0
  %87 = vst.msk [vmem:[#allocation2 + $0x250] sm:$0x3] %vm14, 0.0
  %88 = vst.msk [vmem:[#allocation2 + $0x258] sm:$0xff] %vm11, 0.0
  %89 = vst.msk [vmem:[#allocation2 + $0x260] sm:$0xff] %vm11, 0.0
  %90 = vst.msk [vmem:[#allocation2 + $0x268] sm:$0x3] %vm14, 0.0
  %91 = vst.msk [vmem:[#allocation2 + $0x270] sm:$0xff] %vm11, 0.0
  %92 = vst.msk [vmem:[#allocation2 + $0x278] sm:$0xff] %vm11, 0.0
  %93 = vst.msk [vmem:[#allocation2 + $0x280] sm:$0x3] %vm14, 0.0
  %94 = vst.msk [vmem:[#allocation2 + $0x288] sm:$0xff] %vm11, 0.0
  %95 = vst.msk [vmem:[#allocation2 + $0x290] sm:$0xff] %vm11, 0.0
  %96 = vst.msk [vmem:[#allocation2 + $0x298] sm:$0x3] %vm14, 0.0
  %97 = vst.msk [vmem:[#allocation2 + $0x2a0] sm:$0xff] %vm11, 0.0
  %98 = vst.msk [vmem:[#allocation2 + $0x2a8] sm:$0xff] %vm11, 0.0
  %99 = vst.msk [vmem:[#allocation2 + $0x2b0] sm:$0x3] %vm14, 0.0
  %100 = vst.msk [vmem:[#allocation2 + $0x2b8] sm:$0xff] %vm11, 0.0
  %101 = vst.msk [vmem:[#allocation2 + $0x2c0] sm:$0xff] %vm11, 0.0
  %102 = vst.msk [vmem:[#allocation2 + $0x2c8] sm:$0x3] %vm14, 0.0
  %103 = vst.msk [vmem:[#allocation2 + $0x2d0] sm:$0xff] %vm11, 0.0
  %104 = vst.msk [vmem:[#allocation2 + $0x2d8] sm:$0xff] %vm11, 0.0
  %105 = vst.msk [vmem:[#allocation2 + $0x2e0] sm:$0x3] %vm14, 0.0
  %106 = vst.msk [vmem:[#allocation2 + $0x2e8] sm:$0xff] %vm11, 0.0
  %107 = vst.msk [vmem:[#allocation2 + $0x2f0] sm:$0xff] %vm11, 0.0
  %108 = vst.msk [vmem:[#allocation2 + $0x2f8] sm:$0x3] %vm14, 0.0
  %109 = vst.msk [vmem:[#allocation2 + $0x300] sm:$0xff] %vm11, 0.0
  %110 = vst.msk [vmem:[#allocation2 + $0x308] sm:$0xff] %vm11, 0.0
  %111 = vst.msk [vmem:[#allocation2 + $0x310] sm:$0x3] %vm14, 0.0
  %112 = vst.msk [vmem:[#allocation2 + $0x318] sm:$0xff] %vm11, 0.0
  %113 = vst.msk [vmem:[#allocation2 + $0x320] sm:$0xff] %vm11, 0.0
  %114 = vst.msk [vmem:[#allocation2 + $0x328] sm:$0x3] %vm14, 0.0
  %115 = vst.msk [vmem:[#allocation2 + $0x330] sm:$0xff] %vm11, 0.0
  %116 = vst.msk [vmem:[#allocation2 + $0x338] sm:$0xff] %vm11, 0.0
  %117 = vst.msk [vmem:[#allocation2 + $0x340] sm:$0x3] %vm14, 0.0
  %118 = vst.msk [vmem:[#allocation2 + $0x348] sm:$0xff] %vm11, 0.0
  %119 = vst.msk [vmem:[#allocation2 + $0x350] sm:$0xff] %vm11, 0.0
  %120 = vst.msk [vmem:[#allocation2 + $0x358] sm:$0x3] %vm14, 0.0
  %v121 = vld [vmem:[%s0] sm:$0xff]
  %v122 = vld [vmem:[%s0 + $0x8] sm:$0xff]
  %v123 = vld [vmem:[%s0 + $0x10] sm:$0xff]
  %v124 = vld [vmem:[%s0 + $0x18] sm:$0xff]
  %v125 = vld [vmem:[%s0 + $0x20] sm:$0xff]
  %v126 = vld [vmem:[%s0 + $0x28] sm:$0xff]
  %v127 = vld [vmem:[%s0 + $0x30] sm:$0xff]
  %v128 = vld [vmem:[%s0 + $0x38] sm:$0xff]
  %v129 = vld [vmem:[%s0 + $0x40] sm:$0xff]
  %v130 = vld [vmem:[%s0 + $0x48] sm:$0xff]
  %v131 = vld [vmem:[%s0 + $0x50] sm:$0xff]
  %v132 = vld [vmem:[%s0 + $0x58] sm:$0xff]
  %v133 = vld [vmem:[%s0 + $0x60] sm:$0xff]
  %v134 = vld [vmem:[%s0 + $0x68] sm:$0xff]
  %v135 = vld [vmem:[%s0 + $0x70] sm:$0xff]
  %v136 = vld [vmem:[%s0 + $0x78] sm:$0xff]
  %v137 = vld [vmem:[%s0 + $0x80] sm:$0xff]
  %v138 = vld [vmem:[%s0 + $0x88] sm:$0xff]
  %v139 = vld [vmem:[%s0 + $0x90] sm:$0xff]
  %v140 = vld [vmem:[%s0 + $0x98] sm:$0xff]
  %v141 = vld [vmem:[%s0 + $0xa0] sm:$0xff]
  %v142 = vld [vmem:[%s0 + $0xa8] sm:$0xff]
  %v143 = vld [vmem:[%s0 + $0xb0] sm:$0xff]
  %v144 = vld [vmem:[%s0 + $0xb8] sm:$0xff]
  %v145 = vld [vmem:[%s0 + $0xc0] sm:$0xff]
  %v146 = vld [vmem:[%s0 + $0xc8] sm:$0xff]
  %v147 = vld [vmem:[%s0 + $0xd0] sm:$0xff]
  %v148 = vld [vmem:[%s0 + $0xd8] sm:$0xff]
  %v149 = vld [vmem:[%s0 + $0xe0] sm:$0xff]
  %v150 = vld [vmem:[%s0 + $0xe8] sm:$0xff]
  %v151 = vld [vmem:[%s0 + $0xf0] sm:$0xff]
  %v152 = vld [vmem:[%s0 + $0xf8] sm:$0xff]
  %v153 = vld [vmem:[%s0 + $0x100] sm:$0xff]
  %v154 = vld [vmem:[%s0 + $0x108] sm:$0xff]
  %v155 = vld [vmem:[%s0 + $0x110] sm:$0xff]
  %v156 = vld [vmem:[%s0 + $0x118] sm:$0xff]
  %v157 = vld [vmem:[%s0 + $0x120] sm:$0xff]
  %v158 = vld [vmem:[%s0 + $0x128] sm:$0xff]
  %v159 = vld [vmem:[%s0 + $0x130] sm:$0xff]
  %v160 = vld [vmem:[%s0 + $0x138] sm:$0xff]
  %v161 = vld [vmem:[%s0 + $0x140] sm:$0xff]
  %v162 = vld [vmem:[%s0 + $0x148] sm:$0xff]
  %v163 = vld [vmem:[%s0 + $0x150] sm:$0xff]
  %v164 = vld [vmem:[%s0 + $0x158] sm:$0xff]
  %v165 = vld [vmem:[%s0 + $0x160] sm:$0xff]
  %v166 = vld [vmem:[%s0 + $0x168] sm:$0xff]
  %v167 = vld [vmem:[%s0 + $0x170] sm:$0xff]
  %v168 = vld [vmem:[%s0 + $0x178] sm:$0xff]
  %v169 = vld [vmem:[%s0 + $0x180] sm:$0xff]
  %v170 = vld [vmem:[%s0 + $0x188] sm:$0xff]
  %v171 = vld [vmem:[%s0 + $0x190] sm:$0xff]
  %v172 = vld [vmem:[%s0 + $0x198] sm:$0xff]
  %v173 = vld [vmem:[%s0 + $0x1a0] sm:$0xff]
  %v174 = vld [vmem:[%s0 + $0x1a8] sm:$0xff]
  %v175 = vld [vmem:[%s0 + $0x1b0] sm:$0xff]
  %v176 = vld [vmem:[%s0 + $0x1b8] sm:$0xff]
  %v177 = vld [vmem:[%s0 + $0x1c0] sm:$0xff]
  %v178 = vld [vmem:[%s0 + $0x1c8] sm:$0xff]
  %v179 = vld [vmem:[%s0 + $0x1d0] sm:$0xff]
  %v180 = vld [vmem:[%s0 + $0x1d8] sm:$0xff]
  %v181 = vld [vmem:[%s0 + $0x1e0] sm:$0xff]
  %v182 = vld [vmem:[%s0 + $0x1e8] sm:$0xff]
  %v183 = vld [vmem:[%s0 + $0x1f0] sm:$0xff]
  %v184 = vld [vmem:[%s0 + $0x1f8] sm:$0xff]
  %s185 = scalar_lea.vmem [#allocation2], 24
  %186 = vst.msk [vmem:[%s185 + $0x1] sm:$0xff] %vm11, %v121
  %187 = vst.msk [vmem:[%s185 + $0x9] sm:$0xff] %vm11, %v122
  %188 = vst.msk [vmem:[%s185 + $0x19] sm:$0xff] %vm11, %v123
  %189 = vst.msk [vmem:[%s185 + $0x21] sm:$0xff] %vm11, %v124
  %190 = vst.msk [vmem:[%s185 + $0x31] sm:$0xff] %vm11, %v125
  %191 = vst.msk [vmem:[%s185 + $0x39] sm:$0xff] %vm11, %v126
  %192 = vst.msk [vmem:[%s185 + $0x49] sm:$0xff] %vm11, %v127
  %193 = vst.msk [vmem:[%s185 + $0x51] sm:$0xff] %vm11, %v128
  %194 = vst.msk [vmem:[%s185 + $0x61] sm:$0xff] %vm11, %v129
  %195 = vst.msk [vmem:[%s185 + $0x69] sm:$0xff] %vm11, %v130
  %196 = vst.msk [vmem:[%s185 + $0x79] sm:$0xff] %vm11, %v131
  %197 = vst.msk [vmem:[%s185 + $0x81] sm:$0xff] %vm11, %v132
  %198 = vst.msk [vmem:[%s185 + $0x91] sm:$0xff] %vm11, %v133
  %199 = vst.msk [vmem:[%s185 + $0x99] sm:$0xff] %vm11, %v134
  %200 = vst.msk [vmem:[%s185 + $0xa9] sm:$0xff] %vm11, %v135
  %201 = vst.msk [vmem:[%s185 + $0xb1] sm:$0xff] %vm11, %v136
  %202 = vst.msk [vmem:[%s185 + $0xc1] sm:$0xff] %vm11, %v137
  %203 = vst.msk [vmem:[%s185 + $0xc9] sm:$0xff] %vm11, %v138
  %204 = vst.msk [vmem:[%s185 + $0xd9] sm:$0xff] %vm11, %v139
  %205 = vst.msk [vmem:[%s185 + $0xe1] sm:$0xff] %vm11, %v140
  %206 = vst.msk [vmem:[%s185 + $0xf1] sm:$0xff] %vm11, %v141
  %207 = vst.msk [vmem:[%s185 + $0xf9] sm:$0xff] %vm11, %v142
  %208 = vst.msk [vmem:[%s185 + $0x109] sm:$0xff] %vm11, %v143
  %209 = vst.msk [vmem:[%s185 + $0x111] sm:$0xff] %vm11, %v144
  %210 = vst.msk [vmem:[%s185 + $0x121] sm:$0xff] %vm11, %v145
  %211 = vst.msk [vmem:[%s185 + $0x129] sm:$0xff] %vm11, %v146
  %212 = vst.msk [vmem:[%s185 + $0x139] sm:$0xff] %vm11, %v147
  %213 = vst.msk [vmem:[%s185 + $0x141] sm:$0xff] %vm11, %v148
  %214 = vst.msk [vmem:[%s185 + $0x151] sm:$0xff] %vm11, %v149
  %215 = vst.msk [vmem:[%s185 + $0x159] sm:$0xff] %vm11, %v150
  %216 = vst.msk [vmem:[%s185 + $0x169] sm:$0xff] %vm11, %v151
  %217 = vst.msk [vmem:[%s185 + $0x171] sm:$0xff] %vm11, %v152
  %218 = vst.msk [vmem:[%s185 + $0x1b1] sm:$0xff] %vm11, %v153
  %219 = vst.msk [vmem:[%s185 + $0x1b9] sm:$0xff] %vm11, %v154
  %220 = vst.msk [vmem:[%s185 + $0x1c9] sm:$0xff] %vm11, %v155
  %221 = vst.msk [vmem:[%s185 + $0x1d1] sm:$0xff] %vm11, %v156
  %222 = vst.msk [vmem:[%s185 + $0x1e1] sm:$0xff] %vm11, %v157
  %223 = vst.msk [vmem:[%s185 + $0x1e9] sm:$0xff] %vm11, %v158
  %224 = vst.msk [vmem:[%s185 + $0x1f9] sm:$0xff] %vm11, %v159
  %225 = vst.msk [vmem:[%s185 + $0x201] sm:$0xff] %vm11, %v160
  %226 = vst.msk [vmem:[%s185 + $0x211] sm:$0xff] %vm11, %v161
  %227 = vst.msk [vmem:[%s185 + $0x219] sm:$0xff] %vm11, %v162
  %228 = vst.msk [vmem:[%s185 + $0x229] sm:$0xff] %vm11, %v163
  %229 = vst.msk [vmem:[%s185 + $0x231] sm:$0xff] %vm11, %v164
  %230 = vst.msk [vmem:[%s185 + $0x241] sm:$0xff] %vm11, %v165
  %231 = vst.msk [vmem:[%s185 + $0x249] sm:$0xff] %vm11, %v166
  %232 = vst.msk [vmem:[%s185 + $0x259] sm:$0xff] %vm11, %v167
  %233 = vst.msk [vmem:[%s185 + $0x261] sm:$0xff] %vm11, %v168
  %234 = vst.msk [vmem:[%s185 + $0x271] sm:$0xff] %vm11, %v169
  %235 = vst.msk [vmem:[%s185 + $0x279] sm:$0xff] %vm11, %v170
  %236 = vst.msk [vmem:[%s185 + $0x289] sm:$0xff] %vm11, %v171
  %237 = vst.msk [vmem:[%s185 + $0x291] sm:$0xff] %vm11, %v172
  %238 = vst.msk [vmem:[%s185 + $0x2a1] sm:$0xff] %vm11, %v173
  %239 = vst.msk [vmem:[%s185 + $0x2a9] sm:$0xff] %vm11, %v174
  %240 = vst.msk [vmem:[%s185 + $0x2b9] sm:$0xff] %vm11, %v175
  %241 = vst.msk [vmem:[%s185 + $0x2c1] sm:$0xff] %vm11, %v176
  %242 = vst.msk [vmem:[%s185 + $0x2d1] sm:$0xff] %vm11, %v177
  %243 = vst.msk [vmem:[%s185 + $0x2d9] sm:$0xff] %vm11, %v178
  %244 = vst.msk [vmem:[%s185 + $0x2e9] sm:$0xff] %vm11, %v179
  %245 = vst.msk [vmem:[%s185 + $0x2f1] sm:$0xff] %vm11, %v180
  %246 = vst.msk [vmem:[%s185 + $0x301] sm:$0xff] %vm11, %v181
  %247 = vst.msk [vmem:[%s185 + $0x309] sm:$0xff] %vm11, %v182
  %248 = vst.msk [vmem:[%s185 + $0x319] sm:$0xff] %vm11, %v183
  %249 = vst.msk [vmem:[%s185 + $0x321] sm:$0xff] %vm11, %v184
  %v250 = vld [vmem:[#allocation2] sm:$0xff]
  %v251 = vld [vmem:[#allocation2 + $0x8] sm:$0xff]
  %v252 = vld [vmem:[#allocation2 + $0x10] sm:$0x3]
  %v253 = vld [vmem:[#allocation2 + $0x18] sm:$0xff]
  %v254 = vld [vmem:[#allocation2 + $0x20] sm:$0xff]
  %v255 = vld [vmem:[#allocation2 + $0x28] sm:$0x3]
  %v256 = vld [vmem:[#allocation2 + $0x30] sm:$0xff]
  %v257 = vld [vmem:[#allocation2 + $0x38] sm:$0xff]
  %v258 = vld [vmem:[#allocation2 + $0x40] sm:$0x3]
  %v259 = vld [vmem:[#allocation2 + $0x48] sm:$0xff]
  %v260 = vld [vmem:[#allocation2 + $0x50] sm:$0xff]
  %v261 = vld [vmem:[#allocation2 + $0x58] sm:$0x3]
  %v262 = vld [vmem:[#allocation2 + $0x60] sm:$0xff]
  %v263 = vld [vmem:[#allocation2 + $0x68] sm:$0xff]
  %v264 = vld [vmem:[#allocation2 + $0x70] sm:$0x3]
  %v265 = vld [vmem:[#allocation2 + $0x78] sm:$0xff]
  %v266 = vld [vmem:[#allocation2 + $0x80] sm:$0xff]
  %v267 = vld [vmem:[#allocation2 + $0x88] sm:$0x3]
  %v268 = vld [vmem:[#allocation2 + $0x90] sm:$0xff]
  %v269 = vld [vmem:[#allocation2 + $0x98] sm:$0xff]
  %v270 = vld [vmem:[#allocation2 + $0xa0] sm:$0x3]
  %v271 = vld [vmem:[#allocation2 + $0xa8] sm:$0xff]
  %v272 = vld [vmem:[#allocation2 + $0xb0] sm:$0xff]
  %v273 = vld [vmem:[#allocation2 + $0xb8] sm:$0x3]
  %v274 = vld [vmem:[#allocation2 + $0xc0] sm:$0xff]
  %v275 = vld [vmem:[#allocation2 + $0xc8] sm:$0xff]
  %v276 = vld [vmem:[#allocation2 + $0xd0] sm:$0x3]
  %v277 = vld [vmem:[#allocation2 + $0xd8] sm:$0xff]
  %v278 = vld [vmem:[#allocation2 + $0xe0] sm:$0xff]
  %v279 = vld [vmem:[#allocation2 + $0xe8] sm:$0x3]
  %v280 = vld [vmem:[#allocation2 + $0xf0] sm:$0xff]
  %v281 = vld [vmem:[#allocation2 + $0xf8] sm:$0xff]
  %v282 = vld [vmem:[#allocation2 + $0x100] sm:$0x3]
  %v283 = vld [vmem:[#allocation2 + $0x108] sm:$0xff]
  %v284 = vld [vmem:[#allocation2 + $0x110] sm:$0xff]
  %v285 = vld [vmem:[#allocation2 + $0x118] sm:$0x3]
  %v286 = vld [vmem:[#allocation2 + $0x120] sm:$0xff]
  %v287 = vld [vmem:[#allocation2 + $0x128] sm:$0xff]
  %v288 = vld [vmem:[#allocation2 + $0x130] sm:$0x3]
  %v289 = vld [vmem:[#allocation2 + $0x138] sm:$0xff]
  %v290 = vld [vmem:[#allocation2 + $0x140] sm:$0xff]
  %v291 = vld [vmem:[#allocation2 + $0x148] sm:$0x3]
  %v292 = vld [vmem:[#allocation2 + $0x150] sm:$0xff]
  %v293 = vld [vmem:[#allocation2 + $0x158] sm:$0xff]
  %v294 = vld [vmem:[#allocation2 + $0x160] sm:$0x3]
  %v295 = vld [vmem:[#allocation2 + $0x168] sm:$0xff]
  %v296 = vld [vmem:[#allocation2 + $0x170] sm:$0xff]
  %v297 = vld [vmem:[#allocation2 + $0x178] sm:$0x3]
  %v298 = vld [vmem:[#allocation2 + $0x180] sm:$0xff]
  %v299 = vld [vmem:[#allocation2 + $0x188] sm:$0xff]
  %v300 = vld [vmem:[#allocation2 + $0x190] sm:$0x3]
  %v301 = vld [vmem:[#allocation2 + $0x198] sm:$0xff]
  %v302 = vld [vmem:[#allocation2 + $0x1a0] sm:$0xff]
  %v303 = vld [vmem:[#allocation2 + $0x1a8] sm:$0x3]
  %v304 = vld [vmem:[#allocation2 + $0x1b0] sm:$0xff]
  %v305 = vld [vmem:[#allocation2 + $0x1b8] sm:$0xff]
  %v306 = vld [vmem:[#allocation2 + $0x1c0] sm:$0x3]
  %v307 = vld [vmem:[#allocation2 + $0x1c8] sm:$0xff]
  %v308 = vld [vmem:[#allocation2 + $0x1d0] sm:$0xff]
  %v309 = vld [vmem:[#allocation2 + $0x1d8] sm:$0x3]
  %v310 = vld [vmem:[#allocation2 + $0x1e0] sm:$0xff]
  %v311 = vld [vmem:[#allocation2 + $0x1e8] sm:$0xff]
  %v312 = vld [vmem:[#allocation2 + $0x1f0] sm:$0x3]
  %v313 = vld [vmem:[#allocation2 + $0x1f8] sm:$0xff]
  %v314 = vld [vmem:[#allocation2 + $0x200] sm:$0xff]
  %v315 = vld [vmem:[#allocation2 + $0x208] sm:$0x3]
  %v316 = vld [vmem:[#allocation2 + $0x210] sm:$0xff]
  %v317 = vld [vmem:[#allocation2 + $0x218] sm:$0xff]
  %v318 = vld [vmem:[#allocation2 + $0x220] sm:$0x3]
  %v319 = vld [vmem:[#allocation2 + $0x228] sm:$0xff]
  %v320 = vld [vmem:[#allocation2 + $0x230] sm:$0xff]
  %v321 = vld [vmem:[#allocation2 + $0x238] sm:$0x3]
  %v322 = vld [vmem:[#allocation2 + $0x240] sm:$0xff]
  %v323 = vld [vmem:[#allocation2 + $0x248] sm:$0xff]
  %v324 = vld [vmem:[#allocation2 + $0x250] sm:$0x3]
  %v325 = vld [vmem:[#allocation2 + $0x258] sm:$0xff]
  %v326 = vld [vmem:[#allocation2 + $0x260] sm:$0xff]
  %v327 = vld [vmem:[#allocation2 + $0x268] sm:$0x3]
  %v328 = vld [vmem:[#allocation2 + $0x270] sm:$0xff]
  %v329 = vld [vmem:[#allocation2 + $0x278] sm:$0xff]
  %v330 = vld [vmem:[#allocation2 + $0x280] sm:$0x3]
  %v331 = vld [vmem:[#allocation2 + $0x288] sm:$0xff]
  %v332 = vld [vmem:[#allocation2 + $0x290] sm:$0xff]
  %v333 = vld [vmem:[#allocation2 + $0x298] sm:$0x3]
  %v334 = vld [vmem:[#allocation2 + $0x2a0] sm:$0xff]
  %v335 = vld [vmem:[#allocation2 + $0x2a8] sm:$0xff]
  %v336 = vld [vmem:[#allocation2 + $0x2b0] sm:$0x3]
  %v337 = vld [vmem:[#allocation2 + $0x2b8] sm:$0xff]
  %v338 = vld [vmem:[#allocation2 + $0x2c0] sm:$0xff]
  %v339 = vld [vmem:[#allocation2 + $0x2c8] sm:$0x3]
  %v340 = vld [vmem:[#allocation2 + $0x2d0] sm:$0xff]
  %v341 = vld [vmem:[#allocation2 + $0x2d8] sm:$0xff]
  %v342 = vld [vmem:[#allocation2 + $0x2e0] sm:$0x3]
  %v343 = vld [vmem:[#allocation2 + $0x2e8] sm:$0xff]
  %v344 = vld [vmem:[#allocation2 + $0x2f0] sm:$0xff]
  %v345 = vld [vmem:[#allocation2 + $0x2f8] sm:$0x3]
  %v346 = vld [vmem:[#allocation2 + $0x300] sm:$0xff]
  %v347 = vld [vmem:[#allocation2 + $0x308] sm:$0xff]
  %v348 = vld [vmem:[#allocation2 + $0x310] sm:$0x3]
  %v349 = vld [vmem:[#allocation2 + $0x318] sm:$0xff]
  %v350 = vld [vmem:[#allocation2 + $0x320] sm:$0xff]
  %v351 = vld [vmem:[#allocation2 + $0x328] sm:$0x3]
  %v352 = vld [vmem:[#allocation2 + $0x330] sm:$0xff]
  %v353 = vld [vmem:[#allocation2 + $0x338] sm:$0xff]
  %v354 = vld [vmem:[#allocation2 + $0x340] sm:$0x3]
  %v355 = vld [vmem:[#allocation2 + $0x348] sm:$0xff]
  %v356 = vld [vmem:[#allocation2 + $0x350] sm:$0xff]
  %v357 = vld [vmem:[#allocation2 + $0x358] sm:$0x3]
  %358 = vst.msk [vmem:[#allocation3] sm:$0xff] %vm11, %v250
  %359 = vst.msk [vmem:[#allocation3 + $0x8] sm:$0xff] %vm11, %v251
  %360 = vst.msk [vmem:[#allocation3 + $0x10] sm:$0xff] %vm11, %v253
  %361 = vst.msk [vmem:[#allocation3 + $0x18] sm:$0xff] %vm11, %v254
  %362 = vst.msk [vmem:[#allocation3 + $0x20] sm:$0xff] %vm11, %v256
  %363 = vst.msk [vmem:[#allocation3 + $0x28] sm:$0xff] %vm11, %v257
  %364 = vst.msk [vmem:[#allocation3 + $0x30] sm:$0xff] %vm11, %v259
  %365 = vst.msk [vmem:[#allocation3 + $0x38] sm:$0xff] %vm11, %v260
  %366 = vst.msk [vmem:[#allocation3 + $0x40] sm:$0xff] %vm11, %v262
  %367 = vst.msk [vmem:[#allocation3 + $0x48] sm:$0xff] %vm11, %v263
  %368 = vst.msk [vmem:[#allocation3 + $0x50] sm:$0xff] %vm11, %v265
  %369 = vst.msk [vmem:[#allocation3 + $0x58] sm:$0xff] %vm11, %v266
  %370 = vst.msk [vmem:[#allocation3 + $0x60] sm:$0xff] %vm11, %v268
  %371 = vst.msk [vmem:[#allocation3 + $0x68] sm:$0xff] %vm11, %v269
  %372 = vst.msk [vmem:[#allocation3 + $0x70] sm:$0xff] %vm11, %v271
  %373 = vst.msk [vmem:[#allocation3 + $0x78] sm:$0xff] %vm11, %v272
  %374 = vst.msk [vmem:[#allocation3 + $0x80] sm:$0xff] %vm11, %v274
  %375 = vst.msk [vmem:[#allocation3 + $0x88] sm:$0xff] %vm11, %v275
  %376 = vst.msk [vmem:[#allocation3 + $0x90] sm:$0xff] %vm11, %v277
  %377 = vst.msk [vmem:[#allocation3 + $0x98] sm:$0xff] %vm11, %v278
  %378 = vst.msk [vmem:[#allocation3 + $0xa0] sm:$0xff] %vm11, %v280
  %379 = vst.msk [vmem:[#allocation3 + $0xa8] sm:$0xff] %vm11, %v281
  %380 = vst.msk [vmem:[#allocation3 + $0xb0] sm:$0xff] %vm11, %v283
  %381 = vst.msk [vmem:[#allocation3 + $0xb8] sm:$0xff] %vm11, %v284
  %382 = vst.msk [vmem:[#allocation3 + $0xc0] sm:$0xff] %vm11, %v286
  %383 = vst.msk [vmem:[#allocation3 + $0xc8] sm:$0xff] %vm11, %v287
  %384 = vst.msk [vmem:[#allocation3 + $0xd0] sm:$0xff] %vm11, %v289
  %385 = vst.msk [vmem:[#allocation3 + $0xd8] sm:$0xff] %vm11, %v290
  %386 = vst.msk [vmem:[#allocation3 + $0xe0] sm:$0xff] %vm11, %v292
  %387 = vst.msk [vmem:[#allocation3 + $0xe8] sm:$0xff] %vm11, %v293
  %388 = vst.msk [vmem:[#allocation3 + $0xf0] sm:$0xff] %vm11, %v295
  %389 = vst.msk [vmem:[#allocation3 + $0xf8] sm:$0xff] %vm11, %v296
  %390 = vst.msk [vmem:[#allocation3 + $0x100] sm:$0xff] %vm11, %v304
  %391 = vst.msk [vmem:[#allocation3 + $0x108] sm:$0xff] %vm11, %v305
  %392 = vst.msk [vmem:[#allocation3 + $0x110] sm:$0xff] %vm11, %v307
  %393 = vst.msk [vmem:[#allocation3 + $0x118] sm:$0xff] %vm11, %v308
  %394 = vst.msk [vmem:[#allocation3 + $0x120] sm:$0xff] %vm11, %v310
  %395 = vst.msk [vmem:[#allocation3 + $0x128] sm:$0xff] %vm11, %v311
  %396 = vst.msk [vmem:[#allocation3 + $0x130] sm:$0xff] %vm11, %v313
  %397 = vst.msk [vmem:[#allocation3 + $0x138] sm:$0xff] %vm11, %v314
  %398 = vst.msk [vmem:[#allocation3 + $0x140] sm:$0xff] %vm11, %v316
  %399 = vst.msk [vmem:[#allocation3 + $0x148] sm:$0xff] %vm11, %v317
  %400 = vst.msk [vmem:[#allocation3 + $0x150] sm:$0xff] %vm11, %v319
  %401 = vst.msk [vmem:[#allocation3 + $0x158] sm:$0xff] %vm11, %v320
  %402 = vst.msk [vmem:[#allocation3 + $0x160] sm:$0xff] %vm11, %v322
  %403 = vst.msk [vmem:[#allocation3 + $0x168] sm:$0xff] %vm11, %v323
  %404 = vst.msk [vmem:[#allocation3 + $0x170] sm:$0xff] %vm11, %v325
  %405 = vst.msk [vmem:[#allocation3 + $0x178] sm:$0xff] %vm11, %v326
  %406 = vst.msk [vmem:[#allocation3 + $0x180] sm:$0xff] %vm11, %v328
  %407 = vst.msk [vmem:[#allocation3 + $0x188] sm:$0xff] %vm11, %v329
  %408 = vst.msk [vmem:[#allocation3 + $0x190] sm:$0xff] %vm11, %v331
  %409 = vst.msk [vmem:[#allocation3 + $0x198] sm:$0xff] %vm11, %v332
  %410 = vst.msk [vmem:[#allocation3 + $0x1a0] sm:$0xff] %vm11, %v334
  %411 = vst.msk [vmem:[#allocation3 + $0x1a8] sm:$0xff] %vm11, %v335
  %412 = vst.msk [vmem:[#allocation3 + $0x1b0] sm:$0xff] %vm11, %v337
  %413 = vst.msk [vmem:[#allocation3 + $0x1b8] sm:$0xff] %vm11, %v338
  %414 = vst.msk [vmem:[#allocation3 + $0x1c0] sm:$0xff] %vm11, %v340
  %415 = vst.msk [vmem:[#allocation3 + $0x1c8] sm:$0xff] %vm11, %v341
  %416 = vst.msk [vmem:[#allocation3 + $0x1d0] sm:$0xff] %vm11, %v343
  %417 = vst.msk [vmem:[#allocation3 + $0x1d8] sm:$0xff] %vm11, %v344
  %418 = vst.msk [vmem:[#allocation3 + $0x1e0] sm:$0xff] %vm11, %v346
  %419 = vst.msk [vmem:[#allocation3 + $0x1e8] sm:$0xff] %vm11, %v347
  %420 = vst.msk [vmem:[#allocation3 + $0x1f0] sm:$0xff] %vm11, %v349
  %421 = vst.msk [vmem:[#allocation3 + $0x1f8] sm:$0xff] %vm11, %v350
  %vm518 = vcmask 1046528
  %v519 = vrot.slane %v250, 1
  %v520 = vrot.slane %v251, 1
  %v521 = vsel %vm518, %v519, %v520
  %v522 = vrot.slane %v252, 1
  %v523 = vsel %vm518, %v520, %v522
  %v524 = vrot.slane %v253, 1
  %v525 = vrot.slane %v254, 1
  %v526 = vsel %vm518, %v524, %v525
  %v527 = vrot.slane %v255, 1
  %v528 = vsel %vm518, %v525, %v527
  %v529 = vrot.slane %v256, 1
  %v530 = vrot.slane %v257, 1
  %v531 = vsel %vm518, %v529, %v530
  %v532 = vrot.slane %v258, 1
  %v533 = vsel %vm518, %v530, %v532
  %v534 = vrot.slane %v259, 1
  %v535 = vrot.slane %v260, 1
  %v536 = vsel %vm518, %v534, %v535
  %v537 = vrot.slane %v261, 1
  %v538 = vsel %vm518, %v535, %v537
  %v539 = vrot.slane %v262, 1
  %v540 = vrot.slane %v263, 1
  %v541 = vsel %vm518, %v539, %v540
  %v542 = vrot.slane %v264, 1
  %v543 = vsel %vm518, %v540, %v542
  %v544 = vrot.slane %v265, 1
  %v545 = vrot.slane %v266, 1
  %v546 = vsel %vm518, %v544, %v545
  %v547 = vrot.slane %v267, 1
  %v548 = vsel %vm518, %v545, %v547
  %v549 = vrot.slane %v268, 1
  %v550 = vrot.slane %v269, 1
  %v551 = vsel %vm518, %v549, %v550
  %v552 = vrot.slane %v270, 1
  %v553 = vsel %vm518, %v550, %v552
  %v554 = vrot.slane %v271, 1
  %v555 = vrot.slane %v272, 1
  %v556 = vsel %vm518, %v554, %v555
  %v557 = vrot.slane %v273, 1
  %v558 = vsel %vm518, %v555, %v557
  %v559 = vrot.slane %v274, 1
  %v560 = vrot.slane %v275, 1
  %v561 = vsel %vm518, %v559, %v560
  %v562 = vrot.slane %v276, 1
  %v563 = vsel %vm518, %v560, %v562
  %v564 = vrot.slane %v277, 1
  %v565 = vrot.slane %v278, 1
  %v566 = vsel %vm518, %v564, %v565
  %v567 = vrot.slane %v279, 1
  %v568 = vsel %vm518, %v565, %v567
  %v569 = vrot.slane %v280, 1
  %v570 = vrot.slane %v281, 1
  %v571 = vsel %vm518, %v569, %v570
  %v572 = vrot.slane %v282, 1
  %v573 = vsel %vm518, %v570, %v572
  %v574 = vrot.slane %v283, 1
  %v575 = vrot.slane %v284, 1
  %v576 = vsel %vm518, %v574, %v575
  %v577 = vrot.slane %v285, 1
  %v578 = vsel %vm518, %v575, %v577
  %v579 = vrot.slane %v286, 1
  %v580 = vrot.slane %v287, 1
  %v581 = vsel %vm518, %v579, %v580
  %v582 = vrot.slane %v288, 1
  %v583 = vsel %vm518, %v580, %v582
  %v584 = vrot.slane %v289, 1
  %v585 = vrot.slane %v290, 1
  %v586 = vsel %vm518, %v584, %v585
  %v587 = vrot.slane %v291, 1
  %v588 = vsel %vm518, %v585, %v587
  %v589 = vrot.slane %v292, 1
  %v590 = vrot.slane %v293, 1
  %v591 = vsel %vm518, %v589, %v590
  %v592 = vrot.slane %v294, 1
  %v593 = vsel %vm518, %v590, %v592
  %v594 = vrot.slane %v295, 1
  %v595 = vrot.slane %v296, 1
  %v596 = vsel %vm518, %v594, %v595
  %v597 = vrot.slane %v297, 1
  %v598 = vsel %vm518, %v595, %v597
  %v599 = vrot.slane %v304, 1
  %v600 = vrot.slane %v305, 1
  %v601 = vsel %vm518, %v599, %v600
  %v602 = vrot.slane %v306, 1
  %v603 = vsel %vm518, %v600, %v602
  %v604 = vrot.slane %v307, 1
  %v605 = vrot.slane %v308, 1
  %v606 = vsel %vm518, %v604, %v605
  %v607 = vrot.slane %v309, 1
  %v608 = vsel %vm518, %v605, %v607
  %v609 = vrot.slane %v310, 1
  %v610 = vrot.slane %v311, 1
  %v611 = vsel %vm518, %v609, %v610
  %v612 = vrot.slane %v312, 1
  %v613 = vsel %vm518, %v610, %v612
  %v614 = vrot.slane %v313, 1
  %v615 = vrot.slane %v314, 1
  %v616 = vsel %vm518, %v614, %v615
  %v617 = vrot.slane %v315, 1
  %v618 = vsel %vm518, %v615, %v617
  %v619 = vrot.slane %v316, 1
  %v620 = vrot.slane %v317, 1
  %v621 = vsel %vm518, %v619, %v620
  %v622 = vrot.slane %v318, 1
  %v623 = vsel %vm518, %v620, %v622
  %v624 = vrot.slane %v319, 1
  %v625 = vrot.slane %v320, 1
  %v626 = vsel %vm518, %v624, %v625
  %v627 = vrot.slane %v321, 1
  %v628 = vsel %vm518, %v625, %v627
  %v629 = vrot.slane %v322, 1
  %v630 = vrot.slane %v323, 1
  %v631 = vsel %vm518, %v629, %v630
  %v632 = vrot.slane %v324, 1
  %v633 = vsel %vm518, %v630, %v632
  %v634 = vrot.slane %v325, 1
  %v635 = vrot.slane %v326, 1
  %v636 = vsel %vm518, %v634, %v635
  %v637 = vrot.slane %v327, 1
  %v638 = vsel %vm518, %v635, %v637
  %v639 = vrot.slane %v328, 1
  %v640 = vrot.slane %v329, 1
  %v641 = vsel %vm518, %v639, %v640
  %v642 = vrot.slane %v330, 1
  %v643 = vsel %vm518, %v640, %v642
  %v644 = vrot.slane %v331, 1
  %v645 = vrot.slane %v332, 1
  %v646 = vsel %vm518, %v644, %v645
  %v647 = vrot.slane %v333, 1
  %v648 = vsel %vm518, %v645, %v647
  %v649 = vrot.slane %v334, 1
  %v650 = vrot.slane %v335, 1
  %v651 = vsel %vm518, %v649, %v650
  %v652 = vrot.slane %v336, 1
  %v653 = vsel %vm518, %v650, %v652
  %v654 = vrot.slane %v337, 1
  %v655 = vrot.slane %v338, 1
  %v656 = vsel %vm518, %v654, %v655
  %v657 = vrot.slane %v339, 1
  %v658 = vsel %vm518, %v655, %v657
  %v659 = vrot.slane %v340, 1
  %v660 = vrot.slane %v341, 1
  %v661 = vsel %vm518, %v659, %v660
  %v662 = vrot.slane %v342, 1
  %v663 = vsel %vm518, %v660, %v662
  %v664 = vrot.slane %v343, 1
  %v665 = vrot.slane %v344, 1
  %v666 = vsel %vm518, %v664, %v665
  %v667 = vrot.slane %v345, 1
  %v668 = vsel %vm518, %v665, %v667
  %v669 = vrot.slane %v346, 1
  %v670 = vrot.slane %v347, 1
  %v671 = vsel %vm518, %v669, %v670
  %v672 = vrot.slane %v348, 1
  %v673 = vsel %vm518, %v670, %v672
  %v674 = vrot.slane %v349, 1
  %v675 = vrot.slane %v350, 1
  %v676 = vsel %vm518, %v674, %v675
  %v677 = vrot.slane %v351, 1
  %v678 = vsel %vm518, %v675, %v677
  %679 = vrot.lane.b32.xlu0 %v521, 4
  %v680 = vpop.permute.xlu0 %679
  %681 = vrot.lane.b32.xlu0 %v523, 4
  %v682 = vpop.permute.xlu0 %681
  %683 = vrot.lane.b32.xlu0 %v526, 4
  %v684 = vpop.permute.xlu0 %683
  %685 = vrot.lane.b32.xlu0 %v528, 4
  %v686 = vpop.permute.xlu0 %685
  %687 = vrot.lane.b32.xlu0 %v531, 4
  %v688 = vpop.permute.xlu0 %687
  %689 = vrot.lane.b32.xlu0 %v533, 4
  %v690 = vpop.permute.xlu0 %689
  %691 = vrot.lane.b32.xlu0 %v536, 4
  %v692 = vpop.permute.xlu0 %691
  %693 = vrot.lane.b32.xlu0 %v538, 4
  %v694 = vpop.permute.xlu0 %693
  %695 = vrot.lane.b32.xlu0 %v541, 4
  %v696 = vpop.permute.xlu0 %695
  %697 = vrot.lane.b32.xlu0 %v543, 4
  %v698 = vpop.permute.xlu0 %697
  %699 = vrot.lane.b32.xlu0 %v546, 4
  %v700 = vpop.permute.xlu0 %699
  %701 = vrot.lane.b32.xlu0 %v548, 4
  %v702 = vpop.permute.xlu0 %701
  %703 = vrot.lane.b32.xlu0 %v551, 4
  %v704 = vpop.permute.xlu0 %703
  %705 = vrot.lane.b32.xlu0 %v553, 4
  %v706 = vpop.permute.xlu0 %705
  %707 = vrot.lane.b32.xlu0 %v556, 4
  %v708 = vpop.permute.xlu0 %707
  %709 = vrot.lane.b32.xlu0 %v558, 4
  %v710 = vpop.permute.xlu0 %709
  %711 = vrot.lane.b32.xlu0 %v561, 4
  %v712 = vpop.permute.xlu0 %711
  %713 = vrot.lane.b32.xlu0 %v563, 4
  %v714 = vpop.permute.xlu0 %713
  %715 = vrot.lane.b32.xlu0 %v566, 4
  %v716 = vpop.permute.xlu0 %715
  %717 = vrot.lane.b32.xlu0 %v568, 4
  %v718 = vpop.permute.xlu0 %717
  %719 = vrot.lane.b32.xlu0 %v571, 4
  %v720 = vpop.permute.xlu0 %719
  %721 = vrot.lane.b32.xlu0 %v573, 4
  %v722 = vpop.permute.xlu0 %721
  %723 = vrot.lane.b32.xlu0 %v576, 4
  %v724 = vpop.permute.xlu0 %723
  %725 = vrot.lane.b32.xlu0 %v578, 4
  %v726 = vpop.permute.xlu0 %725
  %727 = vrot.lane.b32.xlu0 %v581, 4
  %v728 = vpop.permute.xlu0 %727
  %729 = vrot.lane.b32.xlu0 %v583, 4
  %v730 = vpop.permute.xlu0 %729
  %731 = vrot.lane.b32.xlu0 %v586, 4
  %v732 = vpop.permute.xlu0 %731
  %733 = vrot.lane.b32.xlu0 %v588, 4
  %v734 = vpop.permute.xlu0 %733
  %735 = vrot.lane.b32.xlu0 %v591, 4
  %v736 = vpop.permute.xlu0 %735
  %737 = vrot.lane.b32.xlu0 %v593, 4
  %v738 = vpop.permute.xlu0 %737
  %739 = vrot.lane.b32.xlu0 %v596, 4
  %v740 = vpop.permute.xlu0 %739
  %741 = vrot.lane.b32.xlu0 %v598, 4
  %v742 = vpop.permute.xlu0 %741
  %743 = vrot.lane.b32.xlu0 %v601, 4
  %v744 = vpop.permute.xlu0 %743
  %745 = vrot.lane.b32.xlu0 %v603, 4
  %v746 = vpop.permute.xlu0 %745
  %747 = vrot.lane.b32.xlu0 %v606, 4
  %v748 = vpop.permute.xlu0 %747
  %749 = vrot.lane.b32.xlu0 %v608, 4
  %v750 = vpop.permute.xlu0 %749
  %751 = vrot.lane.b32.xlu0 %v611, 4
  %v752 = vpop.permute.xlu0 %751
  %753 = vrot.lane.b32.xlu0 %v613, 4
  %v754 = vpop.permute.xlu0 %753
  %755 = vrot.lane.b32.xlu0 %v616, 4
  %v756 = vpop.permute.xlu0 %755
  %757 = vrot.lane.b32.xlu0 %v618, 4
  %v758 = vpop.permute.xlu0 %757
  %759 = vrot.lane.b32.xlu0 %v621, 4
  %v760 = vpop.permute.xlu0 %759
  %761 = vrot.lane.b32.xlu0 %v623, 4
  %v762 = vpop.permute.xlu0 %761
  %763 = vrot.lane.b32.xlu0 %v626, 4
  %v764 = vpop.permute.xlu0 %763
  %765 = vrot.lane.b32.xlu0 %v628, 4
  %v766 = vpop.permute.xlu0 %765
  %767 = vrot.lane.b32.xlu0 %v631, 4
  %v768 = vpop.permute.xlu0 %767
  %769 = vrot.lane.b32.xlu0 %v633, 4
  %v770 = vpop.permute.xlu0 %769
  %771 = vrot.lane.b32.xlu0 %v636, 4
  %v772 = vpop.permute.xlu0 %771
  %773 = vrot.lane.b32.xlu0 %v638, 4
  %v774 = vpop.permute.xlu0 %773
  %775 = vrot.lane.b32.xlu0 %v641, 4
  %v776 = vpop.permute.xlu0 %775
  %777 = vrot.lane.b32.xlu0 %v643, 4
  %v778 = vpop.permute.xlu0 %777
  %779 = vrot.lane.b32.xlu0 %v646, 4
  %v780 = vpop.permute.xlu0 %779
  %781 = vrot.lane.b32.xlu0 %v648, 4
  %v782 = vpop.permute.xlu0 %781
  %783 = vrot.lane.b32.xlu0 %v651, 4
  %v784 = vpop.permute.xlu0 %783
  %785 = vrot.lane.b32.xlu0 %v653, 4
  %v786 = vpop.permute.xlu0 %785
  %787 = vrot.lane.b32.xlu0 %v656, 4
  %v788 = vpop.permute.xlu0 %787
  %789 = vrot.lane.b32.xlu0 %v658, 4
  %v790 = vpop.permute.xlu0 %789
  %791 = vrot.lane.b32.xlu0 %v661, 4
  %v792 = vpop.permute.xlu0 %791
  %793 = vrot.lane.b32.xlu0 %v663, 4
  %v794 = vpop.permute.xlu0 %793
  %795 = vrot.lane.b32.xlu0 %v666, 4
  %v796 = vpop.permute.xlu0 %795
  %797 = vrot.lane.b32.xlu0 %v668, 4
  %v798 = vpop.permute.xlu0 %797
  %799 = vrot.lane.b32.xlu0 %v671, 4
  %v800 = vpop.permute.xlu0 %799
  %801 = vrot.lane.b32.xlu0 %v673, 4
  %v802 = vpop.permute.xlu0 %801
  %803 = vrot.lane.b32.xlu0 %v676, 4
  %v804 = vpop.permute.xlu0 %803
  %805 = vrot.lane.b32.xlu0 %v678, 4
  %v806 = vpop.permute.xlu0 %805
  %vm871 = vcmask 64544
  %872 = vst.msk [vmem:[#allocation3] sm:$0xff] %vm871, %v680
  %873 = vst.msk [vmem:[#allocation3 + $0x8] sm:$0xff] %vm871, %v682
  %874 = vst.msk [vmem:[#allocation3 + $0x10] sm:$0xff] %vm871, %v684
  %875 = vst.msk [vmem:[#allocation3 + $0x18] sm:$0xff] %vm871, %v686
  %876 = vst.msk [vmem:[#allocation3 + $0x20] sm:$0xff] %vm871, %v688
  %877 = vst.msk [vmem:[#allocation3 + $0x28] sm:$0xff] %vm871, %v690
  %878 = vst.msk [vmem:[#allocation3 + $0x30] sm:$0xff] %vm871, %v692
  %879 = vst.msk [vmem:[#allocation3 + $0x38] sm:$0xff] %vm871, %v694
  %880 = vst.msk [vmem:[#allocation3 + $0x40] sm:$0xff] %vm871, %v696
  %881 = vst.msk [vmem:[#allocation3 + $0x48] sm:$0xff] %vm871, %v698
  %882 = vst.msk [vmem:[#allocation3 + $0x50] sm:$0xff] %vm871, %v700
  %883 = vst.msk [vmem:[#allocation3 + $0x58] sm:$0xff] %vm871, %v702
  %884 = vst.msk [vmem:[#allocation3 + $0x60] sm:$0xff] %vm871, %v704
  %885 = vst.msk [vmem:[#allocation3 + $0x68] sm:$0xff] %vm871, %v706
  %886 = vst.msk [vmem:[#allocation3 + $0x70] sm:$0xff] %vm871, %v708
  %887 = vst.msk [vmem:[#allocation3 + $0x78] sm:$0xff] %vm871, %v710
  %888 = vst.msk [vmem:[#allocation3 + $0x80] sm:$0xff] %vm871, %v712
  %889 = vst.msk [vmem:[#allocation3 + $0x88] sm:$0xff] %vm871, %v714
  %890 = vst.msk [vmem:[#allocation3 + $0x90] sm:$0xff] %vm871, %v716
  %891 = vst.msk [vmem:[#allocation3 + $0x98] sm:$0xff] %vm871, %v718
  %892 = vst.msk [vmem:[#allocation3 + $0xa0] sm:$0xff] %vm871, %v720
  %893 = vst.msk [vmem:[#allocation3 + $0xa8] sm:$0xff] %vm871, %v722
  %894 = vst.msk [vmem:[#allocation3 + $0xb0] sm:$0xff] %vm871, %v724
  %895 = vst.msk [vmem:[#allocation3 + $0xb8] sm:$0xff] %vm871, %v726
  %896 = vst.msk [vmem:[#allocation3 + $0xc0] sm:$0xff] %vm871, %v728
  %897 = vst.msk [vmem:[#allocation3 + $0xc8] sm:$0xff] %vm871, %v730
  %898 = vst.msk [vmem:[#allocation3 + $0xd0] sm:$0xff] %vm871, %v732
  %899 = vst.msk [vmem:[#allocation3 + $0xd8] sm:$0xff] %vm871, %v734
  %900 = vst.msk [vmem:[#allocation3 + $0xe0] sm:$0xff] %vm871, %v736
  %901 = vst.msk [vmem:[#allocation3 + $0xe8] sm:$0xff] %vm871, %v738
  %902 = vst.msk [vmem:[#allocation3 + $0xf0] sm:$0xff] %vm871, %v740
  %903 = vst.msk [vmem:[#allocation3 + $0xf8] sm:$0xff] %vm871, %v742
  %904 = vst.msk [vmem:[#allocation3 + $0x100] sm:$0xff] %vm871, %v744
  %905 = vst.msk [vmem:[#allocation3 + $0x108] sm:$0xff] %vm871, %v746
  %906 = vst.msk [vmem:[#allocation3 + $0x110] sm:$0xff] %vm871, %v748
  %907 = vst.msk [vmem:[#allocation3 + $0x118] sm:$0xff] %vm871, %v750
  %908 = vst.msk [vmem:[#allocation3 + $0x120] sm:$0xff] %vm871, %v752
  %909 = vst.msk [vmem:[#allocation3 + $0x128] sm:$0xff] %vm871, %v754
  %910 = vst.msk [vmem:[#allocation3 + $0x130] sm:$0xff] %vm871, %v756
  %911 = vst.msk [vmem:[#allocation3 + $0x138] sm:$0xff] %vm871, %v758
  %912 = vst.msk [vmem:[#allocation3 + $0x140] sm:$0xff] %vm871, %v760
  %913 = vst.msk [vmem:[#allocation3 + $0x148] sm:$0xff] %vm871, %v762
  %914 = vst.msk [vmem:[#allocation3 + $0x150] sm:$0xff] %vm871, %v764
  %915 = vst.msk [vmem:[#allocation3 + $0x158] sm:$0xff] %vm871, %v766
  %916 = vst.msk [vmem:[#allocation3 + $0x160] sm:$0xff] %vm871, %v768
  %917 = vst.msk [vmem:[#allocation3 + $0x168] sm:$0xff] %vm871, %v770
  %918 = vst.msk [vmem:[#allocation3 + $0x170] sm:$0xff] %vm871, %v772
  %919 = vst.msk [vmem:[#allocation3 + $0x178] sm:$0xff] %vm871, %v774
  %920 = vst.msk [vmem:[#allocation3 + $0x180] sm:$0xff] %vm871, %v776
  %921 = vst.msk [vmem:[#allocation3 + $0x188] sm:$0xff] %vm871, %v778
  %922 = vst.msk [vmem:[#allocation3 + $0x190] sm:$0xff] %vm871, %v780
  %923 = vst.msk [vmem:[#allocation3 + $0x198] sm:$0xff] %vm871, %v782
  %924 = vst.msk [vmem:[#allocation3 + $0x1a0] sm:$0xff] %vm871, %v784
  %925 = vst.msk [vmem:[#allocation3 + $0x1a8] sm:$0xff] %vm871, %v786
  %926 = vst.msk [vmem:[#allocation3 + $0x1b0] sm:$0xff] %vm871, %v788
  %927 = vst.msk [vmem:[#allocation3 + $0x1b8] sm:$0xff] %vm871, %v790
  %928 = vst.msk [vmem:[#allocation3 + $0x1c0] sm:$0xff] %vm871, %v792
  %929 = vst.msk [vmem:[#allocation3 + $0x1c8] sm:$0xff] %vm871, %v794
  %930 = vst.msk [vmem:[#allocation3 + $0x1d0] sm:$0xff] %vm871, %v796
  %931 = vst.msk [vmem:[#allocation3 + $0x1d8] sm:$0xff] %vm871, %v798
  %932 = vst.msk [vmem:[#allocation3 + $0x1e0] sm:$0xff] %vm871, %v800
  %933 = vst.msk [vmem:[#allocation3 + $0x1e8] sm:$0xff] %vm871, %v802
  %934 = vst.msk [vmem:[#allocation3 + $0x1f0] sm:$0xff] %vm871, %v804
  %935 = vst.msk [vmem:[#allocation3 + $0x1f8] sm:$0xff] %vm871, %v806
  %vm936 = vcmask 1045504
  %v937 = vrot.slane %v250, 2
  %v938 = vrot.slane %v251, 2
  %v939 = vsel %vm936, %v937, %v938
  %v940 = vrot.slane %v252, 2
  %v941 = vsel %vm936, %v938, %v940
  %v942 = vrot.slane %v253, 2
  %v943 = vrot.slane %v254, 2
  %v944 = vsel %vm936, %v942, %v943
  %v945 = vrot.slane %v255, 2
  %v946 = vsel %vm936, %v943, %v945
  %v947 = vrot.slane %v256, 2
  %v948 = vrot.slane %v257, 2
  %v949 = vsel %vm936, %v947, %v948
  %v950 = vrot.slane %v258, 2
  %v951 = vsel %vm936, %v948, %v950
  %v952 = vrot.slane %v259, 2
  %v953 = vrot.slane %v260, 2
  %v954 = vsel %vm936, %v952, %v953
  %v955 = vrot.slane %v261, 2
  %v956 = vsel %vm936, %v953, %v955
  %v957 = vrot.slane %v262, 2
  %v958 = vrot.slane %v263, 2
  %v959 = vsel %vm936, %v957, %v958
  %v960 = vrot.slane %v264, 2
  %v961 = vsel %vm936, %v958, %v960
  %v962 = vrot.slane %v265, 2
  %v963 = vrot.slane %v266, 2
  %v964 = vsel %vm936, %v962, %v963
  %v965 = vrot.slane %v267, 2
  %v966 = vsel %vm936, %v963, %v965
  %v967 = vrot.slane %v268, 2
  %v968 = vrot.slane %v269, 2
  %v969 = vsel %vm936, %v967, %v968
  %v970 = vrot.slane %v270, 2
  %v971 = vsel %vm936, %v968, %v970
  %v972 = vrot.slane %v271, 2
  %v973 = vrot.slane %v272, 2
  %v974 = vsel %vm936, %v972, %v973
  %v975 = vrot.slane %v273, 2
  %v976 = vsel %vm936, %v973, %v975
  %v977 = vrot.slane %v274, 2
  %v978 = vrot.slane %v275, 2
  %v979 = vsel %vm936, %v977, %v978
  %v980 = vrot.slane %v276, 2
  %v981 = vsel %vm936, %v978, %v980
  %v982 = vrot.slane %v277, 2
  %v983 = vrot.slane %v278, 2
  %v984 = vsel %vm936, %v982, %v983
  %v985 = vrot.slane %v279, 2
  %v986 = vsel %vm936, %v983, %v985
  %v987 = vrot.slane %v280, 2
  %v988 = vrot.slane %v281, 2
  %v989 = vsel %vm936, %v987, %v988
  %v990 = vrot.slane %v282, 2
  %v991 = vsel %vm936, %v988, %v990
  %v992 = vrot.slane %v283, 2
  %v993 = vrot.slane %v284, 2
  %v994 = vsel %vm936, %v992, %v993
  %v995 = vrot.slane %v285, 2
  %v996 = vsel %vm936, %v993, %v995
  %v997 = vrot.slane %v286, 2
  %v998 = vrot.slane %v287, 2
  %v999 = vsel %vm936, %v997, %v998
  %v1000 = vrot.slane %v288, 2
  %v1001 = vsel %vm936, %v998, %v1000
  %v1002 = vrot.slane %v289, 2
  %v1003 = vrot.slane %v290, 2
  %v1004 = vsel %vm936, %v1002, %v1003
  %v1005 = vrot.slane %v291, 2
  %v1006 = vsel %vm936, %v1003, %v1005
  %v1007 = vrot.slane %v292, 2
  %v1008 = vrot.slane %v293, 2
  %v1009 = vsel %vm936, %v1007, %v1008
  %v1010 = vrot.slane %v294, 2
  %v1011 = vsel %vm936, %v1008, %v1010
  %v1012 = vrot.slane %v295, 2
  %v1013 = vrot.slane %v296, 2
  %v1014 = vsel %vm936, %v1012, %v1013
  %v1015 = vrot.slane %v297, 2
  %v1016 = vsel %vm936, %v1013, %v1015
  %v1017 = vrot.slane %v304, 2
  %v1018 = vrot.slane %v305, 2
  %v1019 = vsel %vm936, %v1017, %v1018
  %v1020 = vrot.slane %v306, 2
  %v1021 = vsel %vm936, %v1018, %v1020
  %v1022 = vrot.slane %v307, 2
  %v1023 = vrot.slane %v308, 2
  %v1024 = vsel %vm936, %v1022, %v1023
  %v1025 = vrot.slane %v309, 2
  %v1026 = vsel %vm936, %v1023, %v1025
  %v1027 = vrot.slane %v310, 2
  %v1028 = vrot.slane %v311, 2
  %v1029 = vsel %vm936, %v1027, %v1028
  %v1030 = vrot.slane %v312, 2
  %v1031 = vsel %vm936, %v1028, %v1030
  %v1032 = vrot.slane %v313, 2
  %v1033 = vrot.slane %v314, 2
  %v1034 = vsel %vm936, %v1032, %v1033
  %v1035 = vrot.slane %v315, 2
  %v1036 = vsel %vm936, %v1033, %v1035
  %v1037 = vrot.slane %v316, 2
  %v1038 = vrot.slane %v317, 2
  %v1039 = vsel %vm936, %v1037, %v1038
  %v1040 = vrot.slane %v318, 2
  %v1041 = vsel %vm936, %v1038, %v1040
  %v1042 = vrot.slane %v319, 2
  %v1043 = vrot.slane %v320, 2
  %v1044 = vsel %vm936, %v1042, %v1043
  %v1045 = vrot.slane %v321, 2
  %v1046 = vsel %vm936, %v1043, %v1045
  %v1047 = vrot.slane %v322, 2
  %v1048 = vrot.slane %v323, 2
  %v1049 = vsel %vm936, %v1047, %v1048
  %v1050 = vrot.slane %v324, 2
  %v1051 = vsel %vm936, %v1048, %v1050
  %v1052 = vrot.slane %v325, 2
  %v1053 = vrot.slane %v326, 2
  %v1054 = vsel %vm936, %v1052, %v1053
  %v1055 = vrot.slane %v327, 2
  %v1056 = vsel %vm936, %v1053, %v1055
  %v1057 = vrot.slane %v328, 2
  %v1058 = vrot.slane %v329, 2
  %v1059 = vsel %vm936, %v1057, %v1058
  %v1060 = vrot.slane %v330, 2
  %v1061 = vsel %vm936, %v1058, %v1060
  %v1062 = vrot.slane %v331, 2
  %v1063 = vrot.slane %v332, 2
  %v1064 = vsel %vm936, %v1062, %v1063
  %v1065 = vrot.slane %v333, 2
  %v1066 = vsel %vm936, %v1063, %v1065
  %v1067 = vrot.slane %v334, 2
  %v1068 = vrot.slane %v335, 2
  %v1069 = vsel %vm936, %v1067, %v1068
  %v1070 = vrot.slane %v336, 2
  %v1071 = vsel %vm936, %v1068, %v1070
  %v1072 = vrot.slane %v337, 2
  %v1073 = vrot.slane %v338, 2
  %v1074 = vsel %vm936, %v1072, %v1073
  %v1075 = vrot.slane %v339, 2
  %v1076 = vsel %vm936, %v1073, %v1075
  %v1077 = vrot.slane %v340, 2
  %v1078 = vrot.slane %v341, 2
  %v1079 = vsel %vm936, %v1077, %v1078
  %v1080 = vrot.slane %v342, 2
  %v1081 = vsel %vm936, %v1078, %v1080
  %v1082 = vrot.slane %v343, 2
  %v1083 = vrot.slane %v344, 2
  %v1084 = vsel %vm936, %v1082, %v1083
  %v1085 = vrot.slane %v345, 2
  %v1086 = vsel %vm936, %v1083, %v1085
  %v1087 = vrot.slane %v346, 2
  %v1088 = vrot.slane %v347, 2
  %v1089 = vsel %vm936, %v1087, %v1088
  %v1090 = vrot.slane %v348, 2
  %v1091 = vsel %vm936, %v1088, %v1090
  %v1092 = vrot.slane %v349, 2
  %v1093 = vrot.slane %v350, 2
  %v1094 = vsel %vm936, %v1092, %v1093
  %v1095 = vrot.slane %v351, 2
  %v1096 = vsel %vm936, %v1093, %v1095
  %1097 = vrot.lane.b32.xlu0 %v939, 8
  %v1098 = vpop.permute.xlu0 %1097
  %1099 = vrot.lane.b32.xlu0 %v941, 8
  %v1100 = vpop.permute.xlu0 %1099
  %1101 = vrot.lane.b32.xlu0 %v944, 8
  %v1102 = vpop.permute.xlu0 %1101
  %1103 = vrot.lane.b32.xlu0 %v946, 8
  %v1104 = vpop.permute.xlu0 %1103
  %1105 = vrot.lane.b32.xlu0 %v949, 8
  %v1106 = vpop.permute.xlu0 %1105
  %1107 = vrot.lane.b32.xlu0 %v951, 8
  %v1108 = vpop.permute.xlu0 %1107
  %1109 = vrot.lane.b32.xlu0 %v954, 8
  %v1110 = vpop.permute.xlu0 %1109
  %1111 = vrot.lane.b32.xlu0 %v956, 8
  %v1112 = vpop.permute.xlu0 %1111
  %1113 = vrot.lane.b32.xlu0 %v959, 8
  %v1114 = vpop.permute.xlu0 %1113
  %1115 = vrot.lane.b32.xlu0 %v961, 8
  %v1116 = vpop.permute.xlu0 %1115
  %1117 = vrot.lane.b32.xlu0 %v964, 8
  %v1118 = vpop.permute.xlu0 %1117
  %1119 = vrot.lane.b32.xlu0 %v966, 8
  %v1120 = vpop.permute.xlu0 %1119
  %1121 = vrot.lane.b32.xlu0 %v969, 8
  %v1122 = vpop.permute.xlu0 %1121
  %1123 = vrot.lane.b32.xlu0 %v971, 8
  %v1124 = vpop.permute.xlu0 %1123
  %1125 = vrot.lane.b32.xlu0 %v974, 8
  %v1126 = vpop.permute.xlu0 %1125
  %1127 = vrot.lane.b32.xlu0 %v976, 8
  %v1128 = vpop.permute.xlu0 %1127
  %1129 = vrot.lane.b32.xlu0 %v979, 8
  %v1130 = vpop.permute.xlu0 %1129
  %1131 = vrot.lane.b32.xlu0 %v981, 8
  %v1132 = vpop.permute.xlu0 %1131
  %1133 = vrot.lane.b32.xlu0 %v984, 8
  %v1134 = vpop.permute.xlu0 %1133
  %1135 = vrot.lane.b32.xlu0 %v986, 8
  %v1136 = vpop.permute.xlu0 %1135
  %1137 = vrot.lane.b32.xlu0 %v989, 8
  %v1138 = vpop.permute.xlu0 %1137
  %1139 = vrot.lane.b32.xlu0 %v991, 8
  %v1140 = vpop.permute.xlu0 %1139
  %1141 = vrot.lane.b32.xlu0 %v994, 8
  %v1142 = vpop.permute.xlu0 %1141
  %1143 = vrot.lane.b32.xlu0 %v996, 8
  %v1144 = vpop.permute.xlu0 %1143
  %1145 = vrot.lane.b32.xlu0 %v999, 8
  %v1146 = vpop.permute.xlu0 %1145
  %1147 = vrot.lane.b32.xlu0 %v1001, 8
  %v1148 = vpop.permute.xlu0 %1147
  %1149 = vrot.lane.b32.xlu0 %v1004, 8
  %v1150 = vpop.permute.xlu0 %1149
  %1151 = vrot.lane.b32.xlu0 %v1006, 8
  %v1152 = vpop.permute.xlu0 %1151
  %1153 = vrot.lane.b32.xlu0 %v1009, 8
  %v1154 = vpop.permute.xlu0 %1153
  %1155 = vrot.lane.b32.xlu0 %v1011, 8
  %v1156 = vpop.permute.xlu0 %1155
  %1157 = vrot.lane.b32.xlu0 %v1014, 8
  %v1158 = vpop.permute.xlu0 %1157
  %1159 = vrot.lane.b32.xlu0 %v1016, 8
  %v1160 = vpop.permute.xlu0 %1159
  %1161 = vrot.lane.b32.xlu0 %v1019, 8
  %v1162 = vpop.permute.xlu0 %1161
  %1163 = vrot.lane.b32.xlu0 %v1021, 8
  %v1164 = vpop.permute.xlu0 %1163
  %1165 = vrot.lane.b32.xlu0 %v1024, 8
  %v1166 = vpop.permute.xlu0 %1165
  %1167 = vrot.lane.b32.xlu0 %v1026, 8
  %v1168 = vpop.permute.xlu0 %1167
  %1169 = vrot.lane.b32.xlu0 %v1029, 8
  %v1170 = vpop.permute.xlu0 %1169
  %1171 = vrot.lane.b32.xlu0 %v1031, 8
  %v1172 = vpop.permute.xlu0 %1171
  %1173 = vrot.lane.b32.xlu0 %v1034, 8
  %v1174 = vpop.permute.xlu0 %1173
  %1175 = vrot.lane.b32.xlu0 %v1036, 8
  %v1176 = vpop.permute.xlu0 %1175
  %1177 = vrot.lane.b32.xlu0 %v1039, 8
  %v1178 = vpop.permute.xlu0 %1177
  %1179 = vrot.lane.b32.xlu0 %v1041, 8
  %v1180 = vpop.permute.xlu0 %1179
  %1181 = vrot.lane.b32.xlu0 %v1044, 8
  %v1182 = vpop.permute.xlu0 %1181
  %1183 = vrot.lane.b32.xlu0 %v1046, 8
  %v1184 = vpop.permute.xlu0 %1183
  %1185 = vrot.lane.b32.xlu0 %v1049, 8
  %v1186 = vpop.permute.xlu0 %1185
  %1187 = vrot.lane.b32.xlu0 %v1051, 8
  %v1188 = vpop.permute.xlu0 %1187
  %1189 = vrot.lane.b32.xlu0 %v1054, 8
  %v1190 = vpop.permute.xlu0 %1189
  %1191 = vrot.lane.b32.xlu0 %v1056, 8
  %v1192 = vpop.permute.xlu0 %1191
  %1193 = vrot.lane.b32.xlu0 %v1059, 8
  %v1194 = vpop.permute.xlu0 %1193
  %1195 = vrot.lane.b32.xlu0 %v1061, 8
  %v1196 = vpop.permute.xlu0 %1195
  %1197 = vrot.lane.b32.xlu0 %v1064, 8
  %v1198 = vpop.permute.xlu0 %1197
  %1199 = vrot.lane.b32.xlu0 %v1066, 8
  %v1200 = vpop.permute.xlu0 %1199
  %1201 = vrot.lane.b32.xlu0 %v1069, 8
  %v1202 = vpop.permute.xlu0 %1201
  %1203 = vrot.lane.b32.xlu0 %v1071, 8
  %v1204 = vpop.permute.xlu0 %1203
  %1205 = vrot.lane.b32.xlu0 %v1074, 8
  %v1206 = vpop.permute.xlu0 %1205
  %1207 = vrot.lane.b32.xlu0 %v1076, 8
  %v1208 = vpop.permute.xlu0 %1207
  %1209 = vrot.lane.b32.xlu0 %v1079, 8
  %v1210 = vpop.permute.xlu0 %1209
  %1211 = vrot.lane.b32.xlu0 %v1081, 8
  %v1212 = vpop.permute.xlu0 %1211
  %1213 = vrot.lane.b32.xlu0 %v1084, 8
  %v1214 = vpop.permute.xlu0 %1213
  %1215 = vrot.lane.b32.xlu0 %v1086, 8
  %v1216 = vpop.permute.xlu0 %1215
  %1217 = vrot.lane.b32.xlu0 %v1089, 8
  %v1218 = vpop.permute.xlu0 %1217
  %1219 = vrot.lane.b32.xlu0 %v1091, 8
  %v1220 = vpop.permute.xlu0 %1219
  %1221 = vrot.lane.b32.xlu0 %v1094, 8
  %v1222 = vpop.permute.xlu0 %1221
  %1223 = vrot.lane.b32.xlu0 %v1096, 8
  %v1224 = vpop.permute.xlu0 %1223
  %vm1289 = vcmask 97344
  %1290 = vst.msk [vmem:[#allocation3] sm:$0xff] %vm1289, %v1098
  %1291 = vst.msk [vmem:[#allocation3 + $0x8] sm:$0xff] %vm1289, %v1100
  %1292 = vst.msk [vmem:[#allocation3 + $0x10] sm:$0xff] %vm1289, %v1102
  %1293 = vst.msk [vmem:[#allocation3 + $0x18] sm:$0xff] %vm1289, %v1104
  %1294 = vst.msk [vmem:[#allocation3 + $0x20] sm:$0xff] %vm1289, %v1106
  %1295 = vst.msk [vmem:[#allocation3 + $0x28] sm:$0xff] %vm1289, %v1108
  %1296 = vst.msk [vmem:[#allocation3 + $0x30] sm:$0xff] %vm1289, %v1110
  %1297 = vst.msk [vmem:[#allocation3 + $0x38] sm:$0xff] %vm1289, %v1112
  %1298 = vst.msk [vmem:[#allocation3 + $0x40] sm:$0xff] %vm1289, %v1114
  %1299 = vst.msk [vmem:[#allocation3 + $0x48] sm:$0xff] %vm1289, %v1116
  %1300 = vst.msk [vmem:[#allocation3 + $0x50] sm:$0xff] %vm1289, %v1118
  %1301 = vst.msk [vmem:[#allocation3 + $0x58] sm:$0xff] %vm1289, %v1120
  %1302 = vst.msk [vmem:[#allocation3 + $0x60] sm:$0xff] %vm1289, %v1122
  %1303 = vst.msk [vmem:[#allocation3 + $0x68] sm:$0xff] %vm1289, %v1124
  %1304 = vst.msk [vmem:[#allocation3 + $0x70] sm:$0xff] %vm1289, %v1126
  %1305 = vst.msk [vmem:[#allocation3 + $0x78] sm:$0xff] %vm1289, %v1128
  %1306 = vst.msk [vmem:[#allocation3 + $0x80] sm:$0xff] %vm1289, %v1130
  %1307 = vst.msk [vmem:[#allocation3 + $0x88] sm:$0xff] %vm1289, %v1132
  %1308 = vst.msk [vmem:[#allocation3 + $0x90] sm:$0xff] %vm1289, %v1134
  %1309 = vst.msk [vmem:[#allocation3 + $0x98] sm:$0xff] %vm1289, %v1136
  %1310 = vst.msk [vmem:[#allocation3 + $0xa0] sm:$0xff] %vm1289, %v1138
  %1311 = vst.msk [vmem:[#allocation3 + $0xa8] sm:$0xff] %vm1289, %v1140
  %1312 = vst.msk [vmem:[#allocation3 + $0xb0] sm:$0xff] %vm1289, %v1142
  %1313 = vst.msk [vmem:[#allocation3 + $0xb8] sm:$0xff] %vm1289, %v1144
  %1314 = vst.msk [vmem:[#allocation3 + $0xc0] sm:$0xff] %vm1289, %v1146
  %1315 = vst.msk [vmem:[#allocation3 + $0xc8] sm:$0xff] %vm1289, %v1148
  %1316 = vst.msk [vmem:[#allocation3 + $0xd0] sm:$0xff] %vm1289, %v1150
  %1317 = vst.msk [vmem:[#allocation3 + $0xd8] sm:$0xff] %vm1289, %v1152
  %1318 = vst.msk [vmem:[#allocation3 + $0xe0] sm:$0xff] %vm1289, %v1154
  %1319 = vst.msk [vmem:[#allocation3 + $0xe8] sm:$0xff] %vm1289, %v1156
  %1320 = vst.msk [vmem:[#allocation3 + $0xf0] sm:$0xff] %vm1289, %v1158
  %1321 = vst.msk [vmem:[#allocation3 + $0xf8] sm:$0xff] %vm1289, %v1160
  %1322 = vst.msk [vmem:[#allocation3 + $0x100] sm:$0xff] %vm1289, %v1162
  %1323 = vst.msk [vmem:[#allocation3 + $0x108] sm:$0xff] %vm1289, %v1164
  %1324 = vst.msk [vmem:[#allocation3 + $0x110] sm:$0xff] %vm1289, %v1166
  %1325 = vst.msk [vmem:[#allocation3 + $0x118] sm:$0xff] %vm1289, %v1168
  %1326 = vst.msk [vmem:[#allocation3 + $0x120] sm:$0xff] %vm1289, %v1170
  %1327 = vst.msk [vmem:[#allocation3 + $0x128] sm:$0xff] %vm1289, %v1172
  %1328 = vst.msk [vmem:[#allocation3 + $0x130] sm:$0xff] %vm1289, %v1174
  %1329 = vst.msk [vmem:[#allocation3 + $0x138] sm:$0xff] %vm1289, %v1176
  %1330 = vst.msk [vmem:[#allocation3 + $0x140] sm:$0xff] %vm1289, %v1178
  %1331 = vst.msk [vmem:[#allocation3 + $0x148] sm:$0xff] %vm1289, %v1180
  %1332 = vst.msk [vmem:[#allocation3 + $0x150] sm:$0xff] %vm1289, %v1182
  %1333 = vst.msk [vmem:[#allocation3 + $0x158] sm:$0xff] %vm1289, %v1184
  %1334 = vst.msk [vmem:[#allocation3 + $0x160] sm:$0xff] %vm1289, %v1186
  %1335 = vst.msk [vmem:[#allocation3 + $0x168] sm:$0xff] %vm1289, %v1188
  %1336 = vst.msk [vmem:[#allocation3 + $0x170] sm:$0xff] %vm1289, %v1190
  %1337 = vst.msk [vmem:[#allocation3 + $0x178] sm:$0xff] %vm1289, %v1192
  %1338 = vst.msk [vmem:[#allocation3 + $0x180] sm:$0xff] %vm1289, %v1194
  %1339 = vst.msk [vmem:[#allocation3 + $0x188] sm:$0xff] %vm1289, %v1196
  %1340 = vst.msk [vmem:[#allocation3 + $0x190] sm:$0xff] %vm1289, %v1198
  %1341 = vst.msk [vmem:[#allocation3 + $0x198] sm:$0xff] %vm1289, %v1200
  %1342 = vst.msk [vmem:[#allocation3 + $0x1a0] sm:$0xff] %vm1289, %v1202
  %1343 = vst.msk [vmem:[#allocation3 + $0x1a8] sm:$0xff] %vm1289, %v1204
  %1344 = vst.msk [vmem:[#allocation3 + $0x1b0] sm:$0xff] %vm1289, %v1206
  %1345 = vst.msk [vmem:[#allocation3 + $0x1b8] sm:$0xff] %vm1289, %v1208
  %1346 = vst.msk [vmem:[#allocation3 + $0x1c0] sm:$0xff] %vm1289, %v1210
  %1347 = vst.msk [vmem:[#allocation3 + $0x1c8] sm:$0xff] %vm1289, %v1212
  %1348 = vst.msk [vmem:[#allocation3 + $0x1d0] sm:$0xff] %vm1289, %v1214
  %1349 = vst.msk [vmem:[#allocation3 + $0x1d8] sm:$0xff] %vm1289, %v1216
  %1350 = vst.msk [vmem:[#allocation3 + $0x1e0] sm:$0xff] %vm1289, %v1218
  %1351 = vst.msk [vmem:[#allocation3 + $0x1e8] sm:$0xff] %vm1289, %v1220
  %1352 = vst.msk [vmem:[#allocation3 + $0x1f0] sm:$0xff] %vm1289, %v1222
  %1353 = vst.msk [vmem:[#allocation3 + $0x1f8] sm:$0xff] %vm1289, %v1224
  %1358 = vrot.lane.b32.xlu0 %v253, 12
  %v1359 = vpop.permute.xlu0 %1358
  %1360 = vrot.lane.b32.xlu0 %v254, 12
  %v1361 = vpop.permute.xlu0 %1360
  %1362 = vrot.lane.b32.xlu0 %v256, 12
  %v1363 = vpop.permute.xlu0 %1362
  %1364 = vrot.lane.b32.xlu0 %v257, 12
  %v1365 = vpop.permute.xlu0 %1364
  %1366 = vrot.lane.b32.xlu0 %v259, 12
  %v1367 = vpop.permute.xlu0 %1366
  %1368 = vrot.lane.b32.xlu0 %v260, 12
  %v1369 = vpop.permute.xlu0 %1368
  %1370 = vrot.lane.b32.xlu0 %v262, 12
  %v1371 = vpop.permute.xlu0 %1370
  %1372 = vrot.lane.b32.xlu0 %v263, 12
  %v1373 = vpop.permute.xlu0 %1372
  %1374 = vrot.lane.b32.xlu0 %v265, 12
  %v1375 = vpop.permute.xlu0 %1374
  %1376 = vrot.lane.b32.xlu0 %v266, 12
  %v1377 = vpop.permute.xlu0 %1376
  %1378 = vrot.lane.b32.xlu0 %v268, 12
  %v1379 = vpop.permute.xlu0 %1378
  %1380 = vrot.lane.b32.xlu0 %v269, 12
  %v1381 = vpop.permute.xlu0 %1380
  %1382 = vrot.lane.b32.xlu0 %v271, 12
  %v1383 = vpop.permute.xlu0 %1382
  %1384 = vrot.lane.b32.xlu0 %v272, 12
  %v1385 = vpop.permute.xlu0 %1384
  %1386 = vrot.lane.b32.xlu0 %v274, 12
  %v1387 = vpop.permute.xlu0 %1386
  %1388 = vrot.lane.b32.xlu0 %v275, 12
  %v1389 = vpop.permute.xlu0 %1388
  %1390 = vrot.lane.b32.xlu0 %v277, 12
  %v1391 = vpop.permute.xlu0 %1390
  %1392 = vrot.lane.b32.xlu0 %v278, 12
  %v1393 = vpop.permute.xlu0 %1392
  %1394 = vrot.lane.b32.xlu0 %v280, 12
  %v1395 = vpop.permute.xlu0 %1394
  %1396 = vrot.lane.b32.xlu0 %v281, 12
  %v1397 = vpop.permute.xlu0 %1396
  %1398 = vrot.lane.b32.xlu0 %v283, 12
  %v1399 = vpop.permute.xlu0 %1398
  %1400 = vrot.lane.b32.xlu0 %v284, 12
  %v1401 = vpop.permute.xlu0 %1400
  %1402 = vrot.lane.b32.xlu0 %v286, 12
  %v1403 = vpop.permute.xlu0 %1402
  %1404 = vrot.lane.b32.xlu0 %v287, 12
  %v1405 = vpop.permute.xlu0 %1404
  %1406 = vrot.lane.b32.xlu0 %v289, 12
  %v1407 = vpop.permute.xlu0 %1406
  %1408 = vrot.lane.b32.xlu0 %v290, 12
  %v1409 = vpop.permute.xlu0 %1408
  %1410 = vrot.lane.b32.xlu0 %v292, 12
  %v1411 = vpop.permute.xlu0 %1410
  %1412 = vrot.lane.b32.xlu0 %v293, 12
  %v1413 = vpop.permute.xlu0 %1412
  %1414 = vrot.lane.b32.xlu0 %v295, 12
  %v1415 = vpop.permute.xlu0 %1414
  %1416 = vrot.lane.b32.xlu0 %v296, 12
  %v1417 = vpop.permute.xlu0 %1416
  %1418 = vrot.lane.b32.xlu0 %v298, 12
  %v1419 = vpop.permute.xlu0 %1418
  %1420 = vrot.lane.b32.xlu0 %v299, 12
  %v1421 = vpop.permute.xlu0 %1420
  %1422 = vrot.lane.b32.xlu0 %v307, 12
  %v1423 = vpop.permute.xlu0 %1422
  %1424 = vrot.lane.b32.xlu0 %v308, 12
  %v1425 = vpop.permute.xlu0 %1424
  %1426 = vrot.lane.b32.xlu0 %v310, 12
  %v1427 = vpop.permute.xlu0 %1426
  %1428 = vrot.lane.b32.xlu0 %v311, 12
  %v1429 = vpop.permute.xlu0 %1428
  %1430 = vrot.lane.b32.xlu0 %v313, 12
  %v1431 = vpop.permute.xlu0 %1430
  %1432 = vrot.lane.b32.xlu0 %v314, 12
  %v1433 = vpop.permute.xlu0 %1432
  %1434 = vrot.lane.b32.xlu0 %v316, 12
  %v1435 = vpop.permute.xlu0 %1434
  %1436 = vrot.lane.b32.xlu0 %v317, 12
  %v1437 = vpop.permute.xlu0 %1436
  %1438 = vrot.lane.b32.xlu0 %v319, 12
  %v1439 = vpop.permute.xlu0 %1438
  %1440 = vrot.lane.b32.xlu0 %v320, 12
  %v1441 = vpop.permute.xlu0 %1440
  %1442 = vrot.lane.b32.xlu0 %v322, 12
  %v1443 = vpop.permute.xlu0 %1442
  %1444 = vrot.lane.b32.xlu0 %v323, 12
  %v1445 = vpop.permute.xlu0 %1444
  %1446 = vrot.lane.b32.xlu0 %v325, 12
  %v1447 = vpop.permute.xlu0 %1446
  %1448 = vrot.lane.b32.xlu0 %v326, 12
  %v1449 = vpop.permute.xlu0 %1448
  %1450 = vrot.lane.b32.xlu0 %v328, 12
  %v1451 = vpop.permute.xlu0 %1450
  %1452 = vrot.lane.b32.xlu0 %v329, 12
  %v1453 = vpop.permute.xlu0 %1452
  %1454 = vrot.lane.b32.xlu0 %v331, 12
  %v1455 = vpop.permute.xlu0 %1454
  %1456 = vrot.lane.b32.xlu0 %v332, 12
  %v1457 = vpop.permute.xlu0 %1456
  %1458 = vrot.lane.b32.xlu0 %v334, 12
  %v1459 = vpop.permute.xlu0 %1458
  %1460 = vrot.lane.b32.xlu0 %v335, 12
  %v1461 = vpop.permute.xlu0 %1460
  %1462 = vrot.lane.b32.xlu0 %v337, 12
  %v1463 = vpop.permute.xlu0 %1462
  %1464 = vrot.lane.b32.xlu0 %v338, 12
  %v1465 = vpop.permute.xlu0 %1464
  %1466 = vrot.lane.b32.xlu0 %v340, 12
  %v1467 = vpop.permute.xlu0 %1466
  %1468 = vrot.lane.b32.xlu0 %v341, 12
  %v1469 = vpop.permute.xlu0 %1468
  %1470 = vrot.lane.b32.xlu0 %v343, 12
  %v1471 = vpop.permute.xlu0 %1470
  %1472 = vrot.lane.b32.xlu0 %v344, 12
  %v1473 = vpop.permute.xlu0 %1472
  %1474 = vrot.lane.b32.xlu0 %v346, 12
  %v1475 = vpop.permute.xlu0 %1474
  %1476 = vrot.lane.b32.xlu0 %v347, 12
  %v1477 = vpop.permute.xlu0 %1476
  %1478 = vrot.lane.b32.xlu0 %v349, 12
  %v1479 = vpop.permute.xlu0 %1478
  %1480 = vrot.lane.b32.xlu0 %v350, 12
  %v1481 = vpop.permute.xlu0 %1480
  %1482 = vrot.lane.b32.xlu0 %v352, 12
  %v1483 = vpop.permute.xlu0 %1482
  %1484 = vrot.lane.b32.xlu0 %v353, 12
  %v1485 = vpop.permute.xlu0 %1484
  %vm1550 = vcmask 130144
  %1551 = vst.msk [vmem:[#allocation3] sm:$0xff] %vm1550, %v1359
  %1552 = vst.msk [vmem:[#allocation3 + $0x8] sm:$0xff] %vm1550, %v1361
  %1553 = vst.msk [vmem:[#allocation3 + $0x10] sm:$0xff] %vm1550, %v1363
  %1554 = vst.msk [vmem:[#allocation3 + $0x18] sm:$0xff] %vm1550, %v1365
  %1555 = vst.msk [vmem:[#allocation3 + $0x20] sm:$0xff] %vm1550, %v1367
  %1556 = vst.msk [vmem:[#allocation3 + $0x28] sm:$0xff] %vm1550, %v1369
  %1557 = vst.msk [vmem:[#allocation3 + $0x30] sm:$0xff] %vm1550, %v1371
  %1558 = vst.msk [vmem:[#allocation3 + $0x38] sm:$0xff] %vm1550, %v1373
  %1559 = vst.msk [vmem:[#allocation3 + $0x40] sm:$0xff] %vm1550, %v1375
  %1560 = vst.msk [vmem:[#allocation3 + $0x48] sm:$0xff] %vm1550, %v1377
  %1561 = vst.msk [vmem:[#allocation3 + $0x50] sm:$0xff] %vm1550, %v1379
  %1562 = vst.msk [vmem:[#allocation3 + $0x58] sm:$0xff] %vm1550, %v1381
  %1563 = vst.msk [vmem:[#allocation3 + $0x60] sm:$0xff] %vm1550, %v1383
  %1564 = vst.msk [vmem:[#allocation3 + $0x68] sm:$0xff] %vm1550, %v1385
  %1565 = vst.msk [vmem:[#allocation3 + $0x70] sm:$0xff] %vm1550, %v1387
  %1566 = vst.msk [vmem:[#allocation3 + $0x78] sm:$0xff] %vm1550, %v1389
  %1567 = vst.msk [vmem:[#allocation3 + $0x80] sm:$0xff] %vm1550, %v1391
  %1568 = vst.msk [vmem:[#allocation3 + $0x88] sm:$0xff] %vm1550, %v1393
  %1569 = vst.msk [vmem:[#allocation3 + $0x90] sm:$0xff] %vm1550, %v1395
  %1570 = vst.msk [vmem:[#allocation3 + $0x98] sm:$0xff] %vm1550, %v1397
  %1571 = vst.msk [vmem:[#allocation3 + $0xa0] sm:$0xff] %vm1550, %v1399
  %1572 = vst.msk [vmem:[#allocation3 + $0xa8] sm:$0xff] %vm1550, %v1401
  %1573 = vst.msk [vmem:[#allocation3 + $0xb0] sm:$0xff] %vm1550, %v1403
  %1574 = vst.msk [vmem:[#allocation3 + $0xb8] sm:$0xff] %vm1550, %v1405
  %1575 = vst.msk [vmem:[#allocation3 + $0xc0] sm:$0xff] %vm1550, %v1407
  %1576 = vst.msk [vmem:[#allocation3 + $0xc8] sm:$0xff] %vm1550, %v1409
  %1577 = vst.msk [vmem:[#allocation3 + $0xd0] sm:$0xff] %vm1550, %v1411
  %1578 = vst.msk [vmem:[#allocation3 + $0xd8] sm:$0xff] %vm1550, %v1413
  %1579 = vst.msk [vmem:[#allocation3 + $0xe0] sm:$0xff] %vm1550, %v1415
  %1580 = vst.msk [vmem:[#allocation3 + $0xe8] sm:$0xff] %vm1550, %v1417
  %1581 = vst.msk [vmem:[#allocation3 + $0xf0] sm:$0xff] %vm1550, %v1419
  %1582 = vst.msk [vmem:[#allocation3 + $0xf8] sm:$0xff] %vm1550, %v1421
  %1583 = vst.msk [vmem:[#allocation3 + $0x100] sm:$0xff] %vm1550, %v1423
  %1584 = vst.msk [vmem:[#allocation3 + $0x108] sm:$0xff] %vm1550, %v1425
  %1585 = vst.msk [vmem:[#allocation3 + $0x110] sm:$0xff] %vm1550, %v1427
  %1586 = vst.msk [vmem:[#allocation3 + $0x118] sm:$0xff] %vm1550, %v1429
  %1587 = vst.msk [vmem:[#allocation3 + $0x120] sm:$0xff] %vm1550, %v1431
  %1588 = vst.msk [vmem:[#allocation3 + $0x128] sm:$0xff] %vm1550, %v1433
  %1589 = vst.msk [vmem:[#allocation3 + $0x130] sm:$0xff] %vm1550, %v1435
  %1590 = vst.msk [vmem:[#allocation3 + $0x138] sm:$0xff] %vm1550, %v1437
  %1591 = vst.msk [vmem:[#allocation3 + $0x140] sm:$0xff] %vm1550, %v1439
  %1592 = vst.msk [vmem:[#allocation3 + $0x148] sm:$0xff] %vm1550, %v1441
  %1593 = vst.msk [vmem:[#allocation3 + $0x150] sm:$0xff] %vm1550, %v1443
  %1594 = vst.msk [vmem:[#allocation3 + $0x158] sm:$0xff] %vm1550, %v1445
  %1595 = vst.msk [vmem:[#allocation3 + $0x160] sm:$0xff] %vm1550, %v1447
  %1596 = vst.msk [vmem:[#allocation3 + $0x168] sm:$0xff] %vm1550, %v1449
  %1597 = vst.msk [vmem:[#allocation3 + $0x170] sm:$0xff] %vm1550, %v1451
  %1598 = vst.msk [vmem:[#allocation3 + $0x178] sm:$0xff] %vm1550, %v1453
  %1599 = vst.msk [vmem:[#allocation3 + $0x180] sm:$0xff] %vm1550, %v1455
  %1600 = vst.msk [vmem:[#allocation3 + $0x188] sm:$0xff] %vm1550, %v1457
  %1601 = vst.msk [vmem:[#allocation3 + $0x190] sm:$0xff] %vm1550, %v1459
  %1602 = vst.msk [vmem:[#allocation3 + $0x198] sm:$0xff] %vm1550, %v1461
  %1603 = vst.msk [vmem:[#allocation3 + $0x1a0] sm:$0xff] %vm1550, %v1463
  %1604 = vst.msk [vmem:[#allocation3 + $0x1a8] sm:$0xff] %vm1550, %v1465
  %1605 = vst.msk [vmem:[#allocation3 + $0x1b0] sm:$0xff] %vm1550, %v1467
  %1606 = vst.msk [vmem:[#allocation3 + $0x1b8] sm:$0xff] %vm1550, %v1469
  %1607 = vst.msk [vmem:[#allocation3 + $0x1c0] sm:$0xff] %vm1550, %v1471
  %1608 = vst.msk [vmem:[#allocation3 + $0x1c8] sm:$0xff] %vm1550, %v1473
  %1609 = vst.msk [vmem:[#allocation3 + $0x1d0] sm:$0xff] %vm1550, %v1475
  %1610 = vst.msk [vmem:[#allocation3 + $0x1d8] sm:$0xff] %vm1550, %v1477
  %1611 = vst.msk [vmem:[#allocation3 + $0x1e0] sm:$0xff] %vm1550, %v1479
  %1612 = vst.msk [vmem:[#allocation3 + $0x1e8] sm:$0xff] %vm1550, %v1481
  %1613 = vst.msk [vmem:[#allocation3 + $0x1f0] sm:$0xff] %vm1550, %v1483
  %1614 = vst.msk [vmem:[#allocation3 + $0x1f8] sm:$0xff] %vm1550, %v1485
  %v1617 = vrot.slane %v298, 1
  %v1618 = vrot.slane %v299, 1
  %v1619 = vsel %vm518, %v1617, %v1618
  %v1620 = vrot.slane %v300, 1
  %v1621 = vsel %vm518, %v1618, %v1620
  %v1622 = vrot.slane %v352, 1
  %v1623 = vrot.slane %v353, 1
  %v1624 = vsel %vm518, %v1622, %v1623
  %v1625 = vrot.slane %v354, 1
  %v1626 = vsel %vm518, %v1623, %v1625
  %1627 = vrot.lane.b32.xlu0 %v526, 16
  %v1628 = vpop.permute.xlu0 %1627
  %1629 = vrot.lane.b32.xlu0 %v528, 16
  %v1630 = vpop.permute.xlu0 %1629
  %1631 = vrot.lane.b32.xlu0 %v531, 16
  %v1632 = vpop.permute.xlu0 %1631
  %1633 = vrot.lane.b32.xlu0 %v533, 16
  %v1634 = vpop.permute.xlu0 %1633
  %1635 = vrot.lane.b32.xlu0 %v536, 16
  %v1636 = vpop.permute.xlu0 %1635
  %1637 = vrot.lane.b32.xlu0 %v538, 16
  %v1638 = vpop.permute.xlu0 %1637
  %1639 = vrot.lane.b32.xlu0 %v541, 16
  %v1640 = vpop.permute.xlu0 %1639
  %1641 = vrot.lane.b32.xlu0 %v543, 16
  %v1642 = vpop.permute.xlu0 %1641
  %1643 = vrot.lane.b32.xlu0 %v546, 16
  %v1644 = vpop.permute.xlu0 %1643
  %1645 = vrot.lane.b32.xlu0 %v548, 16
  %v1646 = vpop.permute.xlu0 %1645
  %1647 = vrot.lane.b32.xlu0 %v551, 16
  %v1648 = vpop.permute.xlu0 %1647
  %1649 = vrot.lane.b32.xlu0 %v553, 16
  %v1650 = vpop.permute.xlu0 %1649
  %1651 = vrot.lane.b32.xlu0 %v556, 16
  %v1652 = vpop.permute.xlu0 %1651
  %1653 = vrot.lane.b32.xlu0 %v558, 16
  %v1654 = vpop.permute.xlu0 %1653
  %1655 = vrot.lane.b32.xlu0 %v561, 16
  %v1656 = vpop.permute.xlu0 %1655
  %1657 = vrot.lane.b32.xlu0 %v563, 16
  %v1658 = vpop.permute.xlu0 %1657
  %1659 = vrot.lane.b32.xlu0 %v566, 16
  %v1660 = vpop.permute.xlu0 %1659
  %1661 = vrot.lane.b32.xlu0 %v568, 16
  %v1662 = vpop.permute.xlu0 %1661
  %1663 = vrot.lane.b32.xlu0 %v571, 16
  %v1664 = vpop.permute.xlu0 %1663
  %1665 = vrot.lane.b32.xlu0 %v573, 16
  %v1666 = vpop.permute.xlu0 %1665
  %1667 = vrot.lane.b32.xlu0 %v576, 16
  %v1668 = vpop.permute.xlu0 %1667
  %1669 = vrot.lane.b32.xlu0 %v578, 16
  %v1670 = vpop.permute.xlu0 %1669
  %1671 = vrot.lane.b32.xlu0 %v581, 16
  %v1672 = vpop.permute.xlu0 %1671
  %1673 = vrot.lane.b32.xlu0 %v583, 16
  %v1674 = vpop.permute.xlu0 %1673
  %1675 = vrot.lane.b32.xlu0 %v586, 16
  %v1676 = vpop.permute.xlu0 %1675
  %1677 = vrot.lane.b32.xlu0 %v588, 16
  %v1678 = vpop.permute.xlu0 %1677
  %1679 = vrot.lane.b32.xlu0 %v591, 16
  %v1680 = vpop.permute.xlu0 %1679
  %1681 = vrot.lane.b32.xlu0 %v593, 16
  %v1682 = vpop.permute.xlu0 %1681
  %1683 = vrot.lane.b32.xlu0 %v596, 16
  %v1684 = vpop.permute.xlu0 %1683
  %1685 = vrot.lane.b32.xlu0 %v598, 16
  %v1686 = vpop.permute.xlu0 %1685
  %1687 = vrot.lane.b32.xlu0 %v1619, 16
  %v1688 = vpop.permute.xlu0 %1687
  %1689 = vrot.lane.b32.xlu0 %v1621, 16
  %v1690 = vpop.permute.xlu0 %1689
  %1691 = vrot.lane.b32.xlu0 %v606, 16
  %v1692 = vpop.permute.xlu0 %1691
  %1693 = vrot.lane.b32.xlu0 %v608, 16
  %v1694 = vpop.permute.xlu0 %1693
  %1695 = vrot.lane.b32.xlu0 %v611, 16
  %v1696 = vpop.permute.xlu0 %1695
  %1697 = vrot.lane.b32.xlu0 %v613, 16
  %v1698 = vpop.permute.xlu0 %1697
  %1699 = vrot.lane.b32.xlu0 %v616, 16
  %v1700 = vpop.permute.xlu0 %1699
  %1701 = vrot.lane.b32.xlu0 %v618, 16
  %v1702 = vpop.permute.xlu0 %1701
  %1703 = vrot.lane.b32.xlu0 %v621, 16
  %v1704 = vpop.permute.xlu0 %1703
  %1705 = vrot.lane.b32.xlu0 %v623, 16
  %v1706 = vpop.permute.xlu0 %1705
  %1707 = vrot.lane.b32.xlu0 %v626, 16
  %v1708 = vpop.permute.xlu0 %1707
  %1709 = vrot.lane.b32.xlu0 %v628, 16
  %v1710 = vpop.permute.xlu0 %1709
  %1711 = vrot.lane.b32.xlu0 %v631, 16
  %v1712 = vpop.permute.xlu0 %1711
  %1713 = vrot.lane.b32.xlu0 %v633, 16
  %v1714 = vpop.permute.xlu0 %1713
  %1715 = vrot.lane.b32.xlu0 %v636, 16
  %v1716 = vpop.permute.xlu0 %1715
  %1717 = vrot.lane.b32.xlu0 %v638, 16
  %v1718 = vpop.permute.xlu0 %1717
  %1719 = vrot.lane.b32.xlu0 %v641, 16
  %v1720 = vpop.permute.xlu0 %1719
  %1721 = vrot.lane.b32.xlu0 %v643, 16
  %v1722 = vpop.permute.xlu0 %1721
  %1723 = vrot.lane.b32.xlu0 %v646, 16
  %v1724 = vpop.permute.xlu0 %1723
  %1725 = vrot.lane.b32.xlu0 %v648, 16
  %v1726 = vpop.permute.xlu0 %1725
  %1727 = vrot.lane.b32.xlu0 %v651, 16
  %v1728 = vpop.permute.xlu0 %1727
  %1729 = vrot.lane.b32.xlu0 %v653, 16
  %v1730 = vpop.permute.xlu0 %1729
  %1731 = vrot.lane.b32.xlu0 %v656, 16
  %v1732 = vpop.permute.xlu0 %1731
  %1733 = vrot.lane.b32.xlu0 %v658, 16
  %v1734 = vpop.permute.xlu0 %1733
  %1735 = vrot.lane.b32.xlu0 %v661, 16
  %v1736 = vpop.permute.xlu0 %1735
  %1737 = vrot.lane.b32.xlu0 %v663, 16
  %v1738 = vpop.permute.xlu0 %1737
  %1739 = vrot.lane.b32.xlu0 %v666, 16
  %v1740 = vpop.permute.xlu0 %1739
  %1741 = vrot.lane.b32.xlu0 %v668, 16
  %v1742 = vpop.permute.xlu0 %1741
  %1743 = vrot.lane.b32.xlu0 %v671, 16
  %v1744 = vpop.permute.xlu0 %1743
  %1745 = vrot.lane.b32.xlu0 %v673, 16
  %v1746 = vpop.permute.xlu0 %1745
  %1747 = vrot.lane.b32.xlu0 %v676, 16
  %v1748 = vpop.permute.xlu0 %1747
  %1749 = vrot.lane.b32.xlu0 %v678, 16
  %v1750 = vpop.permute.xlu0 %1749
  %1751 = vrot.lane.b32.xlu0 %v1624, 16
  %v1752 = vpop.permute.xlu0 %1751
  %1753 = vrot.lane.b32.xlu0 %v1626, 16
  %v1754 = vpop.permute.xlu0 %1753
  %vm1819 = vcmask 162944
  %1820 = vst.msk [vmem:[#allocation3] sm:$0xff] %vm1819, %v1628
  %1821 = vst.msk [vmem:[#allocation3 + $0x8] sm:$0xff] %vm1819, %v1630
  %1822 = vst.msk [vmem:[#allocation3 + $0x10] sm:$0xff] %vm1819, %v1632
  %1823 = vst.msk [vmem:[#allocation3 + $0x18] sm:$0xff] %vm1819, %v1634
  %1824 = vst.msk [vmem:[#allocation3 + $0x20] sm:$0xff] %vm1819, %v1636
  %1825 = vst.msk [vmem:[#allocation3 + $0x28] sm:$0xff] %vm1819, %v1638
  %1826 = vst.msk [vmem:[#allocation3 + $0x30] sm:$0xff] %vm1819, %v1640
  %1827 = vst.msk [vmem:[#allocation3 + $0x38] sm:$0xff] %vm1819, %v1642
  %1828 = vst.msk [vmem:[#allocation3 + $0x40] sm:$0xff] %vm1819, %v1644
  %1829 = vst.msk [vmem:[#allocation3 + $0x48] sm:$0xff] %vm1819, %v1646
  %1830 = vst.msk [vmem:[#allocation3 + $0x50] sm:$0xff] %vm1819, %v1648
  %1831 = vst.msk [vmem:[#allocation3 + $0x58] sm:$0xff] %vm1819, %v1650
  %1832 = vst.msk [vmem:[#allocation3 + $0x60] sm:$0xff] %vm1819, %v1652
  %1833 = vst.msk [vmem:[#allocation3 + $0x68] sm:$0xff] %vm1819, %v1654
  %1834 = vst.msk [vmem:[#allocation3 + $0x70] sm:$0xff] %vm1819, %v1656
  %1835 = vst.msk [vmem:[#allocation3 + $0x78] sm:$0xff] %vm1819, %v1658
  %1836 = vst.msk [vmem:[#allocation3 + $0x80] sm:$0xff] %vm1819, %v1660
  %1837 = vst.msk [vmem:[#allocation3 + $0x88] sm:$0xff] %vm1819, %v1662
  %1838 = vst.msk [vmem:[#allocation3 + $0x90] sm:$0xff] %vm1819, %v1664
  %1839 = vst.msk [vmem:[#allocation3 + $0x98] sm:$0xff] %vm1819, %v1666
  %1840 = vst.msk [vmem:[#allocation3 + $0xa0] sm:$0xff] %vm1819, %v1668
  %1841 = vst.msk [vmem:[#allocation3 + $0xa8] sm:$0xff] %vm1819, %v1670
  %1842 = vst.msk [vmem:[#allocation3 + $0xb0] sm:$0xff] %vm1819, %v1672
  %1843 = vst.msk [vmem:[#allocation3 + $0xb8] sm:$0xff] %vm1819, %v1674
  %1844 = vst.msk [vmem:[#allocation3 + $0xc0] sm:$0xff] %vm1819, %v1676
  %1845 = vst.msk [vmem:[#allocation3 + $0xc8] sm:$0xff] %vm1819, %v1678
  %1846 = vst.msk [vmem:[#allocation3 + $0xd0] sm:$0xff] %vm1819, %v1680
  %1847 = vst.msk [vmem:[#allocation3 + $0xd8] sm:$0xff] %vm1819, %v1682
  %1848 = vst.msk [vmem:[#allocation3 + $0xe0] sm:$0xff] %vm1819, %v1684
  %1849 = vst.msk [vmem:[#allocation3 + $0xe8] sm:$0xff] %vm1819, %v1686
  %1850 = vst.msk [vmem:[#allocation3 + $0xf0] sm:$0xff] %vm1819, %v1688
  %1851 = vst.msk [vmem:[#allocation3 + $0xf8] sm:$0xff] %vm1819, %v1690
  %1852 = vst.msk [vmem:[#allocation3 + $0x100] sm:$0xff] %vm1819, %v1692
  %1853 = vst.msk [vmem:[#allocation3 + $0x108] sm:$0xff] %vm1819, %v1694
  %1854 = vst.msk [vmem:[#allocation3 + $0x110] sm:$0xff] %vm1819, %v1696
  %1855 = vst.msk [vmem:[#allocation3 + $0x118] sm:$0xff] %vm1819, %v1698
  %1856 = vst.msk [vmem:[#allocation3 + $0x120] sm:$0xff] %vm1819, %v1700
  %1857 = vst.msk [vmem:[#allocation3 + $0x128] sm:$0xff] %vm1819, %v1702
  %1858 = vst.msk [vmem:[#allocation3 + $0x130] sm:$0xff] %vm1819, %v1704
  %1859 = vst.msk [vmem:[#allocation3 + $0x138] sm:$0xff] %vm1819, %v1706
  %1860 = vst.msk [vmem:[#allocation3 + $0x140] sm:$0xff] %vm1819, %v1708
  %1861 = vst.msk [vmem:[#allocation3 + $0x148] sm:$0xff] %vm1819, %v1710
  %1862 = vst.msk [vmem:[#allocation3 + $0x150] sm:$0xff] %vm1819, %v1712
  %1863 = vst.msk [vmem:[#allocation3 + $0x158] sm:$0xff] %vm1819, %v1714
  %1864 = vst.msk [vmem:[#allocation3 + $0x160] sm:$0xff] %vm1819, %v1716
  %1865 = vst.msk [vmem:[#allocation3 + $0x168] sm:$0xff] %vm1819, %v1718
  %1866 = vst.msk [vmem:[#allocation3 + $0x170] sm:$0xff] %vm1819, %v1720
  %1867 = vst.msk [vmem:[#allocation3 + $0x178] sm:$0xff] %vm1819, %v1722
  %1868 = vst.msk [vmem:[#allocation3 + $0x180] sm:$0xff] %vm1819, %v1724
  %1869 = vst.msk [vmem:[#allocation3 + $0x188] sm:$0xff] %vm1819, %v1726
  %1870 = vst.msk [vmem:[#allocation3 + $0x190] sm:$0xff] %vm1819, %v1728
  %1871 = vst.msk [vmem:[#allocation3 + $0x198] sm:$0xff] %vm1819, %v1730
  %1872 = vst.msk [vmem:[#allocation3 + $0x1a0] sm:$0xff] %vm1819, %v1732
  %1873 = vst.msk [vmem:[#allocation3 + $0x1a8] sm:$0xff] %vm1819, %v1734
  %1874 = vst.msk [vmem:[#allocation3 + $0x1b0] sm:$0xff] %vm1819, %v1736
  %1875 = vst.msk [vmem:[#allocation3 + $0x1b8] sm:$0xff] %vm1819, %v1738
  %1876 = vst.msk [vmem:[#allocation3 + $0x1c0] sm:$0xff] %vm1819, %v1740
  %1877 = vst.msk [vmem:[#allocation3 + $0x1c8] sm:$0xff] %vm1819, %v1742
  %1878 = vst.msk [vmem:[#allocation3 + $0x1d0] sm:$0xff] %vm1819, %v1744
  %1879 = vst.msk [vmem:[#allocation3 + $0x1d8] sm:$0xff] %vm1819, %v1746
  %1880 = vst.msk [vmem:[#allocation3 + $0x1e0] sm:$0xff] %vm1819, %v1748
  %1881 = vst.msk [vmem:[#allocation3 + $0x1e8] sm:$0xff] %vm1819, %v1750
  %1882 = vst.msk [vmem:[#allocation3 + $0x1f0] sm:$0xff] %vm1819, %v1752
  %1883 = vst.msk [vmem:[#allocation3 + $0x1f8] sm:$0xff] %vm1819, %v1754
  %v1884 = vrot.slane %v298, 2
  %v1885 = vrot.slane %v299, 2
  %v1886 = vsel %vm936, %v1884, %v1885
  %v1887 = vrot.slane %v300, 2
  %v1888 = vsel %vm936, %v1885, %v1887
  %v1889 = vrot.slane %v352, 2
  %v1890 = vrot.slane %v353, 2
  %v1891 = vsel %vm936, %v1889, %v1890
  %v1892 = vrot.slane %v354, 2
  %v1893 = vsel %vm936, %v1890, %v1892
  %1894 = vrot.lane.b32.xlu0 %v944, 20
  %v1895 = vpop.permute.xlu0 %1894
  %1896 = vrot.lane.b32.xlu0 %v946, 20
  %v1897 = vpop.permute.xlu0 %1896
  %1898 = vrot.lane.b32.xlu0 %v949, 20
  %v1899 = vpop.permute.xlu0 %1898
  %1900 = vrot.lane.b32.xlu0 %v951, 20
  %v1901 = vpop.permute.xlu0 %1900
  %1902 = vrot.lane.b32.xlu0 %v954, 20
  %v1903 = vpop.permute.xlu0 %1902
  %1904 = vrot.lane.b32.xlu0 %v956, 20
  %v1905 = vpop.permute.xlu0 %1904
  %1906 = vrot.lane.b32.xlu0 %v959, 20
  %v1907 = vpop.permute.xlu0 %1906
  %1908 = vrot.lane.b32.xlu0 %v961, 20
  %v1909 = vpop.permute.xlu0 %1908
  %1910 = vrot.lane.b32.xlu0 %v964, 20
  %v1911 = vpop.permute.xlu0 %1910
  %1912 = vrot.lane.b32.xlu0 %v966, 20
  %v1913 = vpop.permute.xlu0 %1912
  %1914 = vrot.lane.b32.xlu0 %v969, 20
  %v1915 = vpop.permute.xlu0 %1914
  %1916 = vrot.lane.b32.xlu0 %v971, 20
  %v1917 = vpop.permute.xlu0 %1916
  %1918 = vrot.lane.b32.xlu0 %v974, 20
  %v1919 = vpop.permute.xlu0 %1918
  %1920 = vrot.lane.b32.xlu0 %v976, 20
  %v1921 = vpop.permute.xlu0 %1920
  %1922 = vrot.lane.b32.xlu0 %v979, 20
  %v1923 = vpop.permute.xlu0 %1922
  %1924 = vrot.lane.b32.xlu0 %v981, 20
  %v1925 = vpop.permute.xlu0 %1924
  %1926 = vrot.lane.b32.xlu0 %v984, 20
  %v1927 = vpop.permute.xlu0 %1926
  %1928 = vrot.lane.b32.xlu0 %v986, 20
  %v1929 = vpop.permute.xlu0 %1928
  %1930 = vrot.lane.b32.xlu0 %v989, 20
  %v1931 = vpop.permute.xlu0 %1930
  %1932 = vrot.lane.b32.xlu0 %v991, 20
  %v1933 = vpop.permute.xlu0 %1932
  %1934 = vrot.lane.b32.xlu0 %v994, 20
  %v1935 = vpop.permute.xlu0 %1934
  %1936 = vrot.lane.b32.xlu0 %v996, 20
  %v1937 = vpop.permute.xlu0 %1936
  %1938 = vrot.lane.b32.xlu0 %v999, 20
  %v1939 = vpop.permute.xlu0 %1938
  %1940 = vrot.lane.b32.xlu0 %v1001, 20
  %v1941 = vpop.permute.xlu0 %1940
  %1942 = vrot.lane.b32.xlu0 %v1004, 20
  %v1943 = vpop.permute.xlu0 %1942
  %1944 = vrot.lane.b32.xlu0 %v1006, 20
  %v1945 = vpop.permute.xlu0 %1944
  %1946 = vrot.lane.b32.xlu0 %v1009, 20
  %v1947 = vpop.permute.xlu0 %1946
  %1948 = vrot.lane.b32.xlu0 %v1011, 20
  %v1949 = vpop.permute.xlu0 %1948
  %1950 = vrot.lane.b32.xlu0 %v1014, 20
  %v1951 = vpop.permute.xlu0 %1950
  %1952 = vrot.lane.b32.xlu0 %v1016, 20
  %v1953 = vpop.permute.xlu0 %1952
  %1954 = vrot.lane.b32.xlu0 %v1886, 20
  %v1955 = vpop.permute.xlu0 %1954
  %1956 = vrot.lane.b32.xlu0 %v1888, 20
  %v1957 = vpop.permute.xlu0 %1956
  %1958 = vrot.lane.b32.xlu0 %v1024, 20
  %v1959 = vpop.permute.xlu0 %1958
  %1960 = vrot.lane.b32.xlu0 %v1026, 20
  %v1961 = vpop.permute.xlu0 %1960
  %1962 = vrot.lane.b32.xlu0 %v1029, 20
  %v1963 = vpop.permute.xlu0 %1962
  %1964 = vrot.lane.b32.xlu0 %v1031, 20
  %v1965 = vpop.permute.xlu0 %1964
  %1966 = vrot.lane.b32.xlu0 %v1034, 20
  %v1967 = vpop.permute.xlu0 %1966
  %1968 = vrot.lane.b32.xlu0 %v1036, 20
  %v1969 = vpop.permute.xlu0 %1968
  %1970 = vrot.lane.b32.xlu0 %v1039, 20
  %v1971 = vpop.permute.xlu0 %1970
  %1972 = vrot.lane.b32.xlu0 %v1041, 20
  %v1973 = vpop.permute.xlu0 %1972
  %1974 = vrot.lane.b32.xlu0 %v1044, 20
  %v1975 = vpop.permute.xlu0 %1974
  %1976 = vrot.lane.b32.xlu0 %v1046, 20
  %v1977 = vpop.permute.xlu0 %1976
  %1978 = vrot.lane.b32.xlu0 %v1049, 20
  %v1979 = vpop.permute.xlu0 %1978
  %1980 = vrot.lane.b32.xlu0 %v1051, 20
  %v1981 = vpop.permute.xlu0 %1980
  %1982 = vrot.lane.b32.xlu0 %v1054, 20
  %v1983 = vpop.permute.xlu0 %1982
  %1984 = vrot.lane.b32.xlu0 %v1056, 20
  %v1985 = vpop.permute.xlu0 %1984
  %1986 = vrot.lane.b32.xlu0 %v1059, 20
  %v1987 = vpop.permute.xlu0 %1986
  %1988 = vrot.lane.b32.xlu0 %v1061, 20
  %v1989 = vpop.permute.xlu0 %1988
  %1990 = vrot.lane.b32.xlu0 %v1064, 20
  %v1991 = vpop.permute.xlu0 %1990
  %1992 = vrot.lane.b32.xlu0 %v1066, 20
  %v1993 = vpop.permute.xlu0 %1992
  %1994 = vrot.lane.b32.xlu0 %v1069, 20
  %v1995 = vpop.permute.xlu0 %1994
  %1996 = vrot.lane.b32.xlu0 %v1071, 20
  %v1997 = vpop.permute.xlu0 %1996
  %1998 = vrot.lane.b32.xlu0 %v1074, 20
  %v1999 = vpop.permute.xlu0 %1998
  %2000 = vrot.lane.b32.xlu0 %v1076, 20
  %v2001 = vpop.permute.xlu0 %2000
  %2002 = vrot.lane.b32.xlu0 %v1079, 20
  %v2003 = vpop.permute.xlu0 %2002
  %2004 = vrot.lane.b32.xlu0 %v1081, 20
  %v2005 = vpop.permute.xlu0 %2004
  %2006 = vrot.lane.b32.xlu0 %v1084, 20
  %v2007 = vpop.permute.xlu0 %2006
  %2008 = vrot.lane.b32.xlu0 %v1086, 20
  %v2009 = vpop.permute.xlu0 %2008
  %2010 = vrot.lane.b32.xlu0 %v1089, 20
  %v2011 = vpop.permute.xlu0 %2010
  %2012 = vrot.lane.b32.xlu0 %v1091, 20
  %v2013 = vpop.permute.xlu0 %2012
  %2014 = vrot.lane.b32.xlu0 %v1094, 20
  %v2015 = vpop.permute.xlu0 %2014
  %2016 = vrot.lane.b32.xlu0 %v1096, 20
  %v2017 = vpop.permute.xlu0 %2016
  %2018 = vrot.lane.b32.xlu0 %v1891, 20
  %v2019 = vpop.permute.xlu0 %2018
  %2020 = vrot.lane.b32.xlu0 %v1893, 20
  %v2021 = vpop.permute.xlu0 %2020
  %vm2086 = vcmask 195744
  %2087 = vst.msk [vmem:[#allocation3] sm:$0xff] %vm2086, %v1895
  %2088 = vst.msk [vmem:[#allocation3 + $0x8] sm:$0xff] %vm2086, %v1897
  %2089 = vst.msk [vmem:[#allocation3 + $0x10] sm:$0xff] %vm2086, %v1899
  %2090 = vst.msk [vmem:[#allocation3 + $0x18] sm:$0xff] %vm2086, %v1901
  %2091 = vst.msk [vmem:[#allocation3 + $0x20] sm:$0xff] %vm2086, %v1903
  %2092 = vst.msk [vmem:[#allocation3 + $0x28] sm:$0xff] %vm2086, %v1905
  %2093 = vst.msk [vmem:[#allocation3 + $0x30] sm:$0xff] %vm2086, %v1907
  %2094 = vst.msk [vmem:[#allocation3 + $0x38] sm:$0xff] %vm2086, %v1909
  %2095 = vst.msk [vmem:[#allocation3 + $0x40] sm:$0xff] %vm2086, %v1911
  %2096 = vst.msk [vmem:[#allocation3 + $0x48] sm:$0xff] %vm2086, %v1913
  %2097 = vst.msk [vmem:[#allocation3 + $0x50] sm:$0xff] %vm2086, %v1915
  %2098 = vst.msk [vmem:[#allocation3 + $0x58] sm:$0xff] %vm2086, %v1917
  %2099 = vst.msk [vmem:[#allocation3 + $0x60] sm:$0xff] %vm2086, %v1919
  %2100 = vst.msk [vmem:[#allocation3 + $0x68] sm:$0xff] %vm2086, %v1921
  %2101 = vst.msk [vmem:[#allocation3 + $0x70] sm:$0xff] %vm2086, %v1923
  %2102 = vst.msk [vmem:[#allocation3 + $0x78] sm:$0xff] %vm2086, %v1925
  %2103 = vst.msk [vmem:[#allocation3 + $0x80] sm:$0xff] %vm2086, %v1927
  %2104 = vst.msk [vmem:[#allocation3 + $0x88] sm:$0xff] %vm2086, %v1929
  %2105 = vst.msk [vmem:[#allocation3 + $0x90] sm:$0xff] %vm2086, %v1931
  %2106 = vst.msk [vmem:[#allocation3 + $0x98] sm:$0xff] %vm2086, %v1933
  %2107 = vst.msk [vmem:[#allocation3 + $0xa0] sm:$0xff] %vm2086, %v1935
  %2108 = vst.msk [vmem:[#allocation3 + $0xa8] sm:$0xff] %vm2086, %v1937
  %2109 = vst.msk [vmem:[#allocation3 + $0xb0] sm:$0xff] %vm2086, %v1939
  %2110 = vst.msk [vmem:[#allocation3 + $0xb8] sm:$0xff] %vm2086, %v1941
  %2111 = vst.msk [vmem:[#allocation3 + $0xc0] sm:$0xff] %vm2086, %v1943
  %2112 = vst.msk [vmem:[#allocation3 + $0xc8] sm:$0xff] %vm2086, %v1945
  %2113 = vst.msk [vmem:[#allocation3 + $0xd0] sm:$0xff] %vm2086, %v1947
  %2114 = vst.msk [vmem:[#allocation3 + $0xd8] sm:$0xff] %vm2086, %v1949
  %2115 = vst.msk [vmem:[#allocation3 + $0xe0] sm:$0xff] %vm2086, %v1951
  %2116 = vst.msk [vmem:[#allocation3 + $0xe8] sm:$0xff] %vm2086, %v1953
  %2117 = vst.msk [vmem:[#allocation3 + $0xf0] sm:$0xff] %vm2086, %v1955
  %2118 = vst.msk [vmem:[#allocation3 + $0xf8] sm:$0xff] %vm2086, %v1957
  %2119 = vst.msk [vmem:[#allocation3 + $0x100] sm:$0xff] %vm2086, %v1959
  %2120 = vst.msk [vmem:[#allocation3 + $0x108] sm:$0xff] %vm2086, %v1961
  %2121 = vst.msk [vmem:[#allocation3 + $0x110] sm:$0xff] %vm2086, %v1963
  %2122 = vst.msk [vmem:[#allocation3 + $0x118] sm:$0xff] %vm2086, %v1965
  %2123 = vst.msk [vmem:[#allocation3 + $0x120] sm:$0xff] %vm2086, %v1967
  %2124 = vst.msk [vmem:[#allocation3 + $0x128] sm:$0xff] %vm2086, %v1969
  %2125 = vst.msk [vmem:[#allocation3 + $0x130] sm:$0xff] %vm2086, %v1971
  %2126 = vst.msk [vmem:[#allocation3 + $0x138] sm:$0xff] %vm2086, %v1973
  %2127 = vst.msk [vmem:[#allocation3 + $0x140] sm:$0xff] %vm2086, %v1975
  %2128 = vst.msk [vmem:[#allocation3 + $0x148] sm:$0xff] %vm2086, %v1977
  %2129 = vst.msk [vmem:[#allocation3 + $0x150] sm:$0xff] %vm2086, %v1979
  %2130 = vst.msk [vmem:[#allocation3 + $0x158] sm:$0xff] %vm2086, %v1981
  %2131 = vst.msk [vmem:[#allocation3 + $0x160] sm:$0xff] %vm2086, %v1983
  %2132 = vst.msk [vmem:[#allocation3 + $0x168] sm:$0xff] %vm2086, %v1985
  %2133 = vst.msk [vmem:[#allocation3 + $0x170] sm:$0xff] %vm2086, %v1987
  %2134 = vst.msk [vmem:[#allocation3 + $0x178] sm:$0xff] %vm2086, %v1989
  %2135 = vst.msk [vmem:[#allocation3 + $0x180] sm:$0xff] %vm2086, %v1991
  %2136 = vst.msk [vmem:[#allocation3 + $0x188] sm:$0xff] %vm2086, %v1993
  %2137 = vst.msk [vmem:[#allocation3 + $0x190] sm:$0xff] %vm2086, %v1995
  %2138 = vst.msk [vmem:[#allocation3 + $0x198] sm:$0xff] %vm2086, %v1997
  %2139 = vst.msk [vmem:[#allocation3 + $0x1a0] sm:$0xff] %vm2086, %v1999
  %2140 = vst.msk [vmem:[#allocation3 + $0x1a8] sm:$0xff] %vm2086, %v2001
  %2141 = vst.msk [vmem:[#allocation3 + $0x1b0] sm:$0xff] %vm2086, %v2003
  %2142 = vst.msk [vmem:[#allocation3 + $0x1b8] sm:$0xff] %vm2086, %v2005
  %2143 = vst.msk [vmem:[#allocation3 + $0x1c0] sm:$0xff] %vm2086, %v2007
  %2144 = vst.msk [vmem:[#allocation3 + $0x1c8] sm:$0xff] %vm2086, %v2009
  %2145 = vst.msk [vmem:[#allocation3 + $0x1d0] sm:$0xff] %vm2086, %v2011
  %2146 = vst.msk [vmem:[#allocation3 + $0x1d8] sm:$0xff] %vm2086, %v2013
  %2147 = vst.msk [vmem:[#allocation3 + $0x1e0] sm:$0xff] %vm2086, %v2015
  %2148 = vst.msk [vmem:[#allocation3 + $0x1e8] sm:$0xff] %vm2086, %v2017
  %2149 = vst.msk [vmem:[#allocation3 + $0x1f0] sm:$0xff] %vm2086, %v2019
  %2150 = vst.msk [vmem:[#allocation3 + $0x1f8] sm:$0xff] %vm2086, %v2021
  %2155 = vrot.lane.b32.xlu0 %v256, 24
  %v2156 = vpop.permute.xlu0 %2155
  %2157 = vrot.lane.b32.xlu0 %v257, 24
  %v2158 = vpop.permute.xlu0 %2157
  %2159 = vrot.lane.b32.xlu0 %v259, 24
  %v2160 = vpop.permute.xlu0 %2159
  %2161 = vrot.lane.b32.xlu0 %v260, 24
  %v2162 = vpop.permute.xlu0 %2161
  %2163 = vrot.lane.b32.xlu0 %v262, 24
  %v2164 = vpop.permute.xlu0 %2163
  %2165 = vrot.lane.b32.xlu0 %v263, 24
  %v2166 = vpop.permute.xlu0 %2165
  %2167 = vrot.lane.b32.xlu0 %v265, 24
  %v2168 = vpop.permute.xlu0 %2167
  %2169 = vrot.lane.b32.xlu0 %v266, 24
  %v2170 = vpop.permute.xlu0 %2169
  %2171 = vrot.lane.b32.xlu0 %v268, 24
  %v2172 = vpop.permute.xlu0 %2171
  %2173 = vrot.lane.b32.xlu0 %v269, 24
  %v2174 = vpop.permute.xlu0 %2173
  %2175 = vrot.lane.b32.xlu0 %v271, 24
  %v2176 = vpop.permute.xlu0 %2175
  %2177 = vrot.lane.b32.xlu0 %v272, 24
  %v2178 = vpop.permute.xlu0 %2177
  %2179 = vrot.lane.b32.xlu0 %v274, 24
  %v2180 = vpop.permute.xlu0 %2179
  %2181 = vrot.lane.b32.xlu0 %v275, 24
  %v2182 = vpop.permute.xlu0 %2181
  %2183 = vrot.lane.b32.xlu0 %v277, 24
  %v2184 = vpop.permute.xlu0 %2183
  %2185 = vrot.lane.b32.xlu0 %v278, 24
  %v2186 = vpop.permute.xlu0 %2185
  %2187 = vrot.lane.b32.xlu0 %v280, 24
  %v2188 = vpop.permute.xlu0 %2187
  %2189 = vrot.lane.b32.xlu0 %v281, 24
  %v2190 = vpop.permute.xlu0 %2189
  %2191 = vrot.lane.b32.xlu0 %v283, 24
  %v2192 = vpop.permute.xlu0 %2191
  %2193 = vrot.lane.b32.xlu0 %v284, 24
  %v2194 = vpop.permute.xlu0 %2193
  %2195 = vrot.lane.b32.xlu0 %v286, 24
  %v2196 = vpop.permute.xlu0 %2195
  %2197 = vrot.lane.b32.xlu0 %v287, 24
  %v2198 = vpop.permute.xlu0 %2197
  %2199 = vrot.lane.b32.xlu0 %v289, 24
  %v2200 = vpop.permute.xlu0 %2199
  %2201 = vrot.lane.b32.xlu0 %v290, 24
  %v2202 = vpop.permute.xlu0 %2201
  %2203 = vrot.lane.b32.xlu0 %v292, 24
  %v2204 = vpop.permute.xlu0 %2203
  %2205 = vrot.lane.b32.xlu0 %v293, 24
  %v2206 = vpop.permute.xlu0 %2205
  %2207 = vrot.lane.b32.xlu0 %v295, 24
  %v2208 = vpop.permute.xlu0 %2207
  %2209 = vrot.lane.b32.xlu0 %v296, 24
  %v2210 = vpop.permute.xlu0 %2209
  %2211 = vrot.lane.b32.xlu0 %v298, 24
  %v2212 = vpop.permute.xlu0 %2211
  %2213 = vrot.lane.b32.xlu0 %v299, 24
  %v2214 = vpop.permute.xlu0 %2213
  %2215 = vrot.lane.b32.xlu0 %v301, 24
  %v2216 = vpop.permute.xlu0 %2215
  %2217 = vrot.lane.b32.xlu0 %v302, 24
  %v2218 = vpop.permute.xlu0 %2217
  %2219 = vrot.lane.b32.xlu0 %v310, 24
  %v2220 = vpop.permute.xlu0 %2219
  %2221 = vrot.lane.b32.xlu0 %v311, 24
  %v2222 = vpop.permute.xlu0 %2221
  %2223 = vrot.lane.b32.xlu0 %v313, 24
  %v2224 = vpop.permute.xlu0 %2223
  %2225 = vrot.lane.b32.xlu0 %v314, 24
  %v2226 = vpop.permute.xlu0 %2225
  %2227 = vrot.lane.b32.xlu0 %v316, 24
  %v2228 = vpop.permute.xlu0 %2227
  %2229 = vrot.lane.b32.xlu0 %v317, 24
  %v2230 = vpop.permute.xlu0 %2229
  %2231 = vrot.lane.b32.xlu0 %v319, 24
  %v2232 = vpop.permute.xlu0 %2231
  %2233 = vrot.lane.b32.xlu0 %v320, 24
  %v2234 = vpop.permute.xlu0 %2233
  %2235 = vrot.lane.b32.xlu0 %v322, 24
  %v2236 = vpop.permute.xlu0 %2235
  %2237 = vrot.lane.b32.xlu0 %v323, 24
  %v2238 = vpop.permute.xlu0 %2237
  %2239 = vrot.lane.b32.xlu0 %v325, 24
  %v2240 = vpop.permute.xlu0 %2239
  %2241 = vrot.lane.b32.xlu0 %v326, 24
  %v2242 = vpop.permute.xlu0 %2241
  %2243 = vrot.lane.b32.xlu0 %v328, 24
  %v2244 = vpop.permute.xlu0 %2243
  %2245 = vrot.lane.b32.xlu0 %v329, 24
  %v2246 = vpop.permute.xlu0 %2245
  %2247 = vrot.lane.b32.xlu0 %v331, 24
  %v2248 = vpop.permute.xlu0 %2247
  %2249 = vrot.lane.b32.xlu0 %v332, 24
  %v2250 = vpop.permute.xlu0 %2249
  %2251 = vrot.lane.b32.xlu0 %v334, 24
  %v2252 = vpop.permute.xlu0 %2251
  %2253 = vrot.lane.b32.xlu0 %v335, 24
  %v2254 = vpop.permute.xlu0 %2253
  %2255 = vrot.lane.b32.xlu0 %v337, 24
  %v2256 = vpop.permute.xlu0 %2255
  %2257 = vrot.lane.b32.xlu0 %v338, 24
  %v2258 = vpop.permute.xlu0 %2257
  %2259 = vrot.lane.b32.xlu0 %v340, 24
  %v2260 = vpop.permute.xlu0 %2259
  %2261 = vrot.lane.b32.xlu0 %v341, 24
  %v2262 = vpop.permute.xlu0 %2261
  %2263 = vrot.lane.b32.xlu0 %v343, 24
  %v2264 = vpop.permute.xlu0 %2263
  %2265 = vrot.lane.b32.xlu0 %v344, 24
  %v2266 = vpop.permute.xlu0 %2265
  %2267 = vrot.lane.b32.xlu0 %v346, 24
  %v2268 = vpop.permute.xlu0 %2267
  %2269 = vrot.lane.b32.xlu0 %v347, 24
  %v2270 = vpop.permute.xlu0 %2269
  %2271 = vrot.lane.b32.xlu0 %v349, 24
  %v2272 = vpop.permute.xlu0 %2271
  %2273 = vrot.lane.b32.xlu0 %v350, 24
  %v2274 = vpop.permute.xlu0 %2273
  %2275 = vrot.lane.b32.xlu0 %v352, 24
  %v2276 = vpop.permute.xlu0 %2275
  %2277 = vrot.lane.b32.xlu0 %v353, 24
  %v2278 = vpop.permute.xlu0 %2277
  %2279 = vrot.lane.b32.xlu0 %v355, 24
  %v2280 = vpop.permute.xlu0 %2279
  %2281 = vrot.lane.b32.xlu0 %v356, 24
  %v2282 = vpop.permute.xlu0 %2281
  %vm2347 = vcmask 228544
  %2348 = vst.msk [vmem:[#allocation3] sm:$0xff] %vm2347, %v2156
  %2349 = vst.msk [vmem:[#allocation3 + $0x8] sm:$0xff] %vm2347, %v2158
  %2350 = vst.msk [vmem:[#allocation3 + $0x10] sm:$0xff] %vm2347, %v2160
  %2351 = vst.msk [vmem:[#allocation3 + $0x18] sm:$0xff] %vm2347, %v2162
  %2352 = vst.msk [vmem:[#allocation3 + $0x20] sm:$0xff] %vm2347, %v2164
  %2353 = vst.msk [vmem:[#allocation3 + $0x28] sm:$0xff] %vm2347, %v2166
  %2354 = vst.msk [vmem:[#allocation3 + $0x30] sm:$0xff] %vm2347, %v2168
  %2355 = vst.msk [vmem:[#allocation3 + $0x38] sm:$0xff] %vm2347, %v2170
  %2356 = vst.msk [vmem:[#allocation3 + $0x40] sm:$0xff] %vm2347, %v2172
  %2357 = vst.msk [vmem:[#allocation3 + $0x48] sm:$0xff] %vm2347, %v2174
  %2358 = vst.msk [vmem:[#allocation3 + $0x50] sm:$0xff] %vm2347, %v2176
  %2359 = vst.msk [vmem:[#allocation3 + $0x58] sm:$0xff] %vm2347, %v2178
  %2360 = vst.msk [vmem:[#allocation3 + $0x60] sm:$0xff] %vm2347, %v2180
  %2361 = vst.msk [vmem:[#allocation3 + $0x68] sm:$0xff] %vm2347, %v2182
  %2362 = vst.msk [vmem:[#allocation3 + $0x70] sm:$0xff] %vm2347, %v2184
  %2363 = vst.msk [vmem:[#allocation3 + $0x78] sm:$0xff] %vm2347, %v2186
  %2364 = vst.msk [vmem:[#allocation3 + $0x80] sm:$0xff] %vm2347, %v2188
  %2365 = vst.msk [vmem:[#allocation3 + $0x88] sm:$0xff] %vm2347, %v2190
  %2366 = vst.msk [vmem:[#allocation3 + $0x90] sm:$0xff] %vm2347, %v2192
  %2367 = vst.msk [vmem:[#allocation3 + $0x98] sm:$0xff] %vm2347, %v2194
  %2368 = vst.msk [vmem:[#allocation3 + $0xa0] sm:$0xff] %vm2347, %v2196
  %2369 = vst.msk [vmem:[#allocation3 + $0xa8] sm:$0xff] %vm2347, %v2198
  %2370 = vst.msk [vmem:[#allocation3 + $0xb0] sm:$0xff] %vm2347, %v2200
  %2371 = vst.msk [vmem:[#allocation3 + $0xb8] sm:$0xff] %vm2347, %v2202
  %2372 = vst.msk [vmem:[#allocation3 + $0xc0] sm:$0xff] %vm2347, %v2204
  %2373 = vst.msk [vmem:[#allocation3 + $0xc8] sm:$0xff] %vm2347, %v2206
  %2374 = vst.msk [vmem:[#allocation3 + $0xd0] sm:$0xff] %vm2347, %v2208
  %2375 = vst.msk [vmem:[#allocation3 + $0xd8] sm:$0xff] %vm2347, %v2210
  %2376 = vst.msk [vmem:[#allocation3 + $0xe0] sm:$0xff] %vm2347, %v2212
  %2377 = vst.msk [vmem:[#allocation3 + $0xe8] sm:$0xff] %vm2347, %v2214
  %2378 = vst.msk [vmem:[#allocation3 + $0xf0] sm:$0xff] %vm2347, %v2216
  %2379 = vst.msk [vmem:[#allocation3 + $0xf8] sm:$0xff] %vm2347, %v2218
  %2380 = vst.msk [vmem:[#allocation3 + $0x100] sm:$0xff] %vm2347, %v2220
  %2381 = vst.msk [vmem:[#allocation3 + $0x108] sm:$0xff] %vm2347, %v2222
  %2382 = vst.msk [vmem:[#allocation3 + $0x110] sm:$0xff] %vm2347, %v2224
  %2383 = vst.msk [vmem:[#allocation3 + $0x118] sm:$0xff] %vm2347, %v2226
  %2384 = vst.msk [vmem:[#allocation3 + $0x120] sm:$0xff] %vm2347, %v2228
  %2385 = vst.msk [vmem:[#allocation3 + $0x128] sm:$0xff] %vm2347, %v2230
  %2386 = vst.msk [vmem:[#allocation3 + $0x130] sm:$0xff] %vm2347, %v2232
  %2387 = vst.msk [vmem:[#allocation3 + $0x138] sm:$0xff] %vm2347, %v2234
  %2388 = vst.msk [vmem:[#allocation3 + $0x140] sm:$0xff] %vm2347, %v2236
  %2389 = vst.msk [vmem:[#allocation3 + $0x148] sm:$0xff] %vm2347, %v2238
  %2390 = vst.msk [vmem:[#allocation3 + $0x150] sm:$0xff] %vm2347, %v2240
  %2391 = vst.msk [vmem:[#allocation3 + $0x158] sm:$0xff] %vm2347, %v2242
  %2392 = vst.msk [vmem:[#allocation3 + $0x160] sm:$0xff] %vm2347, %v2244
  %2393 = vst.msk [vmem:[#allocation3 + $0x168] sm:$0xff] %vm2347, %v2246
  %2394 = vst.msk [vmem:[#allocation3 + $0x170] sm:$0xff] %vm2347, %v2248
  %2395 = vst.msk [vmem:[#allocation3 + $0x178] sm:$0xff] %vm2347, %v2250
  %2396 = vst.msk [vmem:[#allocation3 + $0x180] sm:$0xff] %vm2347, %v2252
  %2397 = vst.msk [vmem:[#allocation3 + $0x188] sm:$0xff] %vm2347, %v2254
  %2398 = vst.msk [vmem:[#allocation3 + $0x190] sm:$0xff] %vm2347, %v2256
  %2399 = vst.msk [vmem:[#allocation3 + $0x198] sm:$0xff] %vm2347, %v2258
  %2400 = vst.msk [vmem:[#allocation3 + $0x1a0] sm:$0xff] %vm2347, %v2260
  %2401 = vst.msk [vmem:[#allocation3 + $0x1a8] sm:$0xff] %vm2347, %v2262
  %2402 = vst.msk [vmem:[#allocation3 + $0x1b0] sm:$0xff] %vm2347, %v2264
  %2403 = vst.msk [vmem:[#allocation3 + $0x1b8] sm:$0xff] %vm2347, %v2266
  %2404 = vst.msk [vmem:[#allocation3 + $0x1c0] sm:$0xff] %vm2347, %v2268
  %2405 = vst.msk [vmem:[#allocation3 + $0x1c8] sm:$0xff] %vm2347, %v2270
  %2406 = vst.msk [vmem:[#allocation3 + $0x1d0] sm:$0xff] %vm2347, %v2272
  %2407 = vst.msk [vmem:[#allocation3 + $0x1d8] sm:$0xff] %vm2347, %v2274
  %2408 = vst.msk [vmem:[#allocation3 + $0x1e0] sm:$0xff] %vm2347, %v2276
  %2409 = vst.msk [vmem:[#allocation3 + $0x1e8] sm:$0xff] %vm2347, %v2278
  %2410 = vst.msk [vmem:[#allocation3 + $0x1f0] sm:$0xff] %vm2347, %v2280
  %2411 = vst.msk [vmem:[#allocation3 + $0x1f8] sm:$0xff] %vm2347, %v2282
  %v2414 = vrot.slane %v301, 1
  %v2415 = vrot.slane %v302, 1
  %v2416 = vsel %vm518, %v2414, %v2415
  %v2417 = vrot.slane %v303, 1
  %v2418 = vsel %vm518, %v2415, %v2417
  %v2419 = vrot.slane %v355, 1
  %v2420 = vrot.slane %v356, 1
  %v2421 = vsel %vm518, %v2419, %v2420
  %v2422 = vrot.slane %v357, 1
  %v2423 = vsel %vm518, %v2420, %v2422
  %2424 = vrot.lane.b32.xlu0 %v531, 28
  %v2425 = vpop.permute.xlu0 %2424
  %2426 = vrot.lane.b32.xlu0 %v533, 28
  %v2427 = vpop.permute.xlu0 %2426
  %2428 = vrot.lane.b32.xlu0 %v536, 28
  %v2429 = vpop.permute.xlu0 %2428
  %2430 = vrot.lane.b32.xlu0 %v538, 28
  %v2431 = vpop.permute.xlu0 %2430
  %2432 = vrot.lane.b32.xlu0 %v541, 28
  %v2433 = vpop.permute.xlu0 %2432
  %2434 = vrot.lane.b32.xlu0 %v543, 28
  %v2435 = vpop.permute.xlu0 %2434
  %2436 = vrot.lane.b32.xlu0 %v546, 28
  %v2437 = vpop.permute.xlu0 %2436
  %2438 = vrot.lane.b32.xlu0 %v548, 28
  %v2439 = vpop.permute.xlu0 %2438
  %2440 = vrot.lane.b32.xlu0 %v551, 28
  %v2441 = vpop.permute.xlu0 %2440
  %2442 = vrot.lane.b32.xlu0 %v553, 28
  %v2443 = vpop.permute.xlu0 %2442
  %2444 = vrot.lane.b32.xlu0 %v556, 28
  %v2445 = vpop.permute.xlu0 %2444
  %2446 = vrot.lane.b32.xlu0 %v558, 28
  %v2447 = vpop.permute.xlu0 %2446
  %2448 = vrot.lane.b32.xlu0 %v561, 28
  %v2449 = vpop.permute.xlu0 %2448
  %2450 = vrot.lane.b32.xlu0 %v563, 28
  %v2451 = vpop.permute.xlu0 %2450
  %2452 = vrot.lane.b32.xlu0 %v566, 28
  %v2453 = vpop.permute.xlu0 %2452
  %2454 = vrot.lane.b32.xlu0 %v568, 28
  %v2455 = vpop.permute.xlu0 %2454
  %2456 = vrot.lane.b32.xlu0 %v571, 28
  %v2457 = vpop.permute.xlu0 %2456
  %2458 = vrot.lane.b32.xlu0 %v573, 28
  %v2459 = vpop.permute.xlu0 %2458
  %2460 = vrot.lane.b32.xlu0 %v576, 28
  %v2461 = vpop.permute.xlu0 %2460
  %2462 = vrot.lane.b32.xlu0 %v578, 28
  %v2463 = vpop.permute.xlu0 %2462
  %2464 = vrot.lane.b32.xlu0 %v581, 28
  %v2465 = vpop.permute.xlu0 %2464
  %2466 = vrot.lane.b32.xlu0 %v583, 28
  %v2467 = vpop.permute.xlu0 %2466
  %2468 = vrot.lane.b32.xlu0 %v586, 28
  %v2469 = vpop.permute.xlu0 %2468
  %2470 = vrot.lane.b32.xlu0 %v588, 28
  %v2471 = vpop.permute.xlu0 %2470
  %2472 = vrot.lane.b32.xlu0 %v591, 28
  %v2473 = vpop.permute.xlu0 %2472
  %2474 = vrot.lane.b32.xlu0 %v593, 28
  %v2475 = vpop.permute.xlu0 %2474
  %2476 = vrot.lane.b32.xlu0 %v596, 28
  %v2477 = vpop.permute.xlu0 %2476
  %2478 = vrot.lane.b32.xlu0 %v598, 28
  %v2479 = vpop.permute.xlu0 %2478
  %2480 = vrot.lane.b32.xlu0 %v1619, 28
  %v2481 = vpop.permute.xlu0 %2480
  %2482 = vrot.lane.b32.xlu0 %v1621, 28
  %v2483 = vpop.permute.xlu0 %2482
  %2484 = vrot.lane.b32.xlu0 %v2416, 28
  %v2485 = vpop.permute.xlu0 %2484
  %2486 = vrot.lane.b32.xlu0 %v2418, 28
  %v2487 = vpop.permute.xlu0 %2486
  %2488 = vrot.lane.b32.xlu0 %v611, 28
  %v2489 = vpop.permute.xlu0 %2488
  %2490 = vrot.lane.b32.xlu0 %v613, 28
  %v2491 = vpop.permute.xlu0 %2490
  %2492 = vrot.lane.b32.xlu0 %v616, 28
  %v2493 = vpop.permute.xlu0 %2492
  %2494 = vrot.lane.b32.xlu0 %v618, 28
  %v2495 = vpop.permute.xlu0 %2494
  %2496 = vrot.lane.b32.xlu0 %v621, 28
  %v2497 = vpop.permute.xlu0 %2496
  %2498 = vrot.lane.b32.xlu0 %v623, 28
  %v2499 = vpop.permute.xlu0 %2498
  %2500 = vrot.lane.b32.xlu0 %v626, 28
  %v2501 = vpop.permute.xlu0 %2500
  %2502 = vrot.lane.b32.xlu0 %v628, 28
  %v2503 = vpop.permute.xlu0 %2502
  %2504 = vrot.lane.b32.xlu0 %v631, 28
  %v2505 = vpop.permute.xlu0 %2504
  %2506 = vrot.lane.b32.xlu0 %v633, 28
  %v2507 = vpop.permute.xlu0 %2506
  %2508 = vrot.lane.b32.xlu0 %v636, 28
  %v2509 = vpop.permute.xlu0 %2508
  %2510 = vrot.lane.b32.xlu0 %v638, 28
  %v2511 = vpop.permute.xlu0 %2510
  %2512 = vrot.lane.b32.xlu0 %v641, 28
  %v2513 = vpop.permute.xlu0 %2512
  %2514 = vrot.lane.b32.xlu0 %v643, 28
  %v2515 = vpop.permute.xlu0 %2514
  %2516 = vrot.lane.b32.xlu0 %v646, 28
  %v2517 = vpop.permute.xlu0 %2516
  %2518 = vrot.lane.b32.xlu0 %v648, 28
  %v2519 = vpop.permute.xlu0 %2518
  %2520 = vrot.lane.b32.xlu0 %v651, 28
  %v2521 = vpop.permute.xlu0 %2520
  %2522 = vrot.lane.b32.xlu0 %v653, 28
  %v2523 = vpop.permute.xlu0 %2522
  %2524 = vrot.lane.b32.xlu0 %v656, 28
  %v2525 = vpop.permute.xlu0 %2524
  %2526 = vrot.lane.b32.xlu0 %v658, 28
  %v2527 = vpop.permute.xlu0 %2526
  %2528 = vrot.lane.b32.xlu0 %v661, 28
  %v2529 = vpop.permute.xlu0 %2528
  %2530 = vrot.lane.b32.xlu0 %v663, 28
  %v2531 = vpop.permute.xlu0 %2530
  %2532 = vrot.lane.b32.xlu0 %v666, 28
  %v2533 = vpop.permute.xlu0 %2532
  %2534 = vrot.lane.b32.xlu0 %v668, 28
  %v2535 = vpop.permute.xlu0 %2534
  %2536 = vrot.lane.b32.xlu0 %v671, 28
  %v2537 = vpop.permute.xlu0 %2536
  %2538 = vrot.lane.b32.xlu0 %v673, 28
  %v2539 = vpop.permute.xlu0 %2538
  %2540 = vrot.lane.b32.xlu0 %v676, 28
  %v2541 = vpop.permute.xlu0 %2540
  %2542 = vrot.lane.b32.xlu0 %v678, 28
  %v2543 = vpop.permute.xlu0 %2542
  %2544 = vrot.lane.b32.xlu0 %v1624, 28
  %v2545 = vpop.permute.xlu0 %2544
  %2546 = vrot.lane.b32.xlu0 %v1626, 28
  %v2547 = vpop.permute.xlu0 %2546
  %2548 = vrot.lane.b32.xlu0 %v2421, 28
  %v2549 = vpop.permute.xlu0 %2548
  %2550 = vrot.lane.b32.xlu0 %v2423, 28
  %v2551 = vpop.permute.xlu0 %2550
  %vm2616 = vcmask 261344
  %2617 = vst.msk [vmem:[#allocation3] sm:$0xff] %vm2616, %v2425
  %2618 = vst.msk [vmem:[#allocation3 + $0x8] sm:$0xff] %vm2616, %v2427
  %2619 = vst.msk [vmem:[#allocation3 + $0x10] sm:$0xff] %vm2616, %v2429
  %2620 = vst.msk [vmem:[#allocation3 + $0x18] sm:$0xff] %vm2616, %v2431
  %2621 = vst.msk [vmem:[#allocation3 + $0x20] sm:$0xff] %vm2616, %v2433
  %2622 = vst.msk [vmem:[#allocation3 + $0x28] sm:$0xff] %vm2616, %v2435
  %2623 = vst.msk [vmem:[#allocation3 + $0x30] sm:$0xff] %vm2616, %v2437
  %2624 = vst.msk [vmem:[#allocation3 + $0x38] sm:$0xff] %vm2616, %v2439
  %2625 = vst.msk [vmem:[#allocation3 + $0x40] sm:$0xff] %vm2616, %v2441
  %2626 = vst.msk [vmem:[#allocation3 + $0x48] sm:$0xff] %vm2616, %v2443
  %2627 = vst.msk [vmem:[#allocation3 + $0x50] sm:$0xff] %vm2616, %v2445
  %2628 = vst.msk [vmem:[#allocation3 + $0x58] sm:$0xff] %vm2616, %v2447
  %2629 = vst.msk [vmem:[#allocation3 + $0x60] sm:$0xff] %vm2616, %v2449
  %2630 = vst.msk [vmem:[#allocation3 + $0x68] sm:$0xff] %vm2616, %v2451
  %2631 = vst.msk [vmem:[#allocation3 + $0x70] sm:$0xff] %vm2616, %v2453
  %2632 = vst.msk [vmem:[#allocation3 + $0x78] sm:$0xff] %vm2616, %v2455
  %2633 = vst.msk [vmem:[#allocation3 + $0x80] sm:$0xff] %vm2616, %v2457
  %2634 = vst.msk [vmem:[#allocation3 + $0x88] sm:$0xff] %vm2616, %v2459
  %2635 = vst.msk [vmem:[#allocation3 + $0x90] sm:$0xff] %vm2616, %v2461
  %2636 = vst.msk [vmem:[#allocation3 + $0x98] sm:$0xff] %vm2616, %v2463
  %2637 = vst.msk [vmem:[#allocation3 + $0xa0] sm:$0xff] %vm2616, %v2465
  %2638 = vst.msk [vmem:[#allocation3 + $0xa8] sm:$0xff] %vm2616, %v2467
  %2639 = vst.msk [vmem:[#allocation3 + $0xb0] sm:$0xff] %vm2616, %v2469
  %2640 = vst.msk [vmem:[#allocation3 + $0xb8] sm:$0xff] %vm2616, %v2471
  %2641 = vst.msk [vmem:[#allocation3 + $0xc0] sm:$0xff] %vm2616, %v2473
  %2642 = vst.msk [vmem:[#allocation3 + $0xc8] sm:$0xff] %vm2616, %v2475
  %2643 = vst.msk [vmem:[#allocation3 + $0xd0] sm:$0xff] %vm2616, %v2477
  %2644 = vst.msk [vmem:[#allocation3 + $0xd8] sm:$0xff] %vm2616, %v2479
  %2645 = vst.msk [vmem:[#allocation3 + $0xe0] sm:$0xff] %vm2616, %v2481
  %2646 = vst.msk [vmem:[#allocation3 + $0xe8] sm:$0xff] %vm2616, %v2483
  %2647 = vst.msk [vmem:[#allocation3 + $0xf0] sm:$0xff] %vm2616, %v2485
  %2648 = vst.msk [vmem:[#allocation3 + $0xf8] sm:$0xff] %vm2616, %v2487
  %2649 = vst.msk [vmem:[#allocation3 + $0x100] sm:$0xff] %vm2616, %v2489
  %2650 = vst.msk [vmem:[#allocation3 + $0x108] sm:$0xff] %vm2616, %v2491
  %2651 = vst.msk [vmem:[#allocation3 + $0x110] sm:$0xff] %vm2616, %v2493
  %2652 = vst.msk [vmem:[#allocation3 + $0x118] sm:$0xff] %vm2616, %v2495
  %2653 = vst.msk [vmem:[#allocation3 + $0x120] sm:$0xff] %vm2616, %v2497
  %2654 = vst.msk [vmem:[#allocation3 + $0x128] sm:$0xff] %vm2616, %v2499
  %2655 = vst.msk [vmem:[#allocation3 + $0x130] sm:$0xff] %vm2616, %v2501
  %2656 = vst.msk [vmem:[#allocation3 + $0x138] sm:$0xff] %vm2616, %v2503
  %2657 = vst.msk [vmem:[#allocation3 + $0x140] sm:$0xff] %vm2616, %v2505
  %2658 = vst.msk [vmem:[#allocation3 + $0x148] sm:$0xff] %vm2616, %v2507
  %2659 = vst.msk [vmem:[#allocation3 + $0x150] sm:$0xff] %vm2616, %v2509
  %2660 = vst.msk [vmem:[#allocation3 + $0x158] sm:$0xff] %vm2616, %v2511
  %2661 = vst.msk [vmem:[#allocation3 + $0x160] sm:$0xff] %vm2616, %v2513
  %2662 = vst.msk [vmem:[#allocation3 + $0x168] sm:$0xff] %vm2616, %v2515
  %2663 = vst.msk [vmem:[#allocation3 + $0x170] sm:$0xff] %vm2616, %v2517
  %2664 = vst.msk [vmem:[#allocation3 + $0x178] sm:$0xff] %vm2616, %v2519
  %2665 = vst.msk [vmem:[#allocation3 + $0x180] sm:$0xff] %vm2616, %v2521
  %2666 = vst.msk [vmem:[#allocation3 + $0x188] sm:$0xff] %vm2616, %v2523
  %2667 = vst.msk [vmem:[#allocation3 + $0x190] sm:$0xff] %vm2616, %v2525
  %2668 = vst.msk [vmem:[#allocation3 + $0x198] sm:$0xff] %vm2616, %v2527
  %2669 = vst.msk [vmem:[#allocation3 + $0x1a0] sm:$0xff] %vm2616, %v2529
  %2670 = vst.msk [vmem:[#allocation3 + $0x1a8] sm:$0xff] %vm2616, %v2531
  %2671 = vst.msk [vmem:[#allocation3 + $0x1b0] sm:$0xff] %vm2616, %v2533
  %2672 = vst.msk [vmem:[#allocation3 + $0x1b8] sm:$0xff] %vm2616, %v2535
  %2673 = vst.msk [vmem:[#allocation3 + $0x1c0] sm:$0xff] %vm2616, %v2537
  %2674 = vst.msk [vmem:[#allocation3 + $0x1c8] sm:$0xff] %vm2616, %v2539
  %2675 = vst.msk [vmem:[#allocation3 + $0x1d0] sm:$0xff] %vm2616, %v2541
  %2676 = vst.msk [vmem:[#allocation3 + $0x1d8] sm:$0xff] %vm2616, %v2543
  %2677 = vst.msk [vmem:[#allocation3 + $0x1e0] sm:$0xff] %vm2616, %v2545
  %2678 = vst.msk [vmem:[#allocation3 + $0x1e8] sm:$0xff] %vm2616, %v2547
  %2679 = vst.msk [vmem:[#allocation3 + $0x1f0] sm:$0xff] %vm2616, %v2549
  %2680 = vst.msk [vmem:[#allocation3 + $0x1f8] sm:$0xff] %vm2616, %v2551
  %v2681 = vrot.slane %v301, 2
  %v2682 = vrot.slane %v302, 2
  %v2683 = vsel %vm936, %v2681, %v2682
  %v2684 = vrot.slane %v303, 2
  %v2685 = vsel %vm936, %v2682, %v2684
  %v2686 = vrot.slane %v355, 2
  %v2687 = vrot.slane %v356, 2
  %v2688 = vsel %vm936, %v2686, %v2687
  %v2689 = vrot.slane %v357, 2
  %v2690 = vsel %vm936, %v2687, %v2689
  %2691 = vrot.lane.b32.xlu0 %v949, 32
  %v2692 = vpop.permute.xlu0 %2691
  %2693 = vrot.lane.b32.xlu0 %v951, 32
  %v2694 = vpop.permute.xlu0 %2693
  %2695 = vrot.lane.b32.xlu0 %v954, 32
  %v2696 = vpop.permute.xlu0 %2695
  %2697 = vrot.lane.b32.xlu0 %v956, 32
  %v2698 = vpop.permute.xlu0 %2697
  %2699 = vrot.lane.b32.xlu0 %v959, 32
  %v2700 = vpop.permute.xlu0 %2699
  %2701 = vrot.lane.b32.xlu0 %v961, 32
  %v2702 = vpop.permute.xlu0 %2701
  %2703 = vrot.lane.b32.xlu0 %v964, 32
  %v2704 = vpop.permute.xlu0 %2703
  %2705 = vrot.lane.b32.xlu0 %v966, 32
  %v2706 = vpop.permute.xlu0 %2705
  %2707 = vrot.lane.b32.xlu0 %v969, 32
  %v2708 = vpop.permute.xlu0 %2707
  %2709 = vrot.lane.b32.xlu0 %v971, 32
  %v2710 = vpop.permute.xlu0 %2709
  %2711 = vrot.lane.b32.xlu0 %v974, 32
  %v2712 = vpop.permute.xlu0 %2711
  %2713 = vrot.lane.b32.xlu0 %v976, 32
  %v2714 = vpop.permute.xlu0 %2713
  %2715 = vrot.lane.b32.xlu0 %v979, 32
  %v2716 = vpop.permute.xlu0 %2715
  %2717 = vrot.lane.b32.xlu0 %v981, 32
  %v2718 = vpop.permute.xlu0 %2717
  %2719 = vrot.lane.b32.xlu0 %v984, 32
  %v2720 = vpop.permute.xlu0 %2719
  %2721 = vrot.lane.b32.xlu0 %v986, 32
  %v2722 = vpop.permute.xlu0 %2721
  %2723 = vrot.lane.b32.xlu0 %v989, 32
  %v2724 = vpop.permute.xlu0 %2723
  %2725 = vrot.lane.b32.xlu0 %v991, 32
  %v2726 = vpop.permute.xlu0 %2725
  %2727 = vrot.lane.b32.xlu0 %v994, 32
  %v2728 = vpop.permute.xlu0 %2727
  %2729 = vrot.lane.b32.xlu0 %v996, 32
  %v2730 = vpop.permute.xlu0 %2729
  %2731 = vrot.lane.b32.xlu0 %v999, 32
  %v2732 = vpop.permute.xlu0 %2731
  %2733 = vrot.lane.b32.xlu0 %v1001, 32
  %v2734 = vpop.permute.xlu0 %2733
  %2735 = vrot.lane.b32.xlu0 %v1004, 32
  %v2736 = vpop.permute.xlu0 %2735
  %2737 = vrot.lane.b32.xlu0 %v1006, 32
  %v2738 = vpop.permute.xlu0 %2737
  %2739 = vrot.lane.b32.xlu0 %v1009, 32
  %v2740 = vpop.permute.xlu0 %2739
  %2741 = vrot.lane.b32.xlu0 %v1011, 32
  %v2742 = vpop.permute.xlu0 %2741
  %2743 = vrot.lane.b32.xlu0 %v1014, 32
  %v2744 = vpop.permute.xlu0 %2743
  %2745 = vrot.lane.b32.xlu0 %v1016, 32
  %v2746 = vpop.permute.xlu0 %2745
  %2747 = vrot.lane.b32.xlu0 %v1886, 32
  %v2748 = vpop.permute.xlu0 %2747
  %2749 = vrot.lane.b32.xlu0 %v1888, 32
  %v2750 = vpop.permute.xlu0 %2749
  %2751 = vrot.lane.b32.xlu0 %v2683, 32
  %v2752 = vpop.permute.xlu0 %2751
  %2753 = vrot.lane.b32.xlu0 %v2685, 32
  %v2754 = vpop.permute.xlu0 %2753
  %2755 = vrot.lane.b32.xlu0 %v1029, 32
  %v2756 = vpop.permute.xlu0 %2755
  %2757 = vrot.lane.b32.xlu0 %v1031, 32
  %v2758 = vpop.permute.xlu0 %2757
  %2759 = vrot.lane.b32.xlu0 %v1034, 32
  %v2760 = vpop.permute.xlu0 %2759
  %2761 = vrot.lane.b32.xlu0 %v1036, 32
  %v2762 = vpop.permute.xlu0 %2761
  %2763 = vrot.lane.b32.xlu0 %v1039, 32
  %v2764 = vpop.permute.xlu0 %2763
  %2765 = vrot.lane.b32.xlu0 %v1041, 32
  %v2766 = vpop.permute.xlu0 %2765
  %2767 = vrot.lane.b32.xlu0 %v1044, 32
  %v2768 = vpop.permute.xlu0 %2767
  %2769 = vrot.lane.b32.xlu0 %v1046, 32
  %v2770 = vpop.permute.xlu0 %2769
  %2771 = vrot.lane.b32.xlu0 %v1049, 32
  %v2772 = vpop.permute.xlu0 %2771
  %2773 = vrot.lane.b32.xlu0 %v1051, 32
  %v2774 = vpop.permute.xlu0 %2773
  %2775 = vrot.lane.b32.xlu0 %v1054, 32
  %v2776 = vpop.permute.xlu0 %2775
  %2777 = vrot.lane.b32.xlu0 %v1056, 32
  %v2778 = vpop.permute.xlu0 %2777
  %2779 = vrot.lane.b32.xlu0 %v1059, 32
  %v2780 = vpop.permute.xlu0 %2779
  %2781 = vrot.lane.b32.xlu0 %v1061, 32
  %v2782 = vpop.permute.xlu0 %2781
  %2783 = vrot.lane.b32.xlu0 %v1064, 32
  %v2784 = vpop.permute.xlu0 %2783
  %2785 = vrot.lane.b32.xlu0 %v1066, 32
  %v2786 = vpop.permute.xlu0 %2785
  %2787 = vrot.lane.b32.xlu0 %v1069, 32
  %v2788 = vpop.permute.xlu0 %2787
  %2789 = vrot.lane.b32.xlu0 %v1071, 32
  %v2790 = vpop.permute.xlu0 %2789
  %2791 = vrot.lane.b32.xlu0 %v1074, 32
  %v2792 = vpop.permute.xlu0 %2791
  %2793 = vrot.lane.b32.xlu0 %v1076, 32
  %v2794 = vpop.permute.xlu0 %2793
  %2795 = vrot.lane.b32.xlu0 %v1079, 32
  %v2796 = vpop.permute.xlu0 %2795
  %2797 = vrot.lane.b32.xlu0 %v1081, 32
  %v2798 = vpop.permute.xlu0 %2797
  %2799 = vrot.lane.b32.xlu0 %v1084, 32
  %v2800 = vpop.permute.xlu0 %2799
  %2801 = vrot.lane.b32.xlu0 %v1086, 32
  %v2802 = vpop.permute.xlu0 %2801
  %2803 = vrot.lane.b32.xlu0 %v1089, 32
  %v2804 = vpop.permute.xlu0 %2803
  %2805 = vrot.lane.b32.xlu0 %v1091, 32
  %v2806 = vpop.permute.xlu0 %2805
  %2807 = vrot.lane.b32.xlu0 %v1094, 32
  %v2808 = vpop.permute.xlu0 %2807
  %2809 = vrot.lane.b32.xlu0 %v1096, 32
  %v2810 = vpop.permute.xlu0 %2809
  %2811 = vrot.lane.b32.xlu0 %v1891, 32
  %v2812 = vpop.permute.xlu0 %2811
  %2813 = vrot.lane.b32.xlu0 %v1893, 32
  %v2814 = vpop.permute.xlu0 %2813
  %2815 = vrot.lane.b32.xlu0 %v2688, 32
  %v2816 = vpop.permute.xlu0 %2815
  %2817 = vrot.lane.b32.xlu0 %v2690, 32
  %v2818 = vpop.permute.xlu0 %2817
  %vm2883 = vcmask 294144
  %2884 = vst.msk [vmem:[#allocation3] sm:$0xff] %vm2883, %v2692
  %2885 = vst.msk [vmem:[#allocation3 + $0x8] sm:$0xff] %vm2883, %v2694
  %2886 = vst.msk [vmem:[#allocation3 + $0x10] sm:$0xff] %vm2883, %v2696
  %2887 = vst.msk [vmem:[#allocation3 + $0x18] sm:$0xff] %vm2883, %v2698
  %2888 = vst.msk [vmem:[#allocation3 + $0x20] sm:$0xff] %vm2883, %v2700
  %2889 = vst.msk [vmem:[#allocation3 + $0x28] sm:$0xff] %vm2883, %v2702
  %2890 = vst.msk [vmem:[#allocation3 + $0x30] sm:$0xff] %vm2883, %v2704
  %2891 = vst.msk [vmem:[#allocation3 + $0x38] sm:$0xff] %vm2883, %v2706
  %2892 = vst.msk [vmem:[#allocation3 + $0x40] sm:$0xff] %vm2883, %v2708
  %2893 = vst.msk [vmem:[#allocation3 + $0x48] sm:$0xff] %vm2883, %v2710
  %2894 = vst.msk [vmem:[#allocation3 + $0x50] sm:$0xff] %vm2883, %v2712
  %2895 = vst.msk [vmem:[#allocation3 + $0x58] sm:$0xff] %vm2883, %v2714
  %2896 = vst.msk [vmem:[#allocation3 + $0x60] sm:$0xff] %vm2883, %v2716
  %2897 = vst.msk [vmem:[#allocation3 + $0x68] sm:$0xff] %vm2883, %v2718
  %2898 = vst.msk [vmem:[#allocation3 + $0x70] sm:$0xff] %vm2883, %v2720
  %2899 = vst.msk [vmem:[#allocation3 + $0x78] sm:$0xff] %vm2883, %v2722
  %2900 = vst.msk [vmem:[#allocation3 + $0x80] sm:$0xff] %vm2883, %v2724
  %2901 = vst.msk [vmem:[#allocation3 + $0x88] sm:$0xff] %vm2883, %v2726
  %2902 = vst.msk [vmem:[#allocation3 + $0x90] sm:$0xff] %vm2883, %v2728
  %2903 = vst.msk [vmem:[#allocation3 + $0x98] sm:$0xff] %vm2883, %v2730
  %2904 = vst.msk [vmem:[#allocation3 + $0xa0] sm:$0xff] %vm2883, %v2732
  %2905 = vst.msk [vmem:[#allocation3 + $0xa8] sm:$0xff] %vm2883, %v2734
  %2906 = vst.msk [vmem:[#allocation3 + $0xb0] sm:$0xff] %vm2883, %v2736
  %2907 = vst.msk [vmem:[#allocation3 + $0xb8] sm:$0xff] %vm2883, %v2738
  %2908 = vst.msk [vmem:[#allocation3 + $0xc0] sm:$0xff] %vm2883, %v2740
  %2909 = vst.msk [vmem:[#allocation3 + $0xc8] sm:$0xff] %vm2883, %v2742
  %2910 = vst.msk [vmem:[#allocation3 + $0xd0] sm:$0xff] %vm2883, %v2744
  %2911 = vst.msk [vmem:[#allocation3 + $0xd8] sm:$0xff] %vm2883, %v2746
  %2912 = vst.msk [vmem:[#allocation3 + $0xe0] sm:$0xff] %vm2883, %v2748
  %2913 = vst.msk [vmem:[#allocation3 + $0xe8] sm:$0xff] %vm2883, %v2750
  %2914 = vst.msk [vmem:[#allocation3 + $0xf0] sm:$0xff] %vm2883, %v2752
  %2915 = vst.msk [vmem:[#allocation3 + $0xf8] sm:$0xff] %vm2883, %v2754
  %2916 = vst.msk [vmem:[#allocation3 + $0x100] sm:$0xff] %vm2883, %v2756
  %2917 = vst.msk [vmem:[#allocation3 + $0x108] sm:$0xff] %vm2883, %v2758
  %2918 = vst.msk [vmem:[#allocation3 + $0x110] sm:$0xff] %vm2883, %v2760
  %2919 = vst.msk [vmem:[#allocation3 + $0x118] sm:$0xff] %vm2883, %v2762
  %2920 = vst.msk [vmem:[#allocation3 + $0x120] sm:$0xff] %vm2883, %v2764
  %2921 = vst.msk [vmem:[#allocation3 + $0x128] sm:$0xff] %vm2883, %v2766
  %2922 = vst.msk [vmem:[#allocation3 + $0x130] sm:$0xff] %vm2883, %v2768
  %2923 = vst.msk [vmem:[#allocation3 + $0x138] sm:$0xff] %vm2883, %v2770
  %2924 = vst.msk [vmem:[#allocation3 + $0x140] sm:$0xff] %vm2883, %v2772
  %2925 = vst.msk [vmem:[#allocation3 + $0x148] sm:$0xff] %vm2883, %v2774
  %2926 = vst.msk [vmem:[#allocation3 + $0x150] sm:$0xff] %vm2883, %v2776
  %2927 = vst.msk [vmem:[#allocation3 + $0x158] sm:$0xff] %vm2883, %v2778
  %2928 = vst.msk [vmem:[#allocation3 + $0x160] sm:$0xff] %vm2883, %v2780
  %2929 = vst.msk [vmem:[#allocation3 + $0x168] sm:$0xff] %vm2883, %v2782
  %2930 = vst.msk [vmem:[#allocation3 + $0x170] sm:$0xff] %vm2883, %v2784
  %2931 = vst.msk [vmem:[#allocation3 + $0x178] sm:$0xff] %vm2883, %v2786
  %2932 = vst.msk [vmem:[#allocation3 + $0x180] sm:$0xff] %vm2883, %v2788
  %2933 = vst.msk [vmem:[#allocation3 + $0x188] sm:$0xff] %vm2883, %v2790
  %2934 = vst.msk [vmem:[#allocation3 + $0x190] sm:$0xff] %vm2883, %v2792
  %2935 = vst.msk [vmem:[#allocation3 + $0x198] sm:$0xff] %vm2883, %v2794
  %2936 = vst.msk [vmem:[#allocation3 + $0x1a0] sm:$0xff] %vm2883, %v2796
  %2937 = vst.msk [vmem:[#allocation3 + $0x1a8] sm:$0xff] %vm2883, %v2798
  %2938 = vst.msk [vmem:[#allocation3 + $0x1b0] sm:$0xff] %vm2883, %v2800
  %2939 = vst.msk [vmem:[#allocation3 + $0x1b8] sm:$0xff] %vm2883, %v2802
  %2940 = vst.msk [vmem:[#allocation3 + $0x1c0] sm:$0xff] %vm2883, %v2804
  %2941 = vst.msk [vmem:[#allocation3 + $0x1c8] sm:$0xff] %vm2883, %v2806
  %2942 = vst.msk [vmem:[#allocation3 + $0x1d0] sm:$0xff] %vm2883, %v2808
  %2943 = vst.msk [vmem:[#allocation3 + $0x1d8] sm:$0xff] %vm2883, %v2810
  %2944 = vst.msk [vmem:[#allocation3 + $0x1e0] sm:$0xff] %vm2883, %v2812
  %2945 = vst.msk [vmem:[#allocation3 + $0x1e8] sm:$0xff] %vm2883, %v2814
  %2946 = vst.msk [vmem:[#allocation3 + $0x1f0] sm:$0xff] %vm2883, %v2816
  %2947 = vst.msk [vmem:[#allocation3 + $0x1f8] sm:$0xff] %vm2883, %v2818
  %v2948 = vld [vmem:[#allocation3] sm:$0xff]
  %v2949 = vld [vmem:[#allocation3 + $0x8] sm:$0xff]
  %v2950 = vld [vmem:[#allocation3 + $0x10] sm:$0xff]
  %v2951 = vld [vmem:[#allocation3 + $0x18] sm:$0xff]
  %v2952 = vld [vmem:[#allocation3 + $0x20] sm:$0xff]
  %v2953 = vld [vmem:[#allocation3 + $0x28] sm:$0xff]
  %v2954 = vld [vmem:[#allocation3 + $0x30] sm:$0xff]
  %v2955 = vld [vmem:[#allocation3 + $0x38] sm:$0xff]
  %v2956 = vld [vmem:[#allocation3 + $0x40] sm:$0xff]
  %v2957 = vld [vmem:[#allocation3 + $0x48] sm:$0xff]
  %v2958 = vld [vmem:[#allocation3 + $0x50] sm:$0xff]
  %v2959 = vld [vmem:[#allocation3 + $0x58] sm:$0xff]
  %v2960 = vld [vmem:[#allocation3 + $0x60] sm:$0xff]
  %v2961 = vld [vmem:[#allocation3 + $0x68] sm:$0xff]
  %v2962 = vld [vmem:[#allocation3 + $0x70] sm:$0xff]
  %v2963 = vld [vmem:[#allocation3 + $0x78] sm:$0xff]
  %v2964 = vld [vmem:[#allocation3 + $0x80] sm:$0xff]
  %v2965 = vld [vmem:[#allocation3 + $0x88] sm:$0xff]
  %v2966 = vld [vmem:[#allocation3 + $0x90] sm:$0xff]
  %v2967 = vld [vmem:[#allocation3 + $0x98] sm:$0xff]
  %v2968 = vld [vmem:[#allocation3 + $0xa0] sm:$0xff]
  %v2969 = vld [vmem:[#allocation3 + $0xa8] sm:$0xff]
  %v2970 = vld [vmem:[#allocation3 + $0xb0] sm:$0xff]
  %v2971 = vld [vmem:[#allocation3 + $0xb8] sm:$0xff]
  %v2972 = vld [vmem:[#allocation3 + $0xc0] sm:$0xff]
  %v2973 = vld [vmem:[#allocation3 + $0xc8] sm:$0xff]
  %v2974 = vld [vmem:[#allocation3 + $0xd0] sm:$0xff]
  %v2975 = vld [vmem:[#allocation3 + $0xd8] sm:$0xff]
  %v2976 = vld [vmem:[#allocation3 + $0xe0] sm:$0xff]
  %v2977 = vld [vmem:[#allocation3 + $0xe8] sm:$0xff]
  %v2978 = vld [vmem:[#allocation3 + $0xf0] sm:$0xff]
  %v2979 = vld [vmem:[#allocation3 + $0xf8] sm:$0xff]
  %v2980 = vld [vmem:[#allocation3 + $0x100] sm:$0xff]
  %v2981 = vld [vmem:[#allocation3 + $0x108] sm:$0xff]
  %v2982 = vld [vmem:[#allocation3 + $0x110] sm:$0xff]
  %v2983 = vld [vmem:[#allocation3 + $0x118] sm:$0xff]
  %v2984 = vld [vmem:[#allocation3 + $0x120] sm:$0xff]
  %v2985 = vld [vmem:[#allocation3 + $0x128] sm:$0xff]
  %v2986 = vld [vmem:[#allocation3 + $0x130] sm:$0xff]
  %v2987 = vld [vmem:[#allocation3 + $0x138] sm:$0xff]
  %v2988 = vld [vmem:[#allocation3 + $0x140] sm:$0xff]
  %v2989 = vld [vmem:[#allocation3 + $0x148] sm:$0xff]
  %v2990 = vld [vmem:[#allocation3 + $0x150] sm:$0xff]
  %v2991 = vld [vmem:[#allocation3 + $0x158] sm:$0xff]
  %v2992 = vld [vmem:[#allocation3 + $0x160] sm:$0xff]
  %v2993 = vld [vmem:[#allocation3 + $0x168] sm:$0xff]
  %v2994 = vld [vmem:[#allocation3 + $0x170] sm:$0xff]
  %v2995 = vld [vmem:[#allocation3 + $0x178] sm:$0xff]
  %v2996 = vld [vmem:[#allocation3 + $0x180] sm:$0xff]
  %v2997 = vld [vmem:[#allocation3 + $0x188] sm:$0xff]
  %v2998 = vld [vmem:[#allocation3 + $0x190] sm:$0xff]
  %v2999 = vld [vmem:[#allocation3 + $0x198] sm:$0xff]
  %v3000 = vld [vmem:[#allocation3 + $0x1a0] sm:$0xff]
  %v3001 = vld [vmem:[#allocation3 + $0x1a8] sm:$0xff]
  %v3002 = vld [vmem:[#allocation3 + $0x1b0] sm:$0xff]
  %v3003 = vld [vmem:[#allocation3 + $0x1b8] sm:$0xff]
  %v3004 = vld [vmem:[#allocation3 + $0x1c0] sm:$0xff]
  %v3005 = vld [vmem:[#allocation3 + $0x1c8] sm:$0xff]
  %v3006 = vld [vmem:[#allocation3 + $0x1d0] sm:$0xff]
  %v3007 = vld [vmem:[#allocation3 + $0x1d8] sm:$0xff]
  %v3008 = vld [vmem:[#allocation3 + $0x1e0] sm:$0xff]
  %v3009 = vld [vmem:[#allocation3 + $0x1e8] sm:$0xff]
  %v3010 = vld [vmem:[#allocation3 + $0x1f0] sm:$0xff]
  %v3011 = vld [vmem:[#allocation3 + $0x1f8] sm:$0xff]
  %v3012 = vld [vmem:[%s1] sm:$0xff]
  %v3013 = vld [vmem:[%s1 + $0x8] sm:$0xff]
  %v3014 = vld [vmem:[%s1 + $0x10] sm:$0xff]
  %v3015 = vld [vmem:[%s1 + $0x18] sm:$0xff]
  %v3016 = vld [vmem:[%s1 + $0x20] sm:$0xf]
  %vm3017 = vcmask 293888
  %v3019 = vsel %vm3017, %v2948, 0
  %v3022 = vsel %vm3017, %v2949, 0
  %v3025 = vsel %vm3017, %v2950, 0
  %v3028 = vsel %vm3017, %v2951, 0
  %v3031 = vsel %vm3017, %v2952, 0
  %v3034 = vsel %vm3017, %v2953, 0
  %v3037 = vsel %vm3017, %v2954, 0
  %v3040 = vsel %vm3017, %v2955, 0
  %v3043 = vsel %vm3017, %v2956, 0
  %v3046 = vsel %vm3017, %v2957, 0
  %v3049 = vsel %vm3017, %v2958, 0
  %v3052 = vsel %vm3017, %v2959, 0
  %v3055 = vsel %vm3017, %v2960, 0
  %v3058 = vsel %vm3017, %v2961, 0
  %v3061 = vsel %vm3017, %v2962, 0
  %v3064 = vsel %vm3017, %v2963, 0
  %v3067 = vsel %vm3017, %v2964, 0
  %v3070 = vsel %vm3017, %v2965, 0
  %v3073 = vsel %vm3017, %v2966, 0
  %v3076 = vsel %vm3017, %v2967, 0
  %v3079 = vsel %vm3017, %v2968, 0
  %v3082 = vsel %vm3017, %v2969, 0
  %v3085 = vsel %vm3017, %v2970, 0
  %v3088 = vsel %vm3017, %v2971, 0
  %v3091 = vsel %vm3017, %v2972, 0
  %v3094 = vsel %vm3017, %v2973, 0
  %v3097 = vsel %vm3017, %v2974, 0
  %v3100 = vsel %vm3017, %v2975, 0
  %v3103 = vsel %vm3017, %v2976, 0
  %v3106 = vsel %vm3017, %v2977, 0
  %v3109 = vsel %vm3017, %v2978, 0
  %v3112 = vsel %vm3017, %v2979, 0
  %v3115 = vsel %vm3017, %v2980, 0
  %v3118 = vsel %vm3017, %v2981, 0
  %v3121 = vsel %vm3017, %v2982, 0
  %v3124 = vsel %vm3017, %v2983, 0
  %v3127 = vsel %vm3017, %v2984, 0
  %v3130 = vsel %vm3017, %v2985, 0
  %v3133 = vsel %vm3017, %v2986, 0
  %v3136 = vsel %vm3017, %v2987, 0
  %v3139 = vsel %vm3017, %v2988, 0
  %v3142 = vsel %vm3017, %v2989, 0
  %v3145 = vsel %vm3017, %v2990, 0
  %v3148 = vsel %vm3017, %v2991, 0
  %v3151 = vsel %vm3017, %v2992, 0
  %v3154 = vsel %vm3017, %v2993, 0
  %v3157 = vsel %vm3017, %v2994, 0
  %v3160 = vsel %vm3017, %v2995, 0
  %v3163 = vsel %vm3017, %v2996, 0
  %v3166 = vsel %vm3017, %v2997, 0
  %v3169 = vsel %vm3017, %v2998, 0
  %v3172 = vsel %vm3017, %v2999, 0
  %v3175 = vsel %vm3017, %v3000, 0
  %v3178 = vsel %vm3017, %v3001, 0
  %v3181 = vsel %vm3017, %v3002, 0
  %v3184 = vsel %vm3017, %v3003, 0
  %v3187 = vsel %vm3017, %v3004, 0
  %v3190 = vsel %vm3017, %v3005, 0
  %v3193 = vsel %vm3017, %v3006, 0
  %v3196 = vsel %vm3017, %v3007, 0
  %v3199 = vsel %vm3017, %v3008, 0
  %v3202 = vsel %vm3017, %v3009, 0
  %v3205 = vsel %vm3017, %v3010, 0
  %v3208 = vsel %vm3017, %v3011, 0
  %vm3210 = vcmask 1043456
  %v3212 = vsel %vm3210, %v3016, 0
  %3214 = vmatpush.msra.mxu0 0.0
  %3215 = vmatpush.msra.mxu0 0.0
  %3216 = vmatpush.msra.mxu0 0.0
  %3217 = vmatpush.msra.mxu0 0.0
  %3218 = vmatpush.msra.mxu0 0.0
  %3219 = vmatpush.msra.mxu0 0.0
  %3220 = vmatpush.msra.mxu0 0.0
  %3221 = vmatpush.msra.mxu0 0.0
  %3222 = vmatpush.msra.mxu0 0.0
  %3223 = vmatpush.msra.mxu0 0.0
  %3224 = vmatpush.msra.mxu0 0.0
  %v3225 = vand.u32 %v3212, 4294901760
  %3226 = vmatpush.msra.mxu0 %v3225
  %v3227 = vand.u32 %v3015, 4294901760
  %3228 = vmatpush.msra.mxu0 %v3227
  %v3229 = vand.u32 %v3014, 4294901760
  %3230 = vmatpush.msra.mxu0 %v3229
  %v3231 = vand.u32 %v3013, 4294901760
  %3232 = vmatpush.msra.mxu0 %v3231
  %v3233 = vand.u32 %v3012, 4294901760
  %3234 = vmatpush.msra.mxu0 %v3233
  %v3235 = vand.u32 %v3019, 4294901760
  %v3236 = vsub.f32 %v3019, %v3235
  %v3237 = vand.u32 %v3236, 4294901760
  %v3238 = vsub.f32 %v3236, %v3237
  %v3239 = vand.u32 %v3238, 4294901760
  %3240 = vmatmul.f32.gmra.mxu0 %v3239
  %v3241 = vpop.f32.mrf.mxu0
  %v3242 = vadd.f32 0.0, %v3241
  %v3243 = vand.u32 %v3022, 4294901760
  %v3244 = vsub.f32 %v3022, %v3243
  %v3245 = vand.u32 %v3244, 4294901760
  %v3246 = vsub.f32 %v3244, %v3245
  %v3247 = vand.u32 %v3246, 4294901760
  %3248 = vmatmul.f32.gmra.mxu0 %v3247
  %v3249 = vpop.f32.mrf.mxu0
  %v3250 = vadd.f32 0.0, %v3249
  %v3251 = vand.u32 %v3025, 4294901760
  %v3252 = vsub.f32 %v3025, %v3251
  %v3253 = vand.u32 %v3252, 4294901760
  %v3254 = vsub.f32 %v3252, %v3253
  %v3255 = vand.u32 %v3254, 4294901760
  %3256 = vmatmul.f32.gmra.mxu0 %v3255
  %v3257 = vpop.f32.mrf.mxu0
  %v3258 = vadd.f32 0.0, %v3257
  %v3259 = vand.u32 %v3028, 4294901760
  %v3260 = vsub.f32 %v3028, %v3259
  %v3261 = vand.u32 %v3260, 4294901760
  %v3262 = vsub.f32 %v3260, %v3261
  %v3263 = vand.u32 %v3262, 4294901760
  %3264 = vmatmul.f32.gmra.mxu0 %v3263
  %v3265 = vpop.f32.mrf.mxu0
  %v3266 = vadd.f32 0.0, %v3265
  %v3267 = vand.u32 %v3031, 4294901760
  %v3268 = vsub.f32 %v3031, %v3267
  %v3269 = vand.u32 %v3268, 4294901760
  %v3270 = vsub.f32 %v3268, %v3269
  %v3271 = vand.u32 %v3270, 4294901760
  %3272 = vmatmul.f32.gmra.mxu0 %v3271
  %v3273 = vpop.f32.mrf.mxu0
  %v3274 = vadd.f32 0.0, %v3273
  %v3275 = vand.u32 %v3034, 4294901760
  %v3276 = vsub.f32 %v3034, %v3275
  %v3277 = vand.u32 %v3276, 4294901760
  %v3278 = vsub.f32 %v3276, %v3277
  %v3279 = vand.u32 %v3278, 4294901760
  %3280 = vmatmul.f32.gmra.mxu0 %v3279
  %v3281 = vpop.f32.mrf.mxu0
  %v3282 = vadd.f32 0.0, %v3281
  %v3283 = vand.u32 %v3037, 4294901760
  %v3284 = vsub.f32 %v3037, %v3283
  %v3285 = vand.u32 %v3284, 4294901760
  %v3286 = vsub.f32 %v3284, %v3285
  %v3287 = vand.u32 %v3286, 4294901760
  %3288 = vmatmul.f32.gmra.mxu0 %v3287
  %v3289 = vpop.f32.mrf.mxu0
  %v3290 = vadd.f32 0.0, %v3289
  %v3291 = vand.u32 %v3040, 4294901760
  %v3292 = vsub.f32 %v3040, %v3291
  %v3293 = vand.u32 %v3292, 4294901760
  %v3294 = vsub.f32 %v3292, %v3293
  %v3295 = vand.u32 %v3294, 4294901760
  %3296 = vmatmul.f32.gmra.mxu0 %v3295
  %v3297 = vpop.f32.mrf.mxu0
  %v3298 = vadd.f32 0.0, %v3297
  %v3299 = vand.u32 %v3043, 4294901760
  %v3300 = vsub.f32 %v3043, %v3299
  %v3301 = vand.u32 %v3300, 4294901760
  %v3302 = vsub.f32 %v3300, %v3301
  %v3303 = vand.u32 %v3302, 4294901760
  %3304 = vmatmul.f32.gmra.mxu0 %v3303
  %v3305 = vpop.f32.mrf.mxu0
  %v3306 = vadd.f32 0.0, %v3305
  %v3307 = vand.u32 %v3046, 4294901760
  %v3308 = vsub.f32 %v3046, %v3307
  %v3309 = vand.u32 %v3308, 4294901760
  %v3310 = vsub.f32 %v3308, %v3309
  %v3311 = vand.u32 %v3310, 4294901760
  %3312 = vmatmul.f32.gmra.mxu0 %v3311
  %v3313 = vpop.f32.mrf.mxu0
  %v3314 = vadd.f32 0.0, %v3313
  %v3315 = vand.u32 %v3049, 4294901760
  %v3316 = vsub.f32 %v3049, %v3315
  %v3317 = vand.u32 %v3316, 4294901760
  %v3318 = vsub.f32 %v3316, %v3317
  %v3319 = vand.u32 %v3318, 4294901760
  %3320 = vmatmul.f32.gmra.mxu0 %v3319
  %v3321 = vpop.f32.mrf.mxu0
  %v3322 = vadd.f32 0.0, %v3321
  %v3323 = vand.u32 %v3052, 4294901760
  %v3324 = vsub.f32 %v3052, %v3323
  %v3325 = vand.u32 %v3324, 4294901760
  %v3326 = vsub.f32 %v3324, %v3325
  %v3327 = vand.u32 %v3326, 4294901760
  %3328 = vmatmul.f32.gmra.mxu0 %v3327
  %v3329 = vpop.f32.mrf.mxu0
  %v3330 = vadd.f32 0.0, %v3329
  %v3331 = vand.u32 %v3055, 4294901760
  %v3332 = vsub.f32 %v3055, %v3331
  %v3333 = vand.u32 %v3332, 4294901760
  %v3334 = vsub.f32 %v3332, %v3333
  %v3335 = vand.u32 %v3334, 4294901760
  %3336 = vmatmul.f32.gmra.mxu0 %v3335
  %v3337 = vpop.f32.mrf.mxu0
  %v3338 = vadd.f32 0.0, %v3337
  %v3339 = vand.u32 %v3058, 4294901760
  %v3340 = vsub.f32 %v3058, %v3339
  %v3341 = vand.u32 %v3340, 4294901760
  %v3342 = vsub.f32 %v3340, %v3341
  %v3343 = vand.u32 %v3342, 4294901760
  %3344 = vmatmul.f32.gmra.mxu0 %v3343
  %v3345 = vpop.f32.mrf.mxu0
  %v3346 = vadd.f32 0.0, %v3345
  %v3347 = vand.u32 %v3061, 4294901760
  %v3348 = vsub.f32 %v3061, %v3347
  %v3349 = vand.u32 %v3348, 4294901760
  %v3350 = vsub.f32 %v3348, %v3349
  %v3351 = vand.u32 %v3350, 4294901760
  %3352 = vmatmul.f32.gmra.mxu0 %v3351
  %v3353 = vpop.f32.mrf.mxu0
  %v3354 = vadd.f32 0.0, %v3353
  %v3355 = vand.u32 %v3064, 4294901760
  %v3356 = vsub.f32 %v3064, %v3355
  %v3357 = vand.u32 %v3356, 4294901760
  %v3358 = vsub.f32 %v3356, %v3357
  %v3359 = vand.u32 %v3358, 4294901760
  %3360 = vmatmul.f32.gmra.mxu0 %v3359
  %v3361 = vpop.f32.mrf.mxu0
  %v3362 = vadd.f32 0.0, %v3361
  %v3363 = vand.u32 %v3067, 4294901760
  %v3364 = vsub.f32 %v3067, %v3363
  %v3365 = vand.u32 %v3364, 4294901760
  %v3366 = vsub.f32 %v3364, %v3365
  %v3367 = vand.u32 %v3366, 4294901760
  %3368 = vmatmul.f32.gmra.mxu0 %v3367
  %v3369 = vpop.f32.mrf.mxu0
  %v3370 = vadd.f32 0.0, %v3369
  %v3371 = vand.u32 %v3070, 4294901760
  %v3372 = vsub.f32 %v3070, %v3371
  %v3373 = vand.u32 %v3372, 4294901760
  %v3374 = vsub.f32 %v3372, %v3373
  %v3375 = vand.u32 %v3374, 4294901760
  %3376 = vmatmul.f32.gmra.mxu0 %v3375
  %v3377 = vpop.f32.mrf.mxu0
  %v3378 = vadd.f32 0.0, %v3377
  %v3379 = vand.u32 %v3073, 4294901760
  %v3380 = vsub.f32 %v3073, %v3379
  %v3381 = vand.u32 %v3380, 4294901760
  %v3382 = vsub.f32 %v3380, %v3381
  %v3383 = vand.u32 %v3382, 4294901760
  %3384 = vmatmul.f32.gmra.mxu0 %v3383
  %v3385 = vpop.f32.mrf.mxu0
  %v3386 = vadd.f32 0.0, %v3385
  %v3387 = vand.u32 %v3076, 4294901760
  %v3388 = vsub.f32 %v3076, %v3387
  %v3389 = vand.u32 %v3388, 4294901760
  %v3390 = vsub.f32 %v3388, %v3389
  %v3391 = vand.u32 %v3390, 4294901760
  %3392 = vmatmul.f32.gmra.mxu0 %v3391
  %v3393 = vpop.f32.mrf.mxu0
  %v3394 = vadd.f32 0.0, %v3393
  %v3395 = vand.u32 %v3079, 4294901760
  %v3396 = vsub.f32 %v3079, %v3395
  %v3397 = vand.u32 %v3396, 4294901760
  %v3398 = vsub.f32 %v3396, %v3397
  %v3399 = vand.u32 %v3398, 4294901760
  %3400 = vmatmul.f32.gmra.mxu0 %v3399
  %v3401 = vpop.f32.mrf.mxu0
  %v3402 = vadd.f32 0.0, %v3401
  %v3403 = vand.u32 %v3082, 4294901760
  %v3404 = vsub.f32 %v3082, %v3403
  %v3405 = vand.u32 %v3404, 4294901760
  %v3406 = vsub.f32 %v3404, %v3405
  %v3407 = vand.u32 %v3406, 4294901760
  %3408 = vmatmul.f32.gmra.mxu0 %v3407
  %v3409 = vpop.f32.mrf.mxu0
  %v3410 = vadd.f32 0.0, %v3409
  %v3411 = vand.u32 %v3085, 4294901760
  %v3412 = vsub.f32 %v3085, %v3411
  %v3413 = vand.u32 %v3412, 4294901760
  %v3414 = vsub.f32 %v3412, %v3413
  %v3415 = vand.u32 %v3414, 4294901760
  %3416 = vmatmul.f32.gmra.mxu0 %v3415
  %v3417 = vpop.f32.mrf.mxu0
  %v3418 = vadd.f32 0.0, %v3417
  %v3419 = vand.u32 %v3088, 4294901760
  %v3420 = vsub.f32 %v3088, %v3419
  %v3421 = vand.u32 %v3420, 4294901760
  %v3422 = vsub.f32 %v3420, %v3421
  %v3423 = vand.u32 %v3422, 4294901760
  %3424 = vmatmul.f32.gmra.mxu0 %v3423
  %v3425 = vpop.f32.mrf.mxu0
  %v3426 = vadd.f32 0.0, %v3425
  %v3427 = vand.u32 %v3091, 4294901760
  %v3428 = vsub.f32 %v3091, %v3427
  %v3429 = vand.u32 %v3428, 4294901760
  %v3430 = vsub.f32 %v3428, %v3429
  %v3431 = vand.u32 %v3430, 4294901760
  %3432 = vmatmul.f32.gmra.mxu0 %v3431
  %v3433 = vpop.f32.mrf.mxu0
  %v3434 = vadd.f32 0.0, %v3433
  %v3435 = vand.u32 %v3094, 4294901760
  %v3436 = vsub.f32 %v3094, %v3435
  %v3437 = vand.u32 %v3436, 4294901760
  %v3438 = vsub.f32 %v3436, %v3437
  %v3439 = vand.u32 %v3438, 4294901760
  %3440 = vmatmul.f32.gmra.mxu0 %v3439
  %v3441 = vpop.f32.mrf.mxu0
  %v3442 = vadd.f32 0.0, %v3441
  %v3443 = vand.u32 %v3097, 4294901760
  %v3444 = vsub.f32 %v3097, %v3443
  %v3445 = vand.u32 %v3444, 4294901760
  %v3446 = vsub.f32 %v3444, %v3445
  %v3447 = vand.u32 %v3446, 4294901760
  %3448 = vmatmul.f32.gmra.mxu0 %v3447
  %v3449 = vpop.f32.mrf.mxu0
  %v3450 = vadd.f32 0.0, %v3449
  %v3451 = vand.u32 %v3100, 4294901760
  %v3452 = vsub.f32 %v3100, %v3451
  %v3453 = vand.u32 %v3452, 4294901760
  %v3454 = vsub.f32 %v3452, %v3453
  %v3455 = vand.u32 %v3454, 4294901760
  %3456 = vmatmul.f32.gmra.mxu0 %v3455
  %v3457 = vpop.f32.mrf.mxu0
  %v3458 = vadd.f32 0.0, %v3457
  %v3459 = vand.u32 %v3103, 4294901760
  %v3460 = vsub.f32 %v3103, %v3459
  %v3461 = vand.u32 %v3460, 4294901760
  %v3462 = vsub.f32 %v3460, %v3461
  %v3463 = vand.u32 %v3462, 4294901760
  %3464 = vmatmul.f32.gmra.mxu0 %v3463
  %v3465 = vpop.f32.mrf.mxu0
  %v3466 = vadd.f32 0.0, %v3465
  %v3467 = vand.u32 %v3106, 4294901760
  %v3468 = vsub.f32 %v3106, %v3467
  %v3469 = vand.u32 %v3468, 4294901760
  %v3470 = vsub.f32 %v3468, %v3469
  %v3471 = vand.u32 %v3470, 4294901760
  %3472 = vmatmul.f32.gmra.mxu0 %v3471
  %v3473 = vpop.f32.mrf.mxu0
  %v3474 = vadd.f32 0.0, %v3473
  %v3475 = vand.u32 %v3109, 4294901760
  %v3476 = vsub.f32 %v3109, %v3475
  %v3477 = vand.u32 %v3476, 4294901760
  %v3478 = vsub.f32 %v3476, %v3477
  %v3479 = vand.u32 %v3478, 4294901760
  %3480 = vmatmul.f32.gmra.mxu0 %v3479
  %v3481 = vpop.f32.mrf.mxu0
  %v3482 = vadd.f32 0.0, %v3481
  %v3483 = vand.u32 %v3112, 4294901760
  %v3484 = vsub.f32 %v3112, %v3483
  %v3485 = vand.u32 %v3484, 4294901760
  %v3486 = vsub.f32 %v3484, %v3485
  %v3487 = vand.u32 %v3486, 4294901760
  %3488 = vmatmul.f32.gmra.mxu0 %v3487
  %v3489 = vpop.f32.mrf.mxu0
  %v3490 = vadd.f32 0.0, %v3489
  %v3491 = vand.u32 %v3115, 4294901760
  %v3492 = vsub.f32 %v3115, %v3491
  %v3493 = vand.u32 %v3492, 4294901760
  %v3494 = vsub.f32 %v3492, %v3493
  %v3495 = vand.u32 %v3494, 4294901760
  %3496 = vmatmul.f32.gmra.mxu0 %v3495
  %v3497 = vpop.f32.mrf.mxu0
  %v3498 = vadd.f32 0.0, %v3497
  %v3499 = vand.u32 %v3118, 4294901760
  %v3500 = vsub.f32 %v3118, %v3499
  %v3501 = vand.u32 %v3500, 4294901760
  %v3502 = vsub.f32 %v3500, %v3501
  %v3503 = vand.u32 %v3502, 4294901760
  %3504 = vmatmul.f32.gmra.mxu0 %v3503
  %v3505 = vpop.f32.mrf.mxu0
  %v3506 = vadd.f32 0.0, %v3505
  %v3507 = vand.u32 %v3121, 4294901760
  %v3508 = vsub.f32 %v3121, %v3507
  %v3509 = vand.u32 %v3508, 4294901760
  %v3510 = vsub.f32 %v3508, %v3509
  %v3511 = vand.u32 %v3510, 4294901760
  %3512 = vmatmul.f32.gmra.mxu0 %v3511
  %v3513 = vpop.f32.mrf.mxu0
  %v3514 = vadd.f32 0.0, %v3513
  %v3515 = vand.u32 %v3124, 4294901760
  %v3516 = vsub.f32 %v3124, %v3515
  %v3517 = vand.u32 %v3516, 4294901760
  %v3518 = vsub.f32 %v3516, %v3517
  %v3519 = vand.u32 %v3518, 4294901760
  %3520 = vmatmul.f32.gmra.mxu0 %v3519
  %v3521 = vpop.f32.mrf.mxu0
  %v3522 = vadd.f32 0.0, %v3521
  %v3523 = vand.u32 %v3127, 4294901760
  %v3524 = vsub.f32 %v3127, %v3523
  %v3525 = vand.u32 %v3524, 4294901760
  %v3526 = vsub.f32 %v3524, %v3525
  %v3527 = vand.u32 %v3526, 4294901760
  %3528 = vmatmul.f32.gmra.mxu0 %v3527
  %v3529 = vpop.f32.mrf.mxu0
  %v3530 = vadd.f32 0.0, %v3529
  %v3531 = vand.u32 %v3130, 4294901760
  %v3532 = vsub.f32 %v3130, %v3531
  %v3533 = vand.u32 %v3532, 4294901760
  %v3534 = vsub.f32 %v3532, %v3533
  %v3535 = vand.u32 %v3534, 4294901760
  %3536 = vmatmul.f32.gmra.mxu0 %v3535
  %v3537 = vpop.f32.mrf.mxu0
  %v3538 = vadd.f32 0.0, %v3537
  %v3539 = vand.u32 %v3133, 4294901760
  %v3540 = vsub.f32 %v3133, %v3539
  %v3541 = vand.u32 %v3540, 4294901760
  %v3542 = vsub.f32 %v3540, %v3541
  %v3543 = vand.u32 %v3542, 4294901760
  %3544 = vmatmul.f32.gmra.mxu0 %v3543
  %v3545 = vpop.f32.mrf.mxu0
  %v3546 = vadd.f32 0.0, %v3545
  %v3547 = vand.u32 %v3136, 4294901760
  %v3548 = vsub.f32 %v3136, %v3547
  %v3549 = vand.u32 %v3548, 4294901760
  %v3550 = vsub.f32 %v3548, %v3549
  %v3551 = vand.u32 %v3550, 4294901760
  %3552 = vmatmul.f32.gmra.mxu0 %v3551
  %v3553 = vpop.f32.mrf.mxu0
  %v3554 = vadd.f32 0.0, %v3553
  %v3555 = vand.u32 %v3139, 4294901760
  %v3556 = vsub.f32 %v3139, %v3555
  %v3557 = vand.u32 %v3556, 4294901760
  %v3558 = vsub.f32 %v3556, %v3557
  %v3559 = vand.u32 %v3558, 4294901760
  %3560 = vmatmul.f32.gmra.mxu0 %v3559
  %v3561 = vpop.f32.mrf.mxu0
  %v3562 = vadd.f32 0.0, %v3561
  %v3563 = vand.u32 %v3142, 4294901760
  %v3564 = vsub.f32 %v3142, %v3563
  %v3565 = vand.u32 %v3564, 4294901760
  %v3566 = vsub.f32 %v3564, %v3565
  %v3567 = vand.u32 %v3566, 4294901760
  %3568 = vmatmul.f32.gmra.mxu0 %v3567
  %v3569 = vpop.f32.mrf.mxu0
  %v3570 = vadd.f32 0.0, %v3569
  %v3571 = vand.u32 %v3145, 4294901760
  %v3572 = vsub.f32 %v3145, %v3571
  %v3573 = vand.u32 %v3572, 4294901760
  %v3574 = vsub.f32 %v3572, %v3573
  %v3575 = vand.u32 %v3574, 4294901760
  %3576 = vmatmul.f32.gmra.mxu0 %v3575
  %v3577 = vpop.f32.mrf.mxu0
  %v3578 = vadd.f32 0.0, %v3577
  %v3579 = vand.u32 %v3148, 4294901760
  %v3580 = vsub.f32 %v3148, %v3579
  %v3581 = vand.u32 %v3580, 4294901760
  %v3582 = vsub.f32 %v3580, %v3581
  %v3583 = vand.u32 %v3582, 4294901760
  %3584 = vmatmul.f32.gmra.mxu0 %v3583
  %v3585 = vpop.f32.mrf.mxu0
  %v3586 = vadd.f32 0.0, %v3585
  %v3587 = vand.u32 %v3151, 4294901760
  %v3588 = vsub.f32 %v3151, %v3587
  %v3589 = vand.u32 %v3588, 4294901760
  %v3590 = vsub.f32 %v3588, %v3589
  %v3591 = vand.u32 %v3590, 4294901760
  %3592 = vmatmul.f32.gmra.mxu0 %v3591
  %v3593 = vpop.f32.mrf.mxu0
  %v3594 = vadd.f32 0.0, %v3593
  %v3595 = vand.u32 %v3154, 4294901760
  %v3596 = vsub.f32 %v3154, %v3595
  %v3597 = vand.u32 %v3596, 4294901760
  %v3598 = vsub.f32 %v3596, %v3597
  %v3599 = vand.u32 %v3598, 4294901760
  %3600 = vmatmul.f32.gmra.mxu0 %v3599
  %v3601 = vpop.f32.mrf.mxu0
  %v3602 = vadd.f32 0.0, %v3601
  %v3603 = vand.u32 %v3157, 4294901760
  %v3604 = vsub.f32 %v3157, %v3603
  %v3605 = vand.u32 %v3604, 4294901760
  %v3606 = vsub.f32 %v3604, %v3605
  %v3607 = vand.u32 %v3606, 4294901760
  %3608 = vmatmul.f32.gmra.mxu0 %v3607
  %v3609 = vpop.f32.mrf.mxu0
  %v3610 = vadd.f32 0.0, %v3609
  %v3611 = vand.u32 %v3160, 4294901760
  %v3612 = vsub.f32 %v3160, %v3611
  %v3613 = vand.u32 %v3612, 4294901760
  %v3614 = vsub.f32 %v3612, %v3613
  %v3615 = vand.u32 %v3614, 4294901760
  %3616 = vmatmul.f32.gmra.mxu0 %v3615
  %v3617 = vpop.f32.mrf.mxu0
  %v3618 = vadd.f32 0.0, %v3617
  %v3619 = vand.u32 %v3163, 4294901760
  %v3620 = vsub.f32 %v3163, %v3619
  %v3621 = vand.u32 %v3620, 4294901760
  %v3622 = vsub.f32 %v3620, %v3621
  %v3623 = vand.u32 %v3622, 4294901760
  %3624 = vmatmul.f32.gmra.mxu0 %v3623
  %v3625 = vpop.f32.mrf.mxu0
  %v3626 = vadd.f32 0.0, %v3625
  %v3627 = vand.u32 %v3166, 4294901760
  %v3628 = vsub.f32 %v3166, %v3627
  %v3629 = vand.u32 %v3628, 4294901760
  %v3630 = vsub.f32 %v3628, %v3629
  %v3631 = vand.u32 %v3630, 4294901760
  %3632 = vmatmul.f32.gmra.mxu0 %v3631
  %v3633 = vpop.f32.mrf.mxu0
  %v3634 = vadd.f32 0.0, %v3633
  %v3635 = vand.u32 %v3169, 4294901760
  %v3636 = vsub.f32 %v3169, %v3635
  %v3637 = vand.u32 %v3636, 4294901760
  %v3638 = vsub.f32 %v3636, %v3637
  %v3639 = vand.u32 %v3638, 4294901760
  %3640 = vmatmul.f32.gmra.mxu0 %v3639
  %v3641 = vpop.f32.mrf.mxu0
  %v3642 = vadd.f32 0.0, %v3641
  %v3643 = vand.u32 %v3172, 4294901760
  %v3644 = vsub.f32 %v3172, %v3643
  %v3645 = vand.u32 %v3644, 4294901760
  %v3646 = vsub.f32 %v3644, %v3645
  %v3647 = vand.u32 %v3646, 4294901760
  %3648 = vmatmul.f32.gmra.mxu0 %v3647
  %v3649 = vpop.f32.mrf.mxu0
  %v3650 = vadd.f32 0.0, %v3649
  %v3651 = vand.u32 %v3175, 4294901760
  %v3652 = vsub.f32 %v3175, %v3651
  %v3653 = vand.u32 %v3652, 4294901760
  %v3654 = vsub.f32 %v3652, %v3653
  %v3655 = vand.u32 %v3654, 4294901760
  %3656 = vmatmul.f32.gmra.mxu0 %v3655
  %v3657 = vpop.f32.mrf.mxu0
  %v3658 = vadd.f32 0.0, %v3657
  %v3659 = vand.u32 %v3178, 4294901760
  %v3660 = vsub.f32 %v3178, %v3659
  %v3661 = vand.u32 %v3660, 4294901760
  %v3662 = vsub.f32 %v3660, %v3661
  %v3663 = vand.u32 %v3662, 4294901760
  %3664 = vmatmul.f32.gmra.mxu0 %v3663
  %v3665 = vpop.f32.mrf.mxu0
  %v3666 = vadd.f32 0.0, %v3665
  %v3667 = vand.u32 %v3181, 4294901760
  %v3668 = vsub.f32 %v3181, %v3667
  %v3669 = vand.u32 %v3668, 4294901760
  %v3670 = vsub.f32 %v3668, %v3669
  %v3671 = vand.u32 %v3670, 4294901760
  %3672 = vmatmul.f32.gmra.mxu0 %v3671
  %v3673 = vpop.f32.mrf.mxu0
  %v3674 = vadd.f32 0.0, %v3673
  %v3675 = vand.u32 %v3184, 4294901760
  %v3676 = vsub.f32 %v3184, %v3675
  %v3677 = vand.u32 %v3676, 4294901760
  %v3678 = vsub.f32 %v3676, %v3677
  %v3679 = vand.u32 %v3678, 4294901760
  %3680 = vmatmul.f32.gmra.mxu0 %v3679
  %v3681 = vpop.f32.mrf.mxu0
  %v3682 = vadd.f32 0.0, %v3681
  %v3683 = vand.u32 %v3187, 4294901760
  %v3684 = vsub.f32 %v3187, %v3683
  %v3685 = vand.u32 %v3684, 4294901760
  %v3686 = vsub.f32 %v3684, %v3685
  %v3687 = vand.u32 %v3686, 4294901760
  %3688 = vmatmul.f32.gmra.mxu0 %v3687
  %v3689 = vpop.f32.mrf.mxu0
  %v3690 = vadd.f32 0.0, %v3689
  %v3691 = vand.u32 %v3190, 4294901760
  %v3692 = vsub.f32 %v3190, %v3691
  %v3693 = vand.u32 %v3692, 4294901760
  %v3694 = vsub.f32 %v3692, %v3693
  %v3695 = vand.u32 %v3694, 4294901760
  %3696 = vmatmul.f32.gmra.mxu0 %v3695
  %v3697 = vpop.f32.mrf.mxu0
  %v3698 = vadd.f32 0.0, %v3697
  %v3699 = vand.u32 %v3193, 4294901760
  %v3700 = vsub.f32 %v3193, %v3699
  %v3701 = vand.u32 %v3700, 4294901760
  %v3702 = vsub.f32 %v3700, %v3701
  %v3703 = vand.u32 %v3702, 4294901760
  %3704 = vmatmul.f32.gmra.mxu0 %v3703
  %v3705 = vpop.f32.mrf.mxu0
  %v3706 = vadd.f32 0.0, %v3705
  %v3707 = vand.u32 %v3196, 4294901760
  %v3708 = vsub.f32 %v3196, %v3707
  %v3709 = vand.u32 %v3708, 4294901760
  %v3710 = vsub.f32 %v3708, %v3709
  %v3711 = vand.u32 %v3710, 4294901760
  %3712 = vmatmul.f32.gmra.mxu0 %v3711
  %v3713 = vpop.f32.mrf.mxu0
  %v3714 = vadd.f32 0.0, %v3713
  %v3715 = vand.u32 %v3199, 4294901760
  %v3716 = vsub.f32 %v3199, %v3715
  %v3717 = vand.u32 %v3716, 4294901760
  %v3718 = vsub.f32 %v3716, %v3717
  %v3719 = vand.u32 %v3718, 4294901760
  %3720 = vmatmul.f32.gmra.mxu0 %v3719
  %v3721 = vpop.f32.mrf.mxu0
  %v3722 = vadd.f32 0.0, %v3721
  %v3723 = vand.u32 %v3202, 4294901760
  %v3724 = vsub.f32 %v3202, %v3723
  %v3725 = vand.u32 %v3724, 4294901760
  %v3726 = vsub.f32 %v3724, %v3725
  %v3727 = vand.u32 %v3726, 4294901760
  %3728 = vmatmul.f32.gmra.mxu0 %v3727
  %v3729 = vpop.f32.mrf.mxu0
  %v3730 = vadd.f32 0.0, %v3729
  %v3731 = vand.u32 %v3205, 4294901760
  %v3732 = vsub.f32 %v3205, %v3731
  %v3733 = vand.u32 %v3732, 4294901760
  %v3734 = vsub.f32 %v3732, %v3733
  %v3735 = vand.u32 %v3734, 4294901760
  %3736 = vmatmul.f32.gmra.mxu0 %v3735
  %v3737 = vpop.f32.mrf.mxu0
  %v3738 = vadd.f32 0.0, %v3737
  %v3739 = vand.u32 %v3208, 4294901760
  %v3740 = vsub.f32 %v3208, %v3739
  %v3741 = vand.u32 %v3740, 4294901760
  %v3742 = vsub.f32 %v3740, %v3741
  %v3743 = vand.u32 %v3742, 4294901760
  %3744 = vmatmul.f32.gmra.mxu0 %v3743
  %v3745 = vpop.f32.mrf.mxu0
  %v3746 = vadd.f32 0.0, %v3745
  %3747 = vdwg.mxu0
  %3748 = vmatpush.msra.mxu0 0.0
  %3749 = vmatpush.msra.mxu0 0.0
  %3750 = vmatpush.msra.mxu0 0.0
  %3751 = vmatpush.msra.mxu0 0.0
  %3752 = vmatpush.msra.mxu0 0.0
  %3753 = vmatpush.msra.mxu0 0.0
  %3754 = vmatpush.msra.mxu0 0.0
  %3755 = vmatpush.msra.mxu0 0.0
  %3756 = vmatpush.msra.mxu0 0.0
  %3757 = vmatpush.msra.mxu0 0.0
  %3758 = vmatpush.msra.mxu0 0.0
  %v3759 = vand.u32 %v3212, 4294901760
  %v3760 = vsub.f32 %v3212, %v3759
  %v3761 = vand.u32 %v3760, 4294901760
  %v3762 = vsub.f32 %v3760, %v3761
  %v3763 = vand.u32 %v3762, 4294901760
  %3764 = vmatpush.msra.mxu0 %v3763
  %v3765 = vand.u32 %v3015, 4294901760
  %v3766 = vsub.f32 %v3015, %v3765
  %v3767 = vand.u32 %v3766, 4294901760
  %v3768 = vsub.f32 %v3766, %v3767
  %v3769 = vand.u32 %v3768, 4294901760
  %3770 = vmatpush.msra.mxu0 %v3769
  %v3771 = vand.u32 %v3014, 4294901760
  %v3772 = vsub.f32 %v3014, %v3771
  %v3773 = vand.u32 %v3772, 4294901760
  %v3774 = vsub.f32 %v3772, %v3773
  %v3775 = vand.u32 %v3774, 4294901760
  %3776 = vmatpush.msra.mxu0 %v3775
  %v3777 = vand.u32 %v3013, 4294901760
  %v3778 = vsub.f32 %v3013, %v3777
  %v3779 = vand.u32 %v3778, 4294901760
  %v3780 = vsub.f32 %v3778, %v3779
  %v3781 = vand.u32 %v3780, 4294901760
  %3782 = vmatpush.msra.mxu0 %v3781
  %v3783 = vand.u32 %v3012, 4294901760
  %v3784 = vsub.f32 %v3012, %v3783
  %v3785 = vand.u32 %v3784, 4294901760
  %v3786 = vsub.f32 %v3784, %v3785
  %v3787 = vand.u32 %v3786, 4294901760
  %3788 = vmatpush.msra.mxu0 %v3787
  %v3789 = vand.u32 %v3019, 4294901760
  %3790 = vmatmul.f32.gmra.mxu0 %v3789
  %v3791 = vpop.f32.mrf.mxu0
  %v3792 = vadd.f32 %v3242, %v3791
  %v3793 = vand.u32 %v3022, 4294901760
  %3794 = vmatmul.f32.gmra.mxu0 %v3793
  %v3795 = vpop.f32.mrf.mxu0
  %v3796 = vadd.f32 %v3250, %v3795
  %v3797 = vand.u32 %v3025, 4294901760
  %3798 = vmatmul.f32.gmra.mxu0 %v3797
  %v3799 = vpop.f32.mrf.mxu0
  %v3800 = vadd.f32 %v3258, %v3799
  %v3801 = vand.u32 %v3028, 4294901760
  %3802 = vmatmul.f32.gmra.mxu0 %v3801
  %v3803 = vpop.f32.mrf.mxu0
  %v3804 = vadd.f32 %v3266, %v3803
  %v3805 = vand.u32 %v3031, 4294901760
  %3806 = vmatmul.f32.gmra.mxu0 %v3805
  %v3807 = vpop.f32.mrf.mxu0
  %v3808 = vadd.f32 %v3274, %v3807
  %v3809 = vand.u32 %v3034, 4294901760
  %3810 = vmatmul.f32.gmra.mxu0 %v3809
  %v3811 = vpop.f32.mrf.mxu0
  %v3812 = vadd.f32 %v3282, %v3811
  %v3813 = vand.u32 %v3037, 4294901760
  %3814 = vmatmul.f32.gmra.mxu0 %v3813
  %v3815 = vpop.f32.mrf.mxu0
  %v3816 = vadd.f32 %v3290, %v3815
  %v3817 = vand.u32 %v3040, 4294901760
  %3818 = vmatmul.f32.gmra.mxu0 %v3817
  %v3819 = vpop.f32.mrf.mxu0
  %v3820 = vadd.f32 %v3298, %v3819
  %v3821 = vand.u32 %v3043, 4294901760
  %3822 = vmatmul.f32.gmra.mxu0 %v3821
  %v3823 = vpop.f32.mrf.mxu0
  %v3824 = vadd.f32 %v3306, %v3823
  %v3825 = vand.u32 %v3046, 4294901760
  %3826 = vmatmul.f32.gmra.mxu0 %v3825
  %v3827 = vpop.f32.mrf.mxu0
  %v3828 = vadd.f32 %v3314, %v3827
  %v3829 = vand.u32 %v3049, 4294901760
  %3830 = vmatmul.f32.gmra.mxu0 %v3829
  %v3831 = vpop.f32.mrf.mxu0
  %v3832 = vadd.f32 %v3322, %v3831
  %v3833 = vand.u32 %v3052, 4294901760
  %3834 = vmatmul.f32.gmra.mxu0 %v3833
  %v3835 = vpop.f32.mrf.mxu0
  %v3836 = vadd.f32 %v3330, %v3835
  %v3837 = vand.u32 %v3055, 4294901760
  %3838 = vmatmul.f32.gmra.mxu0 %v3837
  %v3839 = vpop.f32.mrf.mxu0
  %v3840 = vadd.f32 %v3338, %v3839
  %v3841 = vand.u32 %v3058, 4294901760
  %3842 = vmatmul.f32.gmra.mxu0 %v3841
  %v3843 = vpop.f32.mrf.mxu0
  %v3844 = vadd.f32 %v3346, %v3843
  %v3845 = vand.u32 %v3061, 4294901760
  %3846 = vmatmul.f32.gmra.mxu0 %v3845
  %v3847 = vpop.f32.mrf.mxu0
  %v3848 = vadd.f32 %v3354, %v3847
  %v3849 = vand.u32 %v3064, 4294901760
  %3850 = vmatmul.f32.gmra.mxu0 %v3849
  %v3851 = vpop.f32.mrf.mxu0
  %v3852 = vadd.f32 %v3362, %v3851
  %v3853 = vand.u32 %v3067, 4294901760
  %3854 = vmatmul.f32.gmra.mxu0 %v3853
  %v3855 = vpop.f32.mrf.mxu0
  %v3856 = vadd.f32 %v3370, %v3855
  %v3857 = vand.u32 %v3070, 4294901760
  %3858 = vmatmul.f32.gmra.mxu0 %v3857
  %v3859 = vpop.f32.mrf.mxu0
  %v3860 = vadd.f32 %v3378, %v3859
  %v3861 = vand.u32 %v3073, 4294901760
  %3862 = vmatmul.f32.gmra.mxu0 %v3861
  %v3863 = vpop.f32.mrf.mxu0
  %v3864 = vadd.f32 %v3386, %v3863
  %v3865 = vand.u32 %v3076, 4294901760
  %3866 = vmatmul.f32.gmra.mxu0 %v3865
  %v3867 = vpop.f32.mrf.mxu0
  %v3868 = vadd.f32 %v3394, %v3867
  %v3869 = vand.u32 %v3079, 4294901760
  %3870 = vmatmul.f32.gmra.mxu0 %v3869
  %v3871 = vpop.f32.mrf.mxu0
  %v3872 = vadd.f32 %v3402, %v3871
  %v3873 = vand.u32 %v3082, 4294901760
  %3874 = vmatmul.f32.gmra.mxu0 %v3873
  %v3875 = vpop.f32.mrf.mxu0
  %v3876 = vadd.f32 %v3410, %v3875
  %v3877 = vand.u32 %v3085, 4294901760
  %3878 = vmatmul.f32.gmra.mxu0 %v3877
  %v3879 = vpop.f32.mrf.mxu0
  %v3880 = vadd.f32 %v3418, %v3879
  %v3881 = vand.u32 %v3088, 4294901760
  %3882 = vmatmul.f32.gmra.mxu0 %v3881
  %v3883 = vpop.f32.mrf.mxu0
  %v3884 = vadd.f32 %v3426, %v3883
  %v3885 = vand.u32 %v3091, 4294901760
  %3886 = vmatmul.f32.gmra.mxu0 %v3885
  %v3887 = vpop.f32.mrf.mxu0
  %v3888 = vadd.f32 %v3434, %v3887
  %v3889 = vand.u32 %v3094, 4294901760
  %3890 = vmatmul.f32.gmra.mxu0 %v3889
  %v3891 = vpop.f32.mrf.mxu0
  %v3892 = vadd.f32 %v3442, %v3891
  %v3893 = vand.u32 %v3097, 4294901760
  %3894 = vmatmul.f32.gmra.mxu0 %v3893
  %v3895 = vpop.f32.mrf.mxu0
  %v3896 = vadd.f32 %v3450, %v3895
  %v3897 = vand.u32 %v3100, 4294901760
  %3898 = vmatmul.f32.gmra.mxu0 %v3897
  %v3899 = vpop.f32.mrf.mxu0
  %v3900 = vadd.f32 %v3458, %v3899
  %v3901 = vand.u32 %v3103, 4294901760
  %3902 = vmatmul.f32.gmra.mxu0 %v3901
  %v3903 = vpop.f32.mrf.mxu0
  %v3904 = vadd.f32 %v3466, %v3903
  %v3905 = vand.u32 %v3106, 4294901760
  %3906 = vmatmul.f32.gmra.mxu0 %v3905
  %v3907 = vpop.f32.mrf.mxu0
  %v3908 = vadd.f32 %v3474, %v3907
  %v3909 = vand.u32 %v3109, 4294901760
  %3910 = vmatmul.f32.gmra.mxu0 %v3909
  %v3911 = vpop.f32.mrf.mxu0
  %v3912 = vadd.f32 %v3482, %v3911
  %v3913 = vand.u32 %v3112, 4294901760
  %3914 = vmatmul.f32.gmra.mxu0 %v3913
  %v3915 = vpop.f32.mrf.mxu0
  %v3916 = vadd.f32 %v3490, %v3915
  %v3917 = vand.u32 %v3115, 4294901760
  %3918 = vmatmul.f32.gmra.mxu0 %v3917
  %v3919 = vpop.f32.mrf.mxu0
  %v3920 = vadd.f32 %v3498, %v3919
  %v3921 = vand.u32 %v3118, 4294901760
  %3922 = vmatmul.f32.gmra.mxu0 %v3921
  %v3923 = vpop.f32.mrf.mxu0
  %v3924 = vadd.f32 %v3506, %v3923
  %v3925 = vand.u32 %v3121, 4294901760
  %3926 = vmatmul.f32.gmra.mxu0 %v3925
  %v3927 = vpop.f32.mrf.mxu0
  %v3928 = vadd.f32 %v3514, %v3927
  %v3929 = vand.u32 %v3124, 4294901760
  %3930 = vmatmul.f32.gmra.mxu0 %v3929
  %v3931 = vpop.f32.mrf.mxu0
  %v3932 = vadd.f32 %v3522, %v3931
  %v3933 = vand.u32 %v3127, 4294901760
  %3934 = vmatmul.f32.gmra.mxu0 %v3933
  %v3935 = vpop.f32.mrf.mxu0
  %v3936 = vadd.f32 %v3530, %v3935
  %v3937 = vand.u32 %v3130, 4294901760
  %3938 = vmatmul.f32.gmra.mxu0 %v3937
  %v3939 = vpop.f32.mrf.mxu0
  %v3940 = vadd.f32 %v3538, %v3939
  %v3941 = vand.u32 %v3133, 4294901760
  %3942 = vmatmul.f32.gmra.mxu0 %v3941
  %v3943 = vpop.f32.mrf.mxu0
  %v3944 = vadd.f32 %v3546, %v3943
  %v3945 = vand.u32 %v3136, 4294901760
  %3946 = vmatmul.f32.gmra.mxu0 %v3945
  %v3947 = vpop.f32.mrf.mxu0
  %v3948 = vadd.f32 %v3554, %v3947
  %v3949 = vand.u32 %v3139, 4294901760
  %3950 = vmatmul.f32.gmra.mxu0 %v3949
  %v3951 = vpop.f32.mrf.mxu0
  %v3952 = vadd.f32 %v3562, %v3951
  %v3953 = vand.u32 %v3142, 4294901760
  %3954 = vmatmul.f32.gmra.mxu0 %v3953
  %v3955 = vpop.f32.mrf.mxu0
  %v3956 = vadd.f32 %v3570, %v3955
  %v3957 = vand.u32 %v3145, 4294901760
  %3958 = vmatmul.f32.gmra.mxu0 %v3957
  %v3959 = vpop.f32.mrf.mxu0
  %v3960 = vadd.f32 %v3578, %v3959
  %v3961 = vand.u32 %v3148, 4294901760
  %3962 = vmatmul.f32.gmra.mxu0 %v3961
  %v3963 = vpop.f32.mrf.mxu0
  %v3964 = vadd.f32 %v3586, %v3963
  %v3965 = vand.u32 %v3151, 4294901760
  %3966 = vmatmul.f32.gmra.mxu0 %v3965
  %v3967 = vpop.f32.mrf.mxu0
  %v3968 = vadd.f32 %v3594, %v3967
  %v3969 = vand.u32 %v3154, 4294901760
  %3970 = vmatmul.f32.gmra.mxu0 %v3969
  %v3971 = vpop.f32.mrf.mxu0
  %v3972 = vadd.f32 %v3602, %v3971
  %v3973 = vand.u32 %v3157, 4294901760
  %3974 = vmatmul.f32.gmra.mxu0 %v3973
  %v3975 = vpop.f32.mrf.mxu0
  %v3976 = vadd.f32 %v3610, %v3975
  %v3977 = vand.u32 %v3160, 4294901760
  %3978 = vmatmul.f32.gmra.mxu0 %v3977
  %v3979 = vpop.f32.mrf.mxu0
  %v3980 = vadd.f32 %v3618, %v3979
  %v3981 = vand.u32 %v3163, 4294901760
  %3982 = vmatmul.f32.gmra.mxu0 %v3981
  %v3983 = vpop.f32.mrf.mxu0
  %v3984 = vadd.f32 %v3626, %v3983
  %v3985 = vand.u32 %v3166, 4294901760
  %3986 = vmatmul.f32.gmra.mxu0 %v3985
  %v3987 = vpop.f32.mrf.mxu0
  %v3988 = vadd.f32 %v3634, %v3987
  %v3989 = vand.u32 %v3169, 4294901760
  %3990 = vmatmul.f32.gmra.mxu0 %v3989
  %v3991 = vpop.f32.mrf.mxu0
  %v3992 = vadd.f32 %v3642, %v3991
  %v3993 = vand.u32 %v3172, 4294901760
  %3994 = vmatmul.f32.gmra.mxu0 %v3993
  %v3995 = vpop.f32.mrf.mxu0
  %v3996 = vadd.f32 %v3650, %v3995
  %v3997 = vand.u32 %v3175, 4294901760
  %3998 = vmatmul.f32.gmra.mxu0 %v3997
  %v3999 = vpop.f32.mrf.mxu0
  %v4000 = vadd.f32 %v3658, %v3999
  %v4001 = vand.u32 %v3178, 4294901760
  %4002 = vmatmul.f32.gmra.mxu0 %v4001
  %v4003 = vpop.f32.mrf.mxu0
  %v4004 = vadd.f32 %v3666, %v4003
  %v4005 = vand.u32 %v3181, 4294901760
  %4006 = vmatmul.f32.gmra.mxu0 %v4005
  %v4007 = vpop.f32.mrf.mxu0
  %v4008 = vadd.f32 %v3674, %v4007
  %v4009 = vand.u32 %v3184, 4294901760
  %4010 = vmatmul.f32.gmra.mxu0 %v4009
  %v4011 = vpop.f32.mrf.mxu0
  %v4012 = vadd.f32 %v3682, %v4011
  %v4013 = vand.u32 %v3187, 4294901760
  %4014 = vmatmul.f32.gmra.mxu0 %v4013
  %v4015 = vpop.f32.mrf.mxu0
  %v4016 = vadd.f32 %v3690, %v4015
  %v4017 = vand.u32 %v3190, 4294901760
  %4018 = vmatmul.f32.gmra.mxu0 %v4017
  %v4019 = vpop.f32.mrf.mxu0
  %v4020 = vadd.f32 %v3698, %v4019
  %v4021 = vand.u32 %v3193, 4294901760
  %4022 = vmatmul.f32.gmra.mxu0 %v4021
  %v4023 = vpop.f32.mrf.mxu0
  %v4024 = vadd.f32 %v3706, %v4023
  %v4025 = vand.u32 %v3196, 4294901760
  %4026 = vmatmul.f32.gmra.mxu0 %v4025
  %v4027 = vpop.f32.mrf.mxu0
  %v4028 = vadd.f32 %v3714, %v4027
  %v4029 = vand.u32 %v3199, 4294901760
  %4030 = vmatmul.f32.gmra.mxu0 %v4029
  %v4031 = vpop.f32.mrf.mxu0
  %v4032 = vadd.f32 %v3722, %v4031
  %v4033 = vand.u32 %v3202, 4294901760
  %4034 = vmatmul.f32.gmra.mxu0 %v4033
  %v4035 = vpop.f32.mrf.mxu0
  %v4036 = vadd.f32 %v3730, %v4035
  %v4037 = vand.u32 %v3205, 4294901760
  %4038 = vmatmul.f32.gmra.mxu0 %v4037
  %v4039 = vpop.f32.mrf.mxu0
  %v4040 = vadd.f32 %v3738, %v4039
  %v4041 = vand.u32 %v3208, 4294901760
  %4042 = vmatmul.f32.gmra.mxu0 %v4041
  %v4043 = vpop.f32.mrf.mxu0
  %v4044 = vadd.f32 %v3746, %v4043
  %4045 = vdwg.mxu0
  %4046 = vmatpush.msra.mxu0 0.0
  %4047 = vmatpush.msra.mxu0 0.0
  %4048 = vmatpush.msra.mxu0 0.0
  %4049 = vmatpush.msra.mxu0 0.0
  %4050 = vmatpush.msra.mxu0 0.0
  %4051 = vmatpush.msra.mxu0 0.0
  %4052 = vmatpush.msra.mxu0 0.0
  %4053 = vmatpush.msra.mxu0 0.0
  %4054 = vmatpush.msra.mxu0 0.0
  %4055 = vmatpush.msra.mxu0 0.0
  %4056 = vmatpush.msra.mxu0 0.0
  %v4057 = vand.u32 %v3212, 4294901760
  %v4058 = vsub.f32 %v3212, %v4057
  %4059 = vmatpush.msra.mxu0 %v4058
  %v4060 = vand.u32 %v3015, 4294901760
  %v4061 = vsub.f32 %v3015, %v4060
  %4062 = vmatpush.msra.mxu0 %v4061
  %v4063 = vand.u32 %v3014, 4294901760
  %v4064 = vsub.f32 %v3014, %v4063
  %4065 = vmatpush.msra.mxu0 %v4064
  %v4066 = vand.u32 %v3013, 4294901760
  %v4067 = vsub.f32 %v3013, %v4066
  %4068 = vmatpush.msra.mxu0 %v4067
  %v4069 = vand.u32 %v3012, 4294901760
  %v4070 = vsub.f32 %v3012, %v4069
  %4071 = vmatpush.msra.mxu0 %v4070
  %v4072 = vand.u32 %v3019, 4294901760
  %v4073 = vsub.f32 %v3019, %v4072
  %4074 = vmatmul.f32.gmra.mxu0 %v4073
  %v4075 = vpop.f32.mrf.mxu0
  %v4076 = vadd.f32 %v3792, %v4075
  %v4077 = vand.u32 %v3022, 4294901760
  %v4078 = vsub.f32 %v3022, %v4077
  %4079 = vmatmul.f32.gmra.mxu0 %v4078
  %v4080 = vpop.f32.mrf.mxu0
  %v4081 = vadd.f32 %v3796, %v4080
  %v4082 = vand.u32 %v3025, 4294901760
  %v4083 = vsub.f32 %v3025, %v4082
  %4084 = vmatmul.f32.gmra.mxu0 %v4083
  %v4085 = vpop.f32.mrf.mxu0
  %v4086 = vadd.f32 %v3800, %v4085
  %v4087 = vand.u32 %v3028, 4294901760
  %v4088 = vsub.f32 %v3028, %v4087
  %4089 = vmatmul.f32.gmra.mxu0 %v4088
  %v4090 = vpop.f32.mrf.mxu0
  %v4091 = vadd.f32 %v3804, %v4090
  %v4092 = vand.u32 %v3031, 4294901760
  %v4093 = vsub.f32 %v3031, %v4092
  %4094 = vmatmul.f32.gmra.mxu0 %v4093
  %v4095 = vpop.f32.mrf.mxu0
  %v4096 = vadd.f32 %v3808, %v4095
  %v4097 = vand.u32 %v3034, 4294901760
  %v4098 = vsub.f32 %v3034, %v4097
  %4099 = vmatmul.f32.gmra.mxu0 %v4098
  %v4100 = vpop.f32.mrf.mxu0
  %v4101 = vadd.f32 %v3812, %v4100
  %v4102 = vand.u32 %v3037, 4294901760
  %v4103 = vsub.f32 %v3037, %v4102
  %4104 = vmatmul.f32.gmra.mxu0 %v4103
  %v4105 = vpop.f32.mrf.mxu0
  %v4106 = vadd.f32 %v3816, %v4105
  %v4107 = vand.u32 %v3040, 4294901760
  %v4108 = vsub.f32 %v3040, %v4107
  %4109 = vmatmul.f32.gmra.mxu0 %v4108
  %v4110 = vpop.f32.mrf.mxu0
  %v4111 = vadd.f32 %v3820, %v4110
  %v4112 = vand.u32 %v3043, 4294901760
  %v4113 = vsub.f32 %v3043, %v4112
  %4114 = vmatmul.f32.gmra.mxu0 %v4113
  %v4115 = vpop.f32.mrf.mxu0
  %v4116 = vadd.f32 %v3824, %v4115
  %v4117 = vand.u32 %v3046, 4294901760
  %v4118 = vsub.f32 %v3046, %v4117
  %4119 = vmatmul.f32.gmra.mxu0 %v4118
  %v4120 = vpop.f32.mrf.mxu0
  %v4121 = vadd.f32 %v3828, %v4120
  %v4122 = vand.u32 %v3049, 4294901760
  %v4123 = vsub.f32 %v3049, %v4122
  %4124 = vmatmul.f32.gmra.mxu0 %v4123
  %v4125 = vpop.f32.mrf.mxu0
  %v4126 = vadd.f32 %v3832, %v4125
  %v4127 = vand.u32 %v3052, 4294901760
  %v4128 = vsub.f32 %v3052, %v4127
  %4129 = vmatmul.f32.gmra.mxu0 %v4128
  %v4130 = vpop.f32.mrf.mxu0
  %v4131 = vadd.f32 %v3836, %v4130
  %v4132 = vand.u32 %v3055, 4294901760
  %v4133 = vsub.f32 %v3055, %v4132
  %4134 = vmatmul.f32.gmra.mxu0 %v4133
  %v4135 = vpop.f32.mrf.mxu0
  %v4136 = vadd.f32 %v3840, %v4135
  %v4137 = vand.u32 %v3058, 4294901760
  %v4138 = vsub.f32 %v3058, %v4137
  %4139 = vmatmul.f32.gmra.mxu0 %v4138
  %v4140 = vpop.f32.mrf.mxu0
  %v4141 = vadd.f32 %v3844, %v4140
  %v4142 = vand.u32 %v3061, 4294901760
  %v4143 = vsub.f32 %v3061, %v4142
  %4144 = vmatmul.f32.gmra.mxu0 %v4143
  %v4145 = vpop.f32.mrf.mxu0
  %v4146 = vadd.f32 %v3848, %v4145
  %v4147 = vand.u32 %v3064, 4294901760
  %v4148 = vsub.f32 %v3064, %v4147
  %4149 = vmatmul.f32.gmra.mxu0 %v4148
  %v4150 = vpop.f32.mrf.mxu0
  %v4151 = vadd.f32 %v3852, %v4150
  %v4152 = vand.u32 %v3067, 4294901760
  %v4153 = vsub.f32 %v3067, %v4152
  %4154 = vmatmul.f32.gmra.mxu0 %v4153
  %v4155 = vpop.f32.mrf.mxu0
  %v4156 = vadd.f32 %v3856, %v4155
  %v4157 = vand.u32 %v3070, 4294901760
  %v4158 = vsub.f32 %v3070, %v4157
  %4159 = vmatmul.f32.gmra.mxu0 %v4158
  %v4160 = vpop.f32.mrf.mxu0
  %v4161 = vadd.f32 %v3860, %v4160
  %v4162 = vand.u32 %v3073, 4294901760
  %v4163 = vsub.f32 %v3073, %v4162
  %4164 = vmatmul.f32.gmra.mxu0 %v4163
  %v4165 = vpop.f32.mrf.mxu0
  %v4166 = vadd.f32 %v3864, %v4165
  %v4167 = vand.u32 %v3076, 4294901760
  %v4168 = vsub.f32 %v3076, %v4167
  %4169 = vmatmul.f32.gmra.mxu0 %v4168
  %v4170 = vpop.f32.mrf.mxu0
  %v4171 = vadd.f32 %v3868, %v4170
  %v4172 = vand.u32 %v3079, 4294901760
  %v4173 = vsub.f32 %v3079, %v4172
  %4174 = vmatmul.f32.gmra.mxu0 %v4173
  %v4175 = vpop.f32.mrf.mxu0
  %v4176 = vadd.f32 %v3872, %v4175
  %v4177 = vand.u32 %v3082, 4294901760
  %v4178 = vsub.f32 %v3082, %v4177
  %4179 = vmatmul.f32.gmra.mxu0 %v4178
  %v4180 = vpop.f32.mrf.mxu0
  %v4181 = vadd.f32 %v3876, %v4180
  %v4182 = vand.u32 %v3085, 4294901760
  %v4183 = vsub.f32 %v3085, %v4182
  %4184 = vmatmul.f32.gmra.mxu0 %v4183
  %v4185 = vpop.f32.mrf.mxu0
  %v4186 = vadd.f32 %v3880, %v4185
  %v4187 = vand.u32 %v3088, 4294901760
  %v4188 = vsub.f32 %v3088, %v4187
  %4189 = vmatmul.f32.gmra.mxu0 %v4188
  %v4190 = vpop.f32.mrf.mxu0
  %v4191 = vadd.f32 %v3884, %v4190
  %v4192 = vand.u32 %v3091, 4294901760
  %v4193 = vsub.f32 %v3091, %v4192
  %4194 = vmatmul.f32.gmra.mxu0 %v4193
  %v4195 = vpop.f32.mrf.mxu0
  %v4196 = vadd.f32 %v3888, %v4195
  %v4197 = vand.u32 %v3094, 4294901760
  %v4198 = vsub.f32 %v3094, %v4197
  %4199 = vmatmul.f32.gmra.mxu0 %v4198
  %v4200 = vpop.f32.mrf.mxu0
  %v4201 = vadd.f32 %v3892, %v4200
  %v4202 = vand.u32 %v3097, 4294901760
  %v4203 = vsub.f32 %v3097, %v4202
  %4204 = vmatmul.f32.gmra.mxu0 %v4203
  %v4205 = vpop.f32.mrf.mxu0
  %v4206 = vadd.f32 %v3896, %v4205
  %v4207 = vand.u32 %v3100, 4294901760
  %v4208 = vsub.f32 %v3100, %v4207
  %4209 = vmatmul.f32.gmra.mxu0 %v4208
  %v4210 = vpop.f32.mrf.mxu0
  %v4211 = vadd.f32 %v3900, %v4210
  %v4212 = vand.u32 %v3103, 4294901760
  %v4213 = vsub.f32 %v3103, %v4212
  %4214 = vmatmul.f32.gmra.mxu0 %v4213
  %v4215 = vpop.f32.mrf.mxu0
  %v4216 = vadd.f32 %v3904, %v4215
  %v4217 = vand.u32 %v3106, 4294901760
  %v4218 = vsub.f32 %v3106, %v4217
  %4219 = vmatmul.f32.gmra.mxu0 %v4218
  %v4220 = vpop.f32.mrf.mxu0
  %v4221 = vadd.f32 %v3908, %v4220
  %v4222 = vand.u32 %v3109, 4294901760
  %v4223 = vsub.f32 %v3109, %v4222
  %4224 = vmatmul.f32.gmra.mxu0 %v4223
  %v4225 = vpop.f32.mrf.mxu0
  %v4226 = vadd.f32 %v3912, %v4225
  %v4227 = vand.u32 %v3112, 4294901760
  %v4228 = vsub.f32 %v3112, %v4227
  %4229 = vmatmul.f32.gmra.mxu0 %v4228
  %v4230 = vpop.f32.mrf.mxu0
  %v4231 = vadd.f32 %v3916, %v4230
  %v4232 = vand.u32 %v3115, 4294901760
  %v4233 = vsub.f32 %v3115, %v4232
  %4234 = vmatmul.f32.gmra.mxu0 %v4233
  %v4235 = vpop.f32.mrf.mxu0
  %v4236 = vadd.f32 %v3920, %v4235
  %v4237 = vand.u32 %v3118, 4294901760
  %v4238 = vsub.f32 %v3118, %v4237
  %4239 = vmatmul.f32.gmra.mxu0 %v4238
  %v4240 = vpop.f32.mrf.mxu0
  %v4241 = vadd.f32 %v3924, %v4240
  %v4242 = vand.u32 %v3121, 4294901760
  %v4243 = vsub.f32 %v3121, %v4242
  %4244 = vmatmul.f32.gmra.mxu0 %v4243
  %v4245 = vpop.f32.mrf.mxu0
  %v4246 = vadd.f32 %v3928, %v4245
  %v4247 = vand.u32 %v3124, 4294901760
  %v4248 = vsub.f32 %v3124, %v4247
  %4249 = vmatmul.f32.gmra.mxu0 %v4248
  %v4250 = vpop.f32.mrf.mxu0
  %v4251 = vadd.f32 %v3932, %v4250
  %v4252 = vand.u32 %v3127, 4294901760
  %v4253 = vsub.f32 %v3127, %v4252
  %4254 = vmatmul.f32.gmra.mxu0 %v4253
  %v4255 = vpop.f32.mrf.mxu0
  %v4256 = vadd.f32 %v3936, %v4255
  %v4257 = vand.u32 %v3130, 4294901760
  %v4258 = vsub.f32 %v3130, %v4257
  %4259 = vmatmul.f32.gmra.mxu0 %v4258
  %v4260 = vpop.f32.mrf.mxu0
  %v4261 = vadd.f32 %v3940, %v4260
  %v4262 = vand.u32 %v3133, 4294901760
  %v4263 = vsub.f32 %v3133, %v4262
  %4264 = vmatmul.f32.gmra.mxu0 %v4263
  %v4265 = vpop.f32.mrf.mxu0
  %v4266 = vadd.f32 %v3944, %v4265
  %v4267 = vand.u32 %v3136, 4294901760
  %v4268 = vsub.f32 %v3136, %v4267
  %4269 = vmatmul.f32.gmra.mxu0 %v4268
  %v4270 = vpop.f32.mrf.mxu0
  %v4271 = vadd.f32 %v3948, %v4270
  %v4272 = vand.u32 %v3139, 4294901760
  %v4273 = vsub.f32 %v3139, %v4272
  %4274 = vmatmul.f32.gmra.mxu0 %v4273
  %v4275 = vpop.f32.mrf.mxu0
  %v4276 = vadd.f32 %v3952, %v4275
  %v4277 = vand.u32 %v3142, 4294901760
  %v4278 = vsub.f32 %v3142, %v4277
  %4279 = vmatmul.f32.gmra.mxu0 %v4278
  %v4280 = vpop.f32.mrf.mxu0
  %v4281 = vadd.f32 %v3956, %v4280
  %v4282 = vand.u32 %v3145, 4294901760
  %v4283 = vsub.f32 %v3145, %v4282
  %4284 = vmatmul.f32.gmra.mxu0 %v4283
  %v4285 = vpop.f32.mrf.mxu0
  %v4286 = vadd.f32 %v3960, %v4285
  %v4287 = vand.u32 %v3148, 4294901760
  %v4288 = vsub.f32 %v3148, %v4287
  %4289 = vmatmul.f32.gmra.mxu0 %v4288
  %v4290 = vpop.f32.mrf.mxu0
  %v4291 = vadd.f32 %v3964, %v4290
  %v4292 = vand.u32 %v3151, 4294901760
  %v4293 = vsub.f32 %v3151, %v4292
  %4294 = vmatmul.f32.gmra.mxu0 %v4293
  %v4295 = vpop.f32.mrf.mxu0
  %v4296 = vadd.f32 %v3968, %v4295
  %v4297 = vand.u32 %v3154, 4294901760
  %v4298 = vsub.f32 %v3154, %v4297
  %4299 = vmatmul.f32.gmra.mxu0 %v4298
  %v4300 = vpop.f32.mrf.mxu0
  %v4301 = vadd.f32 %v3972, %v4300
  %v4302 = vand.u32 %v3157, 4294901760
  %v4303 = vsub.f32 %v3157, %v4302
  %4304 = vmatmul.f32.gmra.mxu0 %v4303
  %v4305 = vpop.f32.mrf.mxu0
  %v4306 = vadd.f32 %v3976, %v4305
  %v4307 = vand.u32 %v3160, 4294901760
  %v4308 = vsub.f32 %v3160, %v4307
  %4309 = vmatmul.f32.gmra.mxu0 %v4308
  %v4310 = vpop.f32.mrf.mxu0
  %v4311 = vadd.f32 %v3980, %v4310
  %v4312 = vand.u32 %v3163, 4294901760
  %v4313 = vsub.f32 %v3163, %v4312
  %4314 = vmatmul.f32.gmra.mxu0 %v4313
  %v4315 = vpop.f32.mrf.mxu0
  %v4316 = vadd.f32 %v3984, %v4315
  %v4317 = vand.u32 %v3166, 4294901760
  %v4318 = vsub.f32 %v3166, %v4317
  %4319 = vmatmul.f32.gmra.mxu0 %v4318
  %v4320 = vpop.f32.mrf.mxu0
  %v4321 = vadd.f32 %v3988, %v4320
  %v4322 = vand.u32 %v3169, 4294901760
  %v4323 = vsub.f32 %v3169, %v4322
  %4324 = vmatmul.f32.gmra.mxu0 %v4323
  %v4325 = vpop.f32.mrf.mxu0
  %v4326 = vadd.f32 %v3992, %v4325
  %v4327 = vand.u32 %v3172, 4294901760
  %v4328 = vsub.f32 %v3172, %v4327
  %4329 = vmatmul.f32.gmra.mxu0 %v4328
  %v4330 = vpop.f32.mrf.mxu0
  %v4331 = vadd.f32 %v3996, %v4330
  %v4332 = vand.u32 %v3175, 4294901760
  %v4333 = vsub.f32 %v3175, %v4332
  %4334 = vmatmul.f32.gmra.mxu0 %v4333
  %v4335 = vpop.f32.mrf.mxu0
  %v4336 = vadd.f32 %v4000, %v4335
  %v4337 = vand.u32 %v3178, 4294901760
  %v4338 = vsub.f32 %v3178, %v4337
  %4339 = vmatmul.f32.gmra.mxu0 %v4338
  %v4340 = vpop.f32.mrf.mxu0
  %v4341 = vadd.f32 %v4004, %v4340
  %v4342 = vand.u32 %v3181, 4294901760
  %v4343 = vsub.f32 %v3181, %v4342
  %4344 = vmatmul.f32.gmra.mxu0 %v4343
  %v4345 = vpop.f32.mrf.mxu0
  %v4346 = vadd.f32 %v4008, %v4345
  %v4347 = vand.u32 %v3184, 4294901760
  %v4348 = vsub.f32 %v3184, %v4347
  %4349 = vmatmul.f32.gmra.mxu0 %v4348
  %v4350 = vpop.f32.mrf.mxu0
  %v4351 = vadd.f32 %v4012, %v4350
  %v4352 = vand.u32 %v3187, 4294901760
  %v4353 = vsub.f32 %v3187, %v4352
  %4354 = vmatmul.f32.gmra.mxu0 %v4353
  %v4355 = vpop.f32.mrf.mxu0
  %v4356 = vadd.f32 %v4016, %v4355
  %v4357 = vand.u32 %v3190, 4294901760
  %v4358 = vsub.f32 %v3190, %v4357
  %4359 = vmatmul.f32.gmra.mxu0 %v4358
  %v4360 = vpop.f32.mrf.mxu0
  %v4361 = vadd.f32 %v4020, %v4360
  %v4362 = vand.u32 %v3193, 4294901760
  %v4363 = vsub.f32 %v3193, %v4362
  %4364 = vmatmul.f32.gmra.mxu0 %v4363
  %v4365 = vpop.f32.mrf.mxu0
  %v4366 = vadd.f32 %v4024, %v4365
  %v4367 = vand.u32 %v3196, 4294901760
  %v4368 = vsub.f32 %v3196, %v4367
  %4369 = vmatmul.f32.gmra.mxu0 %v4368
  %v4370 = vpop.f32.mrf.mxu0
  %v4371 = vadd.f32 %v4028, %v4370
  %v4372 = vand.u32 %v3199, 4294901760
  %v4373 = vsub.f32 %v3199, %v4372
  %4374 = vmatmul.f32.gmra.mxu0 %v4373
  %v4375 = vpop.f32.mrf.mxu0
  %v4376 = vadd.f32 %v4032, %v4375
  %v4377 = vand.u32 %v3202, 4294901760
  %v4378 = vsub.f32 %v3202, %v4377
  %4379 = vmatmul.f32.gmra.mxu0 %v4378
  %v4380 = vpop.f32.mrf.mxu0
  %v4381 = vadd.f32 %v4036, %v4380
  %v4382 = vand.u32 %v3205, 4294901760
  %v4383 = vsub.f32 %v3205, %v4382
  %4384 = vmatmul.f32.gmra.mxu0 %v4383
  %v4385 = vpop.f32.mrf.mxu0
  %v4386 = vadd.f32 %v4040, %v4385
  %v4387 = vand.u32 %v3208, 4294901760
  %v4388 = vsub.f32 %v3208, %v4387
  %4389 = vmatmul.f32.gmra.mxu0 %v4388
  %v4390 = vpop.f32.mrf.mxu0
  %v4391 = vadd.f32 %v4044, %v4390
  %4392 = vdwg.mxu0
  %4393 = vmatpush.msra.mxu0 0.0
  %4394 = vmatpush.msra.mxu0 0.0
  %4395 = vmatpush.msra.mxu0 0.0
  %4396 = vmatpush.msra.mxu0 0.0
  %4397 = vmatpush.msra.mxu0 0.0
  %4398 = vmatpush.msra.mxu0 0.0
  %4399 = vmatpush.msra.mxu0 0.0
  %4400 = vmatpush.msra.mxu0 0.0
  %4401 = vmatpush.msra.mxu0 0.0
  %4402 = vmatpush.msra.mxu0 0.0
  %4403 = vmatpush.msra.mxu0 0.0
  %v4404 = vand.u32 %v3212, 4294901760
  %4405 = vmatpush.msra.mxu0 %v4404
  %v4406 = vand.u32 %v3015, 4294901760
  %4407 = vmatpush.msra.mxu0 %v4406
  %v4408 = vand.u32 %v3014, 4294901760
  %4409 = vmatpush.msra.mxu0 %v4408
  %v4410 = vand.u32 %v3013, 4294901760
  %4411 = vmatpush.msra.mxu0 %v4410
  %v4412 = vand.u32 %v3012, 4294901760
  %4413 = vmatpush.msra.mxu0 %v4412
  %v4414 = vand.u32 %v3019, 4294901760
  %v4415 = vsub.f32 %v3019, %v4414
  %v4416 = vand.u32 %v4415, 4294901760
  %4417 = vmatmul.f32.gmra.mxu0 %v4416
  %v4418 = vpop.f32.mrf.mxu0
  %v4419 = vadd.f32 %v4076, %v4418
  %v4420 = vand.u32 %v3022, 4294901760
  %v4421 = vsub.f32 %v3022, %v4420
  %v4422 = vand.u32 %v4421, 4294901760
  %4423 = vmatmul.f32.gmra.mxu0 %v4422
  %v4424 = vpop.f32.mrf.mxu0
  %v4425 = vadd.f32 %v4081, %v4424
  %v4426 = vand.u32 %v3025, 4294901760
  %v4427 = vsub.f32 %v3025, %v4426
  %v4428 = vand.u32 %v4427, 4294901760
  %4429 = vmatmul.f32.gmra.mxu0 %v4428
  %v4430 = vpop.f32.mrf.mxu0
  %v4431 = vadd.f32 %v4086, %v4430
  %v4432 = vand.u32 %v3028, 4294901760
  %v4433 = vsub.f32 %v3028, %v4432
  %v4434 = vand.u32 %v4433, 4294901760
  %4435 = vmatmul.f32.gmra.mxu0 %v4434
  %v4436 = vpop.f32.mrf.mxu0
  %v4437 = vadd.f32 %v4091, %v4436
  %v4438 = vand.u32 %v3031, 4294901760
  %v4439 = vsub.f32 %v3031, %v4438
  %v4440 = vand.u32 %v4439, 4294901760
  %4441 = vmatmul.f32.gmra.mxu0 %v4440
  %v4442 = vpop.f32.mrf.mxu0
  %v4443 = vadd.f32 %v4096, %v4442
  %v4444 = vand.u32 %v3034, 4294901760
  %v4445 = vsub.f32 %v3034, %v4444
  %v4446 = vand.u32 %v4445, 4294901760
  %4447 = vmatmul.f32.gmra.mxu0 %v4446
  %v4448 = vpop.f32.mrf.mxu0
  %v4449 = vadd.f32 %v4101, %v4448
  %v4450 = vand.u32 %v3037, 4294901760
  %v4451 = vsub.f32 %v3037, %v4450
  %v4452 = vand.u32 %v4451, 4294901760
  %4453 = vmatmul.f32.gmra.mxu0 %v4452
  %v4454 = vpop.f32.mrf.mxu0
  %v4455 = vadd.f32 %v4106, %v4454
  %v4456 = vand.u32 %v3040, 4294901760
  %v4457 = vsub.f32 %v3040, %v4456
  %v4458 = vand.u32 %v4457, 4294901760
  %4459 = vmatmul.f32.gmra.mxu0 %v4458
  %v4460 = vpop.f32.mrf.mxu0
  %v4461 = vadd.f32 %v4111, %v4460
  %v4462 = vand.u32 %v3043, 4294901760
  %v4463 = vsub.f32 %v3043, %v4462
  %v4464 = vand.u32 %v4463, 4294901760
  %4465 = vmatmul.f32.gmra.mxu0 %v4464
  %v4466 = vpop.f32.mrf.mxu0
  %v4467 = vadd.f32 %v4116, %v4466
  %v4468 = vand.u32 %v3046, 4294901760
  %v4469 = vsub.f32 %v3046, %v4468
  %v4470 = vand.u32 %v4469, 4294901760
  %4471 = vmatmul.f32.gmra.mxu0 %v4470
  %v4472 = vpop.f32.mrf.mxu0
  %v4473 = vadd.f32 %v4121, %v4472
  %v4474 = vand.u32 %v3049, 4294901760
  %v4475 = vsub.f32 %v3049, %v4474
  %v4476 = vand.u32 %v4475, 4294901760
  %4477 = vmatmul.f32.gmra.mxu0 %v4476
  %v4478 = vpop.f32.mrf.mxu0
  %v4479 = vadd.f32 %v4126, %v4478
  %v4480 = vand.u32 %v3052, 4294901760
  %v4481 = vsub.f32 %v3052, %v4480
  %v4482 = vand.u32 %v4481, 4294901760
  %4483 = vmatmul.f32.gmra.mxu0 %v4482
  %v4484 = vpop.f32.mrf.mxu0
  %v4485 = vadd.f32 %v4131, %v4484
  %v4486 = vand.u32 %v3055, 4294901760
  %v4487 = vsub.f32 %v3055, %v4486
  %v4488 = vand.u32 %v4487, 4294901760
  %4489 = vmatmul.f32.gmra.mxu0 %v4488
  %v4490 = vpop.f32.mrf.mxu0
  %v4491 = vadd.f32 %v4136, %v4490
  %v4492 = vand.u32 %v3058, 4294901760
  %v4493 = vsub.f32 %v3058, %v4492
  %v4494 = vand.u32 %v4493, 4294901760
  %4495 = vmatmul.f32.gmra.mxu0 %v4494
  %v4496 = vpop.f32.mrf.mxu0
  %v4497 = vadd.f32 %v4141, %v4496
  %v4498 = vand.u32 %v3061, 4294901760
  %v4499 = vsub.f32 %v3061, %v4498
  %v4500 = vand.u32 %v4499, 4294901760
  %4501 = vmatmul.f32.gmra.mxu0 %v4500
  %v4502 = vpop.f32.mrf.mxu0
  %v4503 = vadd.f32 %v4146, %v4502
  %v4504 = vand.u32 %v3064, 4294901760
  %v4505 = vsub.f32 %v3064, %v4504
  %v4506 = vand.u32 %v4505, 4294901760
  %4507 = vmatmul.f32.gmra.mxu0 %v4506
  %v4508 = vpop.f32.mrf.mxu0
  %v4509 = vadd.f32 %v4151, %v4508
  %v4510 = vand.u32 %v3067, 4294901760
  %v4511 = vsub.f32 %v3067, %v4510
  %v4512 = vand.u32 %v4511, 4294901760
  %4513 = vmatmul.f32.gmra.mxu0 %v4512
  %v4514 = vpop.f32.mrf.mxu0
  %v4515 = vadd.f32 %v4156, %v4514
  %v4516 = vand.u32 %v3070, 4294901760
  %v4517 = vsub.f32 %v3070, %v4516
  %v4518 = vand.u32 %v4517, 4294901760
  %4519 = vmatmul.f32.gmra.mxu0 %v4518
  %v4520 = vpop.f32.mrf.mxu0
  %v4521 = vadd.f32 %v4161, %v4520
  %v4522 = vand.u32 %v3073, 4294901760
  %v4523 = vsub.f32 %v3073, %v4522
  %v4524 = vand.u32 %v4523, 4294901760
  %4525 = vmatmul.f32.gmra.mxu0 %v4524
  %v4526 = vpop.f32.mrf.mxu0
  %v4527 = vadd.f32 %v4166, %v4526
  %v4528 = vand.u32 %v3076, 4294901760
  %v4529 = vsub.f32 %v3076, %v4528
  %v4530 = vand.u32 %v4529, 4294901760
  %4531 = vmatmul.f32.gmra.mxu0 %v4530
  %v4532 = vpop.f32.mrf.mxu0
  %v4533 = vadd.f32 %v4171, %v4532
  %v4534 = vand.u32 %v3079, 4294901760
  %v4535 = vsub.f32 %v3079, %v4534
  %v4536 = vand.u32 %v4535, 4294901760
  %4537 = vmatmul.f32.gmra.mxu0 %v4536
  %v4538 = vpop.f32.mrf.mxu0
  %v4539 = vadd.f32 %v4176, %v4538
  %v4540 = vand.u32 %v3082, 4294901760
  %v4541 = vsub.f32 %v3082, %v4540
  %v4542 = vand.u32 %v4541, 4294901760
  %4543 = vmatmul.f32.gmra.mxu0 %v4542
  %v4544 = vpop.f32.mrf.mxu0
  %v4545 = vadd.f32 %v4181, %v4544
  %v4546 = vand.u32 %v3085, 4294901760
  %v4547 = vsub.f32 %v3085, %v4546
  %v4548 = vand.u32 %v4547, 4294901760
  %4549 = vmatmul.f32.gmra.mxu0 %v4548
  %v4550 = vpop.f32.mrf.mxu0
  %v4551 = vadd.f32 %v4186, %v4550
  %v4552 = vand.u32 %v3088, 4294901760
  %v4553 = vsub.f32 %v3088, %v4552
  %v4554 = vand.u32 %v4553, 4294901760
  %4555 = vmatmul.f32.gmra.mxu0 %v4554
  %v4556 = vpop.f32.mrf.mxu0
  %v4557 = vadd.f32 %v4191, %v4556
  %v4558 = vand.u32 %v3091, 4294901760
  %v4559 = vsub.f32 %v3091, %v4558
  %v4560 = vand.u32 %v4559, 4294901760
  %4561 = vmatmul.f32.gmra.mxu0 %v4560
  %v4562 = vpop.f32.mrf.mxu0
  %v4563 = vadd.f32 %v4196, %v4562
  %v4564 = vand.u32 %v3094, 4294901760
  %v4565 = vsub.f32 %v3094, %v4564
  %v4566 = vand.u32 %v4565, 4294901760
  %4567 = vmatmul.f32.gmra.mxu0 %v4566
  %v4568 = vpop.f32.mrf.mxu0
  %v4569 = vadd.f32 %v4201, %v4568
  %v4570 = vand.u32 %v3097, 4294901760
  %v4571 = vsub.f32 %v3097, %v4570
  %v4572 = vand.u32 %v4571, 4294901760
  %4573 = vmatmul.f32.gmra.mxu0 %v4572
  %v4574 = vpop.f32.mrf.mxu0
  %v4575 = vadd.f32 %v4206, %v4574
  %v4576 = vand.u32 %v3100, 4294901760
  %v4577 = vsub.f32 %v3100, %v4576
  %v4578 = vand.u32 %v4577, 4294901760
  %4579 = vmatmul.f32.gmra.mxu0 %v4578
  %v4580 = vpop.f32.mrf.mxu0
  %v4581 = vadd.f32 %v4211, %v4580
  %v4582 = vand.u32 %v3103, 4294901760
  %v4583 = vsub.f32 %v3103, %v4582
  %v4584 = vand.u32 %v4583, 4294901760
  %4585 = vmatmul.f32.gmra.mxu0 %v4584
  %v4586 = vpop.f32.mrf.mxu0
  %v4587 = vadd.f32 %v4216, %v4586
  %v4588 = vand.u32 %v3106, 4294901760
  %v4589 = vsub.f32 %v3106, %v4588
  %v4590 = vand.u32 %v4589, 4294901760
  %4591 = vmatmul.f32.gmra.mxu0 %v4590
  %v4592 = vpop.f32.mrf.mxu0
  %v4593 = vadd.f32 %v4221, %v4592
  %v4594 = vand.u32 %v3109, 4294901760
  %v4595 = vsub.f32 %v3109, %v4594
  %v4596 = vand.u32 %v4595, 4294901760
  %4597 = vmatmul.f32.gmra.mxu0 %v4596
  %v4598 = vpop.f32.mrf.mxu0
  %v4599 = vadd.f32 %v4226, %v4598
  %v4600 = vand.u32 %v3112, 4294901760
  %v4601 = vsub.f32 %v3112, %v4600
  %v4602 = vand.u32 %v4601, 4294901760
  %4603 = vmatmul.f32.gmra.mxu0 %v4602
  %v4604 = vpop.f32.mrf.mxu0
  %v4605 = vadd.f32 %v4231, %v4604
  %v4606 = vand.u32 %v3115, 4294901760
  %v4607 = vsub.f32 %v3115, %v4606
  %v4608 = vand.u32 %v4607, 4294901760
  %4609 = vmatmul.f32.gmra.mxu0 %v4608
  %v4610 = vpop.f32.mrf.mxu0
  %v4611 = vadd.f32 %v4236, %v4610
  %v4612 = vand.u32 %v3118, 4294901760
  %v4613 = vsub.f32 %v3118, %v4612
  %v4614 = vand.u32 %v4613, 4294901760
  %4615 = vmatmul.f32.gmra.mxu0 %v4614
  %v4616 = vpop.f32.mrf.mxu0
  %v4617 = vadd.f32 %v4241, %v4616
  %v4618 = vand.u32 %v3121, 4294901760
  %v4619 = vsub.f32 %v3121, %v4618
  %v4620 = vand.u32 %v4619, 4294901760
  %4621 = vmatmul.f32.gmra.mxu0 %v4620
  %v4622 = vpop.f32.mrf.mxu0
  %v4623 = vadd.f32 %v4246, %v4622
  %v4624 = vand.u32 %v3124, 4294901760
  %v4625 = vsub.f32 %v3124, %v4624
  %v4626 = vand.u32 %v4625, 4294901760
  %4627 = vmatmul.f32.gmra.mxu0 %v4626
  %v4628 = vpop.f32.mrf.mxu0
  %v4629 = vadd.f32 %v4251, %v4628
  %v4630 = vand.u32 %v3127, 4294901760
  %v4631 = vsub.f32 %v3127, %v4630
  %v4632 = vand.u32 %v4631, 4294901760
  %4633 = vmatmul.f32.gmra.mxu0 %v4632
  %v4634 = vpop.f32.mrf.mxu0
  %v4635 = vadd.f32 %v4256, %v4634
  %v4636 = vand.u32 %v3130, 4294901760
  %v4637 = vsub.f32 %v3130, %v4636
  %v4638 = vand.u32 %v4637, 4294901760
  %4639 = vmatmul.f32.gmra.mxu0 %v4638
  %v4640 = vpop.f32.mrf.mxu0
  %v4641 = vadd.f32 %v4261, %v4640
  %v4642 = vand.u32 %v3133, 4294901760
  %v4643 = vsub.f32 %v3133, %v4642
  %v4644 = vand.u32 %v4643, 4294901760
  %4645 = vmatmul.f32.gmra.mxu0 %v4644
  %v4646 = vpop.f32.mrf.mxu0
  %v4647 = vadd.f32 %v4266, %v4646
  %v4648 = vand.u32 %v3136, 4294901760
  %v4649 = vsub.f32 %v3136, %v4648
  %v4650 = vand.u32 %v4649, 4294901760
  %4651 = vmatmul.f32.gmra.mxu0 %v4650
  %v4652 = vpop.f32.mrf.mxu0
  %v4653 = vadd.f32 %v4271, %v4652
  %v4654 = vand.u32 %v3139, 4294901760
  %v4655 = vsub.f32 %v3139, %v4654
  %v4656 = vand.u32 %v4655, 4294901760
  %4657 = vmatmul.f32.gmra.mxu0 %v4656
  %v4658 = vpop.f32.mrf.mxu0
  %v4659 = vadd.f32 %v4276, %v4658
  %v4660 = vand.u32 %v3142, 4294901760
  %v4661 = vsub.f32 %v3142, %v4660
  %v4662 = vand.u32 %v4661, 4294901760
  %4663 = vmatmul.f32.gmra.mxu0 %v4662
  %v4664 = vpop.f32.mrf.mxu0
  %v4665 = vadd.f32 %v4281, %v4664
  %v4666 = vand.u32 %v3145, 4294901760
  %v4667 = vsub.f32 %v3145, %v4666
  %v4668 = vand.u32 %v4667, 4294901760
  %4669 = vmatmul.f32.gmra.mxu0 %v4668
  %v4670 = vpop.f32.mrf.mxu0
  %v4671 = vadd.f32 %v4286, %v4670
  %v4672 = vand.u32 %v3148, 4294901760
  %v4673 = vsub.f32 %v3148, %v4672
  %v4674 = vand.u32 %v4673, 4294901760
  %4675 = vmatmul.f32.gmra.mxu0 %v4674
  %v4676 = vpop.f32.mrf.mxu0
  %v4677 = vadd.f32 %v4291, %v4676
  %v4678 = vand.u32 %v3151, 4294901760
  %v4679 = vsub.f32 %v3151, %v4678
  %v4680 = vand.u32 %v4679, 4294901760
  %4681 = vmatmul.f32.gmra.mxu0 %v4680
  %v4682 = vpop.f32.mrf.mxu0
  %v4683 = vadd.f32 %v4296, %v4682
  %v4684 = vand.u32 %v3154, 4294901760
  %v4685 = vsub.f32 %v3154, %v4684
  %v4686 = vand.u32 %v4685, 4294901760
  %4687 = vmatmul.f32.gmra.mxu0 %v4686
  %v4688 = vpop.f32.mrf.mxu0
  %v4689 = vadd.f32 %v4301, %v4688
  %v4690 = vand.u32 %v3157, 4294901760
  %v4691 = vsub.f32 %v3157, %v4690
  %v4692 = vand.u32 %v4691, 4294901760
  %4693 = vmatmul.f32.gmra.mxu0 %v4692
  %v4694 = vpop.f32.mrf.mxu0
  %v4695 = vadd.f32 %v4306, %v4694
  %v4696 = vand.u32 %v3160, 4294901760
  %v4697 = vsub.f32 %v3160, %v4696
  %v4698 = vand.u32 %v4697, 4294901760
  %4699 = vmatmul.f32.gmra.mxu0 %v4698
  %v4700 = vpop.f32.mrf.mxu0
  %v4701 = vadd.f32 %v4311, %v4700
  %v4702 = vand.u32 %v3163, 4294901760
  %v4703 = vsub.f32 %v3163, %v4702
  %v4704 = vand.u32 %v4703, 4294901760
  %4705 = vmatmul.f32.gmra.mxu0 %v4704
  %v4706 = vpop.f32.mrf.mxu0
  %v4707 = vadd.f32 %v4316, %v4706
  %v4708 = vand.u32 %v3166, 4294901760
  %v4709 = vsub.f32 %v3166, %v4708
  %v4710 = vand.u32 %v4709, 4294901760
  %4711 = vmatmul.f32.gmra.mxu0 %v4710
  %v4712 = vpop.f32.mrf.mxu0
  %v4713 = vadd.f32 %v4321, %v4712
  %v4714 = vand.u32 %v3169, 4294901760
  %v4715 = vsub.f32 %v3169, %v4714
  %v4716 = vand.u32 %v4715, 4294901760
  %4717 = vmatmul.f32.gmra.mxu0 %v4716
  %v4718 = vpop.f32.mrf.mxu0
  %v4719 = vadd.f32 %v4326, %v4718
  %v4720 = vand.u32 %v3172, 4294901760
  %v4721 = vsub.f32 %v3172, %v4720
  %v4722 = vand.u32 %v4721, 4294901760
  %4723 = vmatmul.f32.gmra.mxu0 %v4722
  %v4724 = vpop.f32.mrf.mxu0
  %v4725 = vadd.f32 %v4331, %v4724
  %v4726 = vand.u32 %v3175, 4294901760
  %v4727 = vsub.f32 %v3175, %v4726
  %v4728 = vand.u32 %v4727, 4294901760
  %4729 = vmatmul.f32.gmra.mxu0 %v4728
  %v4730 = vpop.f32.mrf.mxu0
  %v4731 = vadd.f32 %v4336, %v4730
  %v4732 = vand.u32 %v3178, 4294901760
  %v4733 = vsub.f32 %v3178, %v4732
  %v4734 = vand.u32 %v4733, 4294901760
  %4735 = vmatmul.f32.gmra.mxu0 %v4734
  %v4736 = vpop.f32.mrf.mxu0
  %v4737 = vadd.f32 %v4341, %v4736
  %v4738 = vand.u32 %v3181, 4294901760
  %v4739 = vsub.f32 %v3181, %v4738
  %v4740 = vand.u32 %v4739, 4294901760
  %4741 = vmatmul.f32.gmra.mxu0 %v4740
  %v4742 = vpop.f32.mrf.mxu0
  %v4743 = vadd.f32 %v4346, %v4742
  %v4744 = vand.u32 %v3184, 4294901760
  %v4745 = vsub.f32 %v3184, %v4744
  %v4746 = vand.u32 %v4745, 4294901760
  %4747 = vmatmul.f32.gmra.mxu0 %v4746
  %v4748 = vpop.f32.mrf.mxu0
  %v4749 = vadd.f32 %v4351, %v4748
  %v4750 = vand.u32 %v3187, 4294901760
  %v4751 = vsub.f32 %v3187, %v4750
  %v4752 = vand.u32 %v4751, 4294901760
  %4753 = vmatmul.f32.gmra.mxu0 %v4752
  %v4754 = vpop.f32.mrf.mxu0
  %v4755 = vadd.f32 %v4356, %v4754
  %v4756 = vand.u32 %v3190, 4294901760
  %v4757 = vsub.f32 %v3190, %v4756
  %v4758 = vand.u32 %v4757, 4294901760
  %4759 = vmatmul.f32.gmra.mxu0 %v4758
  %v4760 = vpop.f32.mrf.mxu0
  %v4761 = vadd.f32 %v4361, %v4760
  %v4762 = vand.u32 %v3193, 4294901760
  %v4763 = vsub.f32 %v3193, %v4762
  %v4764 = vand.u32 %v4763, 4294901760
  %4765 = vmatmul.f32.gmra.mxu0 %v4764
  %v4766 = vpop.f32.mrf.mxu0
  %v4767 = vadd.f32 %v4366, %v4766
  %v4768 = vand.u32 %v3196, 4294901760
  %v4769 = vsub.f32 %v3196, %v4768
  %v4770 = vand.u32 %v4769, 4294901760
  %4771 = vmatmul.f32.gmra.mxu0 %v4770
  %v4772 = vpop.f32.mrf.mxu0
  %v4773 = vadd.f32 %v4371, %v4772
  %v4774 = vand.u32 %v3199, 4294901760
  %v4775 = vsub.f32 %v3199, %v4774
  %v4776 = vand.u32 %v4775, 4294901760
  %4777 = vmatmul.f32.gmra.mxu0 %v4776
  %v4778 = vpop.f32.mrf.mxu0
  %v4779 = vadd.f32 %v4376, %v4778
  %v4780 = vand.u32 %v3202, 4294901760
  %v4781 = vsub.f32 %v3202, %v4780
  %v4782 = vand.u32 %v4781, 4294901760
  %4783 = vmatmul.f32.gmra.mxu0 %v4782
  %v4784 = vpop.f32.mrf.mxu0
  %v4785 = vadd.f32 %v4381, %v4784
  %v4786 = vand.u32 %v3205, 4294901760
  %v4787 = vsub.f32 %v3205, %v4786
  %v4788 = vand.u32 %v4787, 4294901760
  %4789 = vmatmul.f32.gmra.mxu0 %v4788
  %v4790 = vpop.f32.mrf.mxu0
  %v4791 = vadd.f32 %v4386, %v4790
  %v4792 = vand.u32 %v3208, 4294901760
  %v4793 = vsub.f32 %v3208, %v4792
  %v4794 = vand.u32 %v4793, 4294901760
  %4795 = vmatmul.f32.gmra.mxu0 %v4794
  %v4796 = vpop.f32.mrf.mxu0
  %v4797 = vadd.f32 %v4391, %v4796
  %4798 = vdwg.mxu0
  %4799 = vmatpush.msra.mxu0 0.0
  %4800 = vmatpush.msra.mxu0 0.0
  %4801 = vmatpush.msra.mxu0 0.0
  %4802 = vmatpush.msra.mxu0 0.0
  %4803 = vmatpush.msra.mxu0 0.0
  %4804 = vmatpush.msra.mxu0 0.0
  %4805 = vmatpush.msra.mxu0 0.0
  %4806 = vmatpush.msra.mxu0 0.0
  %4807 = vmatpush.msra.mxu0 0.0
  %4808 = vmatpush.msra.mxu0 0.0
  %4809 = vmatpush.msra.mxu0 0.0
  %v4810 = vand.u32 %v3212, 4294901760
  %v4811 = vsub.f32 %v3212, %v4810
  %v4812 = vand.u32 %v4811, 4294901760
  %4813 = vmatpush.msra.mxu0 %v4812
  %v4814 = vand.u32 %v3015, 4294901760
  %v4815 = vsub.f32 %v3015, %v4814
  %v4816 = vand.u32 %v4815, 4294901760
  %4817 = vmatpush.msra.mxu0 %v4816
  %v4818 = vand.u32 %v3014, 4294901760
  %v4819 = vsub.f32 %v3014, %v4818
  %v4820 = vand.u32 %v4819, 4294901760
  %4821 = vmatpush.msra.mxu0 %v4820
  %v4822 = vand.u32 %v3013, 4294901760
  %v4823 = vsub.f32 %v3013, %v4822
  %v4824 = vand.u32 %v4823, 4294901760
  %4825 = vmatpush.msra.mxu0 %v4824
  %v4826 = vand.u32 %v3012, 4294901760
  %v4827 = vsub.f32 %v3012, %v4826
  %v4828 = vand.u32 %v4827, 4294901760
  %4829 = vmatpush.msra.mxu0 %v4828
  %v4830 = vand.u32 %v3019, 4294901760
  %4831 = vmatmul.f32.gmra.mxu0 %v4830
  %v4832 = vpop.f32.mrf.mxu0
  %v4833 = vadd.f32 %v4419, %v4832
  %v4834 = vand.u32 %v3022, 4294901760
  %4835 = vmatmul.f32.gmra.mxu0 %v4834
  %v4836 = vpop.f32.mrf.mxu0
  %v4837 = vadd.f32 %v4425, %v4836
  %v4838 = vand.u32 %v3025, 4294901760
  %4839 = vmatmul.f32.gmra.mxu0 %v4838
  %v4840 = vpop.f32.mrf.mxu0
  %v4841 = vadd.f32 %v4431, %v4840
  %v4842 = vand.u32 %v3028, 4294901760
  %4843 = vmatmul.f32.gmra.mxu0 %v4842
  %v4844 = vpop.f32.mrf.mxu0
  %v4845 = vadd.f32 %v4437, %v4844
  %v4846 = vand.u32 %v3031, 4294901760
  %4847 = vmatmul.f32.gmra.mxu0 %v4846
  %v4848 = vpop.f32.mrf.mxu0
  %v4849 = vadd.f32 %v4443, %v4848
  %v4850 = vand.u32 %v3034, 4294901760
  %4851 = vmatmul.f32.gmra.mxu0 %v4850
  %v4852 = vpop.f32.mrf.mxu0
  %v4853 = vadd.f32 %v4449, %v4852
  %v4854 = vand.u32 %v3037, 4294901760
  %4855 = vmatmul.f32.gmra.mxu0 %v4854
  %v4856 = vpop.f32.mrf.mxu0
  %v4857 = vadd.f32 %v4455, %v4856
  %v4858 = vand.u32 %v3040, 4294901760
  %4859 = vmatmul.f32.gmra.mxu0 %v4858
  %v4860 = vpop.f32.mrf.mxu0
  %v4861 = vadd.f32 %v4461, %v4860
  %v4862 = vand.u32 %v3043, 4294901760
  %4863 = vmatmul.f32.gmra.mxu0 %v4862
  %v4864 = vpop.f32.mrf.mxu0
  %v4865 = vadd.f32 %v4467, %v4864
  %v4866 = vand.u32 %v3046, 4294901760
  %4867 = vmatmul.f32.gmra.mxu0 %v4866
  %v4868 = vpop.f32.mrf.mxu0
  %v4869 = vadd.f32 %v4473, %v4868
  %v4870 = vand.u32 %v3049, 4294901760
  %4871 = vmatmul.f32.gmra.mxu0 %v4870
  %v4872 = vpop.f32.mrf.mxu0
  %v4873 = vadd.f32 %v4479, %v4872
  %v4874 = vand.u32 %v3052, 4294901760
  %4875 = vmatmul.f32.gmra.mxu0 %v4874
  %v4876 = vpop.f32.mrf.mxu0
  %v4877 = vadd.f32 %v4485, %v4876
  %v4878 = vand.u32 %v3055, 4294901760
  %4879 = vmatmul.f32.gmra.mxu0 %v4878
  %v4880 = vpop.f32.mrf.mxu0
  %v4881 = vadd.f32 %v4491, %v4880
  %v4882 = vand.u32 %v3058, 4294901760
  %4883 = vmatmul.f32.gmra.mxu0 %v4882
  %v4884 = vpop.f32.mrf.mxu0
  %v4885 = vadd.f32 %v4497, %v4884
  %v4886 = vand.u32 %v3061, 4294901760
  %4887 = vmatmul.f32.gmra.mxu0 %v4886
  %v4888 = vpop.f32.mrf.mxu0
  %v4889 = vadd.f32 %v4503, %v4888
  %v4890 = vand.u32 %v3064, 4294901760
  %4891 = vmatmul.f32.gmra.mxu0 %v4890
  %v4892 = vpop.f32.mrf.mxu0
  %v4893 = vadd.f32 %v4509, %v4892
  %v4894 = vand.u32 %v3067, 4294901760
  %4895 = vmatmul.f32.gmra.mxu0 %v4894
  %v4896 = vpop.f32.mrf.mxu0
  %v4897 = vadd.f32 %v4515, %v4896
  %v4898 = vand.u32 %v3070, 4294901760
  %4899 = vmatmul.f32.gmra.mxu0 %v4898
  %v4900 = vpop.f32.mrf.mxu0
  %v4901 = vadd.f32 %v4521, %v4900
  %v4902 = vand.u32 %v3073, 4294901760
  %4903 = vmatmul.f32.gmra.mxu0 %v4902
  %v4904 = vpop.f32.mrf.mxu0
  %v4905 = vadd.f32 %v4527, %v4904
  %v4906 = vand.u32 %v3076, 4294901760
  %4907 = vmatmul.f32.gmra.mxu0 %v4906
  %v4908 = vpop.f32.mrf.mxu0
  %v4909 = vadd.f32 %v4533, %v4908
  %v4910 = vand.u32 %v3079, 4294901760
  %4911 = vmatmul.f32.gmra.mxu0 %v4910
  %v4912 = vpop.f32.mrf.mxu0
  %v4913 = vadd.f32 %v4539, %v4912
  %v4914 = vand.u32 %v3082, 4294901760
  %4915 = vmatmul.f32.gmra.mxu0 %v4914
  %v4916 = vpop.f32.mrf.mxu0
  %v4917 = vadd.f32 %v4545, %v4916
  %v4918 = vand.u32 %v3085, 4294901760
  %4919 = vmatmul.f32.gmra.mxu0 %v4918
  %v4920 = vpop.f32.mrf.mxu0
  %v4921 = vadd.f32 %v4551, %v4920
  %v4922 = vand.u32 %v3088, 4294901760
  %4923 = vmatmul.f32.gmra.mxu0 %v4922
  %v4924 = vpop.f32.mrf.mxu0
  %v4925 = vadd.f32 %v4557, %v4924
  %v4926 = vand.u32 %v3091, 4294901760
  %4927 = vmatmul.f32.gmra.mxu0 %v4926
  %v4928 = vpop.f32.mrf.mxu0
  %v4929 = vadd.f32 %v4563, %v4928
  %v4930 = vand.u32 %v3094, 4294901760
  %4931 = vmatmul.f32.gmra.mxu0 %v4930
  %v4932 = vpop.f32.mrf.mxu0
  %v4933 = vadd.f32 %v4569, %v4932
  %v4934 = vand.u32 %v3097, 4294901760
  %4935 = vmatmul.f32.gmra.mxu0 %v4934
  %v4936 = vpop.f32.mrf.mxu0
  %v4937 = vadd.f32 %v4575, %v4936
  %v4938 = vand.u32 %v3100, 4294901760
  %4939 = vmatmul.f32.gmra.mxu0 %v4938
  %v4940 = vpop.f32.mrf.mxu0
  %v4941 = vadd.f32 %v4581, %v4940
  %v4942 = vand.u32 %v3103, 4294901760
  %4943 = vmatmul.f32.gmra.mxu0 %v4942
  %v4944 = vpop.f32.mrf.mxu0
  %v4945 = vadd.f32 %v4587, %v4944
  %v4946 = vand.u32 %v3106, 4294901760
  %4947 = vmatmul.f32.gmra.mxu0 %v4946
  %v4948 = vpop.f32.mrf.mxu0
  %v4949 = vadd.f32 %v4593, %v4948
  %v4950 = vand.u32 %v3109, 4294901760
  %4951 = vmatmul.f32.gmra.mxu0 %v4950
  %v4952 = vpop.f32.mrf.mxu0
  %v4953 = vadd.f32 %v4599, %v4952
  %v4954 = vand.u32 %v3112, 4294901760
  %4955 = vmatmul.f32.gmra.mxu0 %v4954
  %v4956 = vpop.f32.mrf.mxu0
  %v4957 = vadd.f32 %v4605, %v4956
  %v4958 = vand.u32 %v3115, 4294901760
  %4959 = vmatmul.f32.gmra.mxu0 %v4958
  %v4960 = vpop.f32.mrf.mxu0
  %v4961 = vadd.f32 %v4611, %v4960
  %v4962 = vand.u32 %v3118, 4294901760
  %4963 = vmatmul.f32.gmra.mxu0 %v4962
  %v4964 = vpop.f32.mrf.mxu0
  %v4965 = vadd.f32 %v4617, %v4964
  %v4966 = vand.u32 %v3121, 4294901760
  %4967 = vmatmul.f32.gmra.mxu0 %v4966
  %v4968 = vpop.f32.mrf.mxu0
  %v4969 = vadd.f32 %v4623, %v4968
  %v4970 = vand.u32 %v3124, 4294901760
  %4971 = vmatmul.f32.gmra.mxu0 %v4970
  %v4972 = vpop.f32.mrf.mxu0
  %v4973 = vadd.f32 %v4629, %v4972
  %v4974 = vand.u32 %v3127, 4294901760
  %4975 = vmatmul.f32.gmra.mxu0 %v4974
  %v4976 = vpop.f32.mrf.mxu0
  %v4977 = vadd.f32 %v4635, %v4976
  %v4978 = vand.u32 %v3130, 4294901760
  %4979 = vmatmul.f32.gmra.mxu0 %v4978
  %v4980 = vpop.f32.mrf.mxu0
  %v4981 = vadd.f32 %v4641, %v4980
  %v4982 = vand.u32 %v3133, 4294901760
  %4983 = vmatmul.f32.gmra.mxu0 %v4982
  %v4984 = vpop.f32.mrf.mxu0
  %v4985 = vadd.f32 %v4647, %v4984
  %v4986 = vand.u32 %v3136, 4294901760
  %4987 = vmatmul.f32.gmra.mxu0 %v4986
  %v4988 = vpop.f32.mrf.mxu0
  %v4989 = vadd.f32 %v4653, %v4988
  %v4990 = vand.u32 %v3139, 4294901760
  %4991 = vmatmul.f32.gmra.mxu0 %v4990
  %v4992 = vpop.f32.mrf.mxu0
  %v4993 = vadd.f32 %v4659, %v4992
  %v4994 = vand.u32 %v3142, 4294901760
  %4995 = vmatmul.f32.gmra.mxu0 %v4994
  %v4996 = vpop.f32.mrf.mxu0
  %v4997 = vadd.f32 %v4665, %v4996
  %v4998 = vand.u32 %v3145, 4294901760
  %4999 = vmatmul.f32.gmra.mxu0 %v4998
  %v5000 = vpop.f32.mrf.mxu0
  %v5001 = vadd.f32 %v4671, %v5000
  %v5002 = vand.u32 %v3148, 4294901760
  %5003 = vmatmul.f32.gmra.mxu0 %v5002
  %v5004 = vpop.f32.mrf.mxu0
  %v5005 = vadd.f32 %v4677, %v5004
  %v5006 = vand.u32 %v3151, 4294901760
  %5007 = vmatmul.f32.gmra.mxu0 %v5006
  %v5008 = vpop.f32.mrf.mxu0
  %v5009 = vadd.f32 %v4683, %v5008
  %v5010 = vand.u32 %v3154, 4294901760
  %5011 = vmatmul.f32.gmra.mxu0 %v5010
  %v5012 = vpop.f32.mrf.mxu0
  %v5013 = vadd.f32 %v4689, %v5012
  %v5014 = vand.u32 %v3157, 4294901760
  %5015 = vmatmul.f32.gmra.mxu0 %v5014
  %v5016 = vpop.f32.mrf.mxu0
  %v5017 = vadd.f32 %v4695, %v5016
  %v5018 = vand.u32 %v3160, 4294901760
  %5019 = vmatmul.f32.gmra.mxu0 %v5018
  %v5020 = vpop.f32.mrf.mxu0
  %v5021 = vadd.f32 %v4701, %v5020
  %v5022 = vand.u32 %v3163, 4294901760
  %5023 = vmatmul.f32.gmra.mxu0 %v5022
  %v5024 = vpop.f32.mrf.mxu0
  %v5025 = vadd.f32 %v4707, %v5024
  %v5026 = vand.u32 %v3166, 4294901760
  %5027 = vmatmul.f32.gmra.mxu0 %v5026
  %v5028 = vpop.f32.mrf.mxu0
  %v5029 = vadd.f32 %v4713, %v5028
  %v5030 = vand.u32 %v3169, 4294901760
  %5031 = vmatmul.f32.gmra.mxu0 %v5030
  %v5032 = vpop.f32.mrf.mxu0
  %v5033 = vadd.f32 %v4719, %v5032
  %v5034 = vand.u32 %v3172, 4294901760
  %5035 = vmatmul.f32.gmra.mxu0 %v5034
  %v5036 = vpop.f32.mrf.mxu0
  %v5037 = vadd.f32 %v4725, %v5036
  %v5038 = vand.u32 %v3175, 4294901760
  %5039 = vmatmul.f32.gmra.mxu0 %v5038
  %v5040 = vpop.f32.mrf.mxu0
  %v5041 = vadd.f32 %v4731, %v5040
  %v5042 = vand.u32 %v3178, 4294901760
  %5043 = vmatmul.f32.gmra.mxu0 %v5042
  %v5044 = vpop.f32.mrf.mxu0
  %v5045 = vadd.f32 %v4737, %v5044
  %v5046 = vand.u32 %v3181, 4294901760
  %5047 = vmatmul.f32.gmra.mxu0 %v5046
  %v5048 = vpop.f32.mrf.mxu0
  %v5049 = vadd.f32 %v4743, %v5048
  %v5050 = vand.u32 %v3184, 4294901760
  %5051 = vmatmul.f32.gmra.mxu0 %v5050
  %v5052 = vpop.f32.mrf.mxu0
  %v5053 = vadd.f32 %v4749, %v5052
  %v5054 = vand.u32 %v3187, 4294901760
  %5055 = vmatmul.f32.gmra.mxu0 %v5054
  %v5056 = vpop.f32.mrf.mxu0
  %v5057 = vadd.f32 %v4755, %v5056
  %v5058 = vand.u32 %v3190, 4294901760
  %5059 = vmatmul.f32.gmra.mxu0 %v5058
  %v5060 = vpop.f32.mrf.mxu0
  %v5061 = vadd.f32 %v4761, %v5060
  %v5062 = vand.u32 %v3193, 4294901760
  %5063 = vmatmul.f32.gmra.mxu0 %v5062
  %v5064 = vpop.f32.mrf.mxu0
  %v5065 = vadd.f32 %v4767, %v5064
  %v5066 = vand.u32 %v3196, 4294901760
  %5067 = vmatmul.f32.gmra.mxu0 %v5066
  %v5068 = vpop.f32.mrf.mxu0
  %v5069 = vadd.f32 %v4773, %v5068
  %v5070 = vand.u32 %v3199, 4294901760
  %5071 = vmatmul.f32.gmra.mxu0 %v5070
  %v5072 = vpop.f32.mrf.mxu0
  %v5073 = vadd.f32 %v4779, %v5072
  %v5074 = vand.u32 %v3202, 4294901760
  %5075 = vmatmul.f32.gmra.mxu0 %v5074
  %v5076 = vpop.f32.mrf.mxu0
  %v5077 = vadd.f32 %v4785, %v5076
  %v5078 = vand.u32 %v3205, 4294901760
  %5079 = vmatmul.f32.gmra.mxu0 %v5078
  %v5080 = vpop.f32.mrf.mxu0
  %v5081 = vadd.f32 %v4791, %v5080
  %v5082 = vand.u32 %v3208, 4294901760
  %5083 = vmatmul.f32.gmra.mxu0 %v5082
  %v5084 = vpop.f32.mrf.mxu0
  %v5085 = vadd.f32 %v4797, %v5084
  %5086 = vdwg.mxu0
  %5087 = vmatpush.msra.mxu0 0.0
  %5088 = vmatpush.msra.mxu0 0.0
  %5089 = vmatpush.msra.mxu0 0.0
  %5090 = vmatpush.msra.mxu0 0.0
  %5091 = vmatpush.msra.mxu0 0.0
  %5092 = vmatpush.msra.mxu0 0.0
  %5093 = vmatpush.msra.mxu0 0.0
  %5094 = vmatpush.msra.mxu0 0.0
  %5095 = vmatpush.msra.mxu0 0.0
  %5096 = vmatpush.msra.mxu0 0.0
  %5097 = vmatpush.msra.mxu0 0.0
  %v5098 = vand.u32 %v3212, 4294901760
  %5099 = vmatpush.msra.mxu0 %v5098
  %v5100 = vand.u32 %v3015, 4294901760
  %5101 = vmatpush.msra.mxu0 %v5100
  %v5102 = vand.u32 %v3014, 4294901760
  %5103 = vmatpush.msra.mxu0 %v5102
  %v5104 = vand.u32 %v3013, 4294901760
  %5105 = vmatpush.msra.mxu0 %v5104
  %v5106 = vand.u32 %v3012, 4294901760
  %5107 = vmatpush.msra.mxu0 %v5106
  %v5108 = vand.u32 %v3019, 4294901760
  %5109 = vmatmul.f32.gmra.mxu0 %v5108
  %v5110 = vpop.f32.mrf.mxu0
  %v5111 = vadd.f32 %v4833, %v5110
  %v5112 = vand.u32 %v3022, 4294901760
  %5113 = vmatmul.f32.gmra.mxu0 %v5112
  %v5114 = vpop.f32.mrf.mxu0
  %v5115 = vadd.f32 %v4837, %v5114
  %v5116 = vand.u32 %v3025, 4294901760
  %5117 = vmatmul.f32.gmra.mxu0 %v5116
  %v5118 = vpop.f32.mrf.mxu0
  %v5119 = vadd.f32 %v4841, %v5118
  %v5120 = vand.u32 %v3028, 4294901760
  %5121 = vmatmul.f32.gmra.mxu0 %v5120
  %v5122 = vpop.f32.mrf.mxu0
  %v5123 = vadd.f32 %v4845, %v5122
  %v5124 = vand.u32 %v3031, 4294901760
  %5125 = vmatmul.f32.gmra.mxu0 %v5124
  %v5126 = vpop.f32.mrf.mxu0
  %v5127 = vadd.f32 %v4849, %v5126
  %v5128 = vand.u32 %v3034, 4294901760
  %5129 = vmatmul.f32.gmra.mxu0 %v5128
  %v5130 = vpop.f32.mrf.mxu0
  %v5131 = vadd.f32 %v4853, %v5130
  %v5132 = vand.u32 %v3037, 4294901760
  %5133 = vmatmul.f32.gmra.mxu0 %v5132
  %v5134 = vpop.f32.mrf.mxu0
  %v5135 = vadd.f32 %v4857, %v5134
  %v5136 = vand.u32 %v3040, 4294901760
  %5137 = vmatmul.f32.gmra.mxu0 %v5136
  %v5138 = vpop.f32.mrf.mxu0
  %v5139 = vadd.f32 %v4861, %v5138
  %v5140 = vand.u32 %v3043, 4294901760
  %5141 = vmatmul.f32.gmra.mxu0 %v5140
  %v5142 = vpop.f32.mrf.mxu0
  %v5143 = vadd.f32 %v4865, %v5142
  %v5144 = vand.u32 %v3046, 4294901760
  %5145 = vmatmul.f32.gmra.mxu0 %v5144
  %v5146 = vpop.f32.mrf.mxu0
  %v5147 = vadd.f32 %v4869, %v5146
  %v5148 = vand.u32 %v3049, 4294901760
  %5149 = vmatmul.f32.gmra.mxu0 %v5148
  %v5150 = vpop.f32.mrf.mxu0
  %v5151 = vadd.f32 %v4873, %v5150
  %v5152 = vand.u32 %v3052, 4294901760
  %5153 = vmatmul.f32.gmra.mxu0 %v5152
  %v5154 = vpop.f32.mrf.mxu0
  %v5155 = vadd.f32 %v4877, %v5154
  %v5156 = vand.u32 %v3055, 4294901760
  %5157 = vmatmul.f32.gmra.mxu0 %v5156
  %v5158 = vpop.f32.mrf.mxu0
  %v5159 = vadd.f32 %v4881, %v5158
  %v5160 = vand.u32 %v3058, 4294901760
  %5161 = vmatmul.f32.gmra.mxu0 %v5160
  %v5162 = vpop.f32.mrf.mxu0
  %v5163 = vadd.f32 %v4885, %v5162
  %v5164 = vand.u32 %v3061, 4294901760
  %5165 = vmatmul.f32.gmra.mxu0 %v5164
  %v5166 = vpop.f32.mrf.mxu0
  %v5167 = vadd.f32 %v4889, %v5166
  %v5168 = vand.u32 %v3064, 4294901760
  %5169 = vmatmul.f32.gmra.mxu0 %v5168
  %v5170 = vpop.f32.mrf.mxu0
  %v5171 = vadd.f32 %v4893, %v5170
  %v5172 = vand.u32 %v3067, 4294901760
  %5173 = vmatmul.f32.gmra.mxu0 %v5172
  %v5174 = vpop.f32.mrf.mxu0
  %v5175 = vadd.f32 %v4897, %v5174
  %v5176 = vand.u32 %v3070, 4294901760
  %5177 = vmatmul.f32.gmra.mxu0 %v5176
  %v5178 = vpop.f32.mrf.mxu0
  %v5179 = vadd.f32 %v4901, %v5178
  %v5180 = vand.u32 %v3073, 4294901760
  %5181 = vmatmul.f32.gmra.mxu0 %v5180
  %v5182 = vpop.f32.mrf.mxu0
  %v5183 = vadd.f32 %v4905, %v5182
  %v5184 = vand.u32 %v3076, 4294901760
  %5185 = vmatmul.f32.gmra.mxu0 %v5184
  %v5186 = vpop.f32.mrf.mxu0
  %v5187 = vadd.f32 %v4909, %v5186
  %v5188 = vand.u32 %v3079, 4294901760
  %5189 = vmatmul.f32.gmra.mxu0 %v5188
  %v5190 = vpop.f32.mrf.mxu0
  %v5191 = vadd.f32 %v4913, %v5190
  %v5192 = vand.u32 %v3082, 4294901760
  %5193 = vmatmul.f32.gmra.mxu0 %v5192
  %v5194 = vpop.f32.mrf.mxu0
  %v5195 = vadd.f32 %v4917, %v5194
  %v5196 = vand.u32 %v3085, 4294901760
  %5197 = vmatmul.f32.gmra.mxu0 %v5196
  %v5198 = vpop.f32.mrf.mxu0
  %v5199 = vadd.f32 %v4921, %v5198
  %v5200 = vand.u32 %v3088, 4294901760
  %5201 = vmatmul.f32.gmra.mxu0 %v5200
  %v5202 = vpop.f32.mrf.mxu0
  %v5203 = vadd.f32 %v4925, %v5202
  %v5204 = vand.u32 %v3091, 4294901760
  %5205 = vmatmul.f32.gmra.mxu0 %v5204
  %v5206 = vpop.f32.mrf.mxu0
  %v5207 = vadd.f32 %v4929, %v5206
  %v5208 = vand.u32 %v3094, 4294901760
  %5209 = vmatmul.f32.gmra.mxu0 %v5208
  %v5210 = vpop.f32.mrf.mxu0
  %v5211 = vadd.f32 %v4933, %v5210
  %v5212 = vand.u32 %v3097, 4294901760
  %5213 = vmatmul.f32.gmra.mxu0 %v5212
  %v5214 = vpop.f32.mrf.mxu0
  %v5215 = vadd.f32 %v4937, %v5214
  %v5216 = vand.u32 %v3100, 4294901760
  %5217 = vmatmul.f32.gmra.mxu0 %v5216
  %v5218 = vpop.f32.mrf.mxu0
  %v5219 = vadd.f32 %v4941, %v5218
  %v5220 = vand.u32 %v3103, 4294901760
  %5221 = vmatmul.f32.gmra.mxu0 %v5220
  %v5222 = vpop.f32.mrf.mxu0
  %v5223 = vadd.f32 %v4945, %v5222
  %v5224 = vand.u32 %v3106, 4294901760
  %5225 = vmatmul.f32.gmra.mxu0 %v5224
  %v5226 = vpop.f32.mrf.mxu0
  %v5227 = vadd.f32 %v4949, %v5226
  %v5228 = vand.u32 %v3109, 4294901760
  %5229 = vmatmul.f32.gmra.mxu0 %v5228
  %v5230 = vpop.f32.mrf.mxu0
  %v5231 = vadd.f32 %v4953, %v5230
  %v5232 = vand.u32 %v3112, 4294901760
  %5233 = vmatmul.f32.gmra.mxu0 %v5232
  %v5234 = vpop.f32.mrf.mxu0
  %v5235 = vadd.f32 %v4957, %v5234
  %v5236 = vand.u32 %v3115, 4294901760
  %5237 = vmatmul.f32.gmra.mxu0 %v5236
  %v5238 = vpop.f32.mrf.mxu0
  %v5239 = vadd.f32 %v4961, %v5238
  %v5240 = vand.u32 %v3118, 4294901760
  %5241 = vmatmul.f32.gmra.mxu0 %v5240
  %v5242 = vpop.f32.mrf.mxu0
  %v5243 = vadd.f32 %v4965, %v5242
  %v5244 = vand.u32 %v3121, 4294901760
  %5245 = vmatmul.f32.gmra.mxu0 %v5244
  %v5246 = vpop.f32.mrf.mxu0
  %v5247 = vadd.f32 %v4969, %v5246
  %v5248 = vand.u32 %v3124, 4294901760
  %5249 = vmatmul.f32.gmra.mxu0 %v5248
  %v5250 = vpop.f32.mrf.mxu0
  %v5251 = vadd.f32 %v4973, %v5250
  %v5252 = vand.u32 %v3127, 4294901760
  %5253 = vmatmul.f32.gmra.mxu0 %v5252
  %v5254 = vpop.f32.mrf.mxu0
  %v5255 = vadd.f32 %v4977, %v5254
  %v5256 = vand.u32 %v3130, 4294901760
  %5257 = vmatmul.f32.gmra.mxu0 %v5256
  %v5258 = vpop.f32.mrf.mxu0
  %v5259 = vadd.f32 %v4981, %v5258
  %v5260 = vand.u32 %v3133, 4294901760
  %5261 = vmatmul.f32.gmra.mxu0 %v5260
  %v5262 = vpop.f32.mrf.mxu0
  %v5263 = vadd.f32 %v4985, %v5262
  %v5264 = vand.u32 %v3136, 4294901760
  %5265 = vmatmul.f32.gmra.mxu0 %v5264
  %v5266 = vpop.f32.mrf.mxu0
  %v5267 = vadd.f32 %v4989, %v5266
  %v5268 = vand.u32 %v3139, 4294901760
  %5269 = vmatmul.f32.gmra.mxu0 %v5268
  %v5270 = vpop.f32.mrf.mxu0
  %v5271 = vadd.f32 %v4993, %v5270
  %v5272 = vand.u32 %v3142, 4294901760
  %5273 = vmatmul.f32.gmra.mxu0 %v5272
  %v5274 = vpop.f32.mrf.mxu0
  %v5275 = vadd.f32 %v4997, %v5274
  %v5276 = vand.u32 %v3145, 4294901760
  %5277 = vmatmul.f32.gmra.mxu0 %v5276
  %v5278 = vpop.f32.mrf.mxu0
  %v5279 = vadd.f32 %v5001, %v5278
  %v5280 = vand.u32 %v3148, 4294901760
  %5281 = vmatmul.f32.gmra.mxu0 %v5280
  %v5282 = vpop.f32.mrf.mxu0
  %v5283 = vadd.f32 %v5005, %v5282
  %v5284 = vand.u32 %v3151, 4294901760
  %5285 = vmatmul.f32.gmra.mxu0 %v5284
  %v5286 = vpop.f32.mrf.mxu0
  %v5287 = vadd.f32 %v5009, %v5286
  %v5288 = vand.u32 %v3154, 4294901760
  %5289 = vmatmul.f32.gmra.mxu0 %v5288
  %v5290 = vpop.f32.mrf.mxu0
  %v5291 = vadd.f32 %v5013, %v5290
  %v5292 = vand.u32 %v3157, 4294901760
  %5293 = vmatmul.f32.gmra.mxu0 %v5292
  %v5294 = vpop.f32.mrf.mxu0
  %v5295 = vadd.f32 %v5017, %v5294
  %v5296 = vand.u32 %v3160, 4294901760
  %5297 = vmatmul.f32.gmra.mxu0 %v5296
  %v5298 = vpop.f32.mrf.mxu0
  %v5299 = vadd.f32 %v5021, %v5298
  %v5300 = vand.u32 %v3163, 4294901760
  %5301 = vmatmul.f32.gmra.mxu0 %v5300
  %v5302 = vpop.f32.mrf.mxu0
  %v5303 = vadd.f32 %v5025, %v5302
  %v5304 = vand.u32 %v3166, 4294901760
  %5305 = vmatmul.f32.gmra.mxu0 %v5304
  %v5306 = vpop.f32.mrf.mxu0
  %v5307 = vadd.f32 %v5029, %v5306
  %v5308 = vand.u32 %v3169, 4294901760
  %5309 = vmatmul.f32.gmra.mxu0 %v5308
  %v5310 = vpop.f32.mrf.mxu0
  %v5311 = vadd.f32 %v5033, %v5310
  %v5312 = vand.u32 %v3172, 4294901760
  %5313 = vmatmul.f32.gmra.mxu0 %v5312
  %v5314 = vpop.f32.mrf.mxu0
  %v5315 = vadd.f32 %v5037, %v5314
  %v5316 = vand.u32 %v3175, 4294901760
  %5317 = vmatmul.f32.gmra.mxu0 %v5316
  %v5318 = vpop.f32.mrf.mxu0
  %v5319 = vadd.f32 %v5041, %v5318
  %v5320 = vand.u32 %v3178, 4294901760
  %5321 = vmatmul.f32.gmra.mxu0 %v5320
  %v5322 = vpop.f32.mrf.mxu0
  %v5323 = vadd.f32 %v5045, %v5322
  %v5324 = vand.u32 %v3181, 4294901760
  %5325 = vmatmul.f32.gmra.mxu0 %v5324
  %v5326 = vpop.f32.mrf.mxu0
  %v5327 = vadd.f32 %v5049, %v5326
  %v5328 = vand.u32 %v3184, 4294901760
  %5329 = vmatmul.f32.gmra.mxu0 %v5328
  %v5330 = vpop.f32.mrf.mxu0
  %v5331 = vadd.f32 %v5053, %v5330
  %v5332 = vand.u32 %v3187, 4294901760
  %5333 = vmatmul.f32.gmra.mxu0 %v5332
  %v5334 = vpop.f32.mrf.mxu0
  %v5335 = vadd.f32 %v5057, %v5334
  %v5336 = vand.u32 %v3190, 4294901760
  %5337 = vmatmul.f32.gmra.mxu0 %v5336
  %v5338 = vpop.f32.mrf.mxu0
  %v5339 = vadd.f32 %v5061, %v5338
  %v5340 = vand.u32 %v3193, 4294901760
  %5341 = vmatmul.f32.gmra.mxu0 %v5340
  %v5342 = vpop.f32.mrf.mxu0
  %v5343 = vadd.f32 %v5065, %v5342
  %v5344 = vand.u32 %v3196, 4294901760
  %5345 = vmatmul.f32.gmra.mxu0 %v5344
  %v5346 = vpop.f32.mrf.mxu0
  %v5347 = vadd.f32 %v5069, %v5346
  %v5348 = vand.u32 %v3199, 4294901760
  %5349 = vmatmul.f32.gmra.mxu0 %v5348
  %v5350 = vpop.f32.mrf.mxu0
  %v5351 = vadd.f32 %v5073, %v5350
  %v5352 = vand.u32 %v3202, 4294901760
  %5353 = vmatmul.f32.gmra.mxu0 %v5352
  %v5354 = vpop.f32.mrf.mxu0
  %v5355 = vadd.f32 %v5077, %v5354
  %v5356 = vand.u32 %v3205, 4294901760
  %5357 = vmatmul.f32.gmra.mxu0 %v5356
  %v5358 = vpop.f32.mrf.mxu0
  %v5359 = vadd.f32 %v5081, %v5358
  %v5360 = vand.u32 %v3208, 4294901760
  %5361 = vmatmul.f32.gmra.mxu0 %v5360
  %v5362 = vpop.f32.mrf.mxu0
  %v5363 = vadd.f32 %v5085, %v5362
  %5364 = vdwg.mxu0
  %v5365 = vadd.f32 %v5111, %v5115
  %v5366 = vadd.f32 %v5365, %v5119
  %v5367 = vadd.f32 %v5366, %v5123
  %v5368 = vadd.f32 %v5367, %v5127
  %v5369 = vadd.f32 %v5368, %v5131
  %v5370 = vadd.f32 %v5369, %v5135
  %v5371 = vadd.f32 %v5370, %v5139
  %v5372 = vadd.f32 %v5371, %v5143
  %v5373 = vadd.f32 %v5372, %v5147
  %v5374 = vadd.f32 %v5373, %v5151
  %v5375 = vadd.f32 %v5374, %v5155
  %v5376 = vadd.f32 %v5375, %v5159
  %v5377 = vadd.f32 %v5376, %v5163
  %v5378 = vadd.f32 %v5377, %v5167
  %v5379 = vadd.f32 %v5378, %v5171
  %v5380 = vadd.f32 %v5379, %v5175
  %v5381 = vadd.f32 %v5380, %v5179
  %v5382 = vadd.f32 %v5381, %v5183
  %v5383 = vadd.f32 %v5382, %v5187
  %v5384 = vadd.f32 %v5383, %v5191
  %v5385 = vadd.f32 %v5384, %v5195
  %v5386 = vadd.f32 %v5385, %v5199
  %v5387 = vadd.f32 %v5386, %v5203
  %v5388 = vadd.f32 %v5387, %v5207
  %v5389 = vadd.f32 %v5388, %v5211
  %v5390 = vadd.f32 %v5389, %v5215
  %v5391 = vadd.f32 %v5390, %v5219
  %v5392 = vadd.f32 %v5391, %v5223
  %v5393 = vadd.f32 %v5392, %v5227
  %v5394 = vadd.f32 %v5393, %v5231
  %v5395 = vadd.f32 %v5394, %v5235
  %v5396 = vadd.f32 %v5395, %v5239
  %v5397 = vadd.f32 %v5396, %v5243
  %v5398 = vadd.f32 %v5397, %v5247
  %v5399 = vadd.f32 %v5398, %v5251
  %v5400 = vadd.f32 %v5399, %v5255
  %v5401 = vadd.f32 %v5400, %v5259
  %v5402 = vadd.f32 %v5401, %v5263
  %v5403 = vadd.f32 %v5402, %v5267
  %v5404 = vadd.f32 %v5403, %v5271
  %v5405 = vadd.f32 %v5404, %v5275
  %v5406 = vadd.f32 %v5405, %v5279
  %v5407 = vadd.f32 %v5406, %v5283
  %v5408 = vadd.f32 %v5407, %v5287
  %v5409 = vadd.f32 %v5408, %v5291
  %v5410 = vadd.f32 %v5409, %v5295
  %v5411 = vadd.f32 %v5410, %v5299
  %v5412 = vadd.f32 %v5411, %v5303
  %v5413 = vadd.f32 %v5412, %v5307
  %v5414 = vadd.f32 %v5413, %v5311
  %v5415 = vadd.f32 %v5414, %v5315
  %v5416 = vadd.f32 %v5415, %v5319
  %v5417 = vadd.f32 %v5416, %v5323
  %v5418 = vadd.f32 %v5417, %v5327
  %v5419 = vadd.f32 %v5418, %v5331
  %v5420 = vadd.f32 %v5419, %v5335
  %v5421 = vadd.f32 %v5420, %v5339
  %v5422 = vadd.f32 %v5421, %v5343
  %v5423 = vadd.f32 %v5422, %v5347
  %v5424 = vadd.f32 %v5423, %v5351
  %v5425 = vadd.f32 %v5424, %v5355
  %v5426 = vadd.f32 %v5425, %v5359
  %v5427 = vadd.f32 %v5426, %v5363
  %v5428 = vrot.slane %v5427, 4
  %v5429 = vadd.f32 %v5427, %v5428
  %v5430 = vrot.slane %v5429, 2
  %v5431 = vadd.f32 %v5429, %v5430
  %v5432 = vrot.slane %v5431, 1
  %v5433 = vadd.f32 %v5431, %v5432
  %v5434 = vrcp.pop 512.0
  %v5435 = vmul.f32 512.0, %v5434
  %v5436 = vsub.f32 1.0, %v5435
  %v5437 = vmul.f32 %v5434, %v5436
  %v5438 = vadd.f32 %v5434, %v5437
  %vm5439 = vweird.f32 %v5434
  %v5440 = vsel %vm5439, %v5434, %v5438
  %v5441 = vmul.f32 %v5433, %v5440
  %v5442 = vsub.f32 %v5111, %v5441
  %v5443 = vsub.f32 %v5115, %v5441
  %v5444 = vsub.f32 %v5119, %v5441
  %v5445 = vsub.f32 %v5123, %v5441
  %v5446 = vsub.f32 %v5127, %v5441
  %v5447 = vsub.f32 %v5131, %v5441
  %v5448 = vsub.f32 %v5135, %v5441
  %v5449 = vsub.f32 %v5139, %v5441
  %v5450 = vsub.f32 %v5143, %v5441
  %v5451 = vsub.f32 %v5147, %v5441
  %v5452 = vsub.f32 %v5151, %v5441
  %v5453 = vsub.f32 %v5155, %v5441
  %v5454 = vsub.f32 %v5159, %v5441
  %v5455 = vsub.f32 %v5163, %v5441
  %v5456 = vsub.f32 %v5167, %v5441
  %v5457 = vsub.f32 %v5171, %v5441
  %v5458 = vsub.f32 %v5175, %v5441
  %v5459 = vsub.f32 %v5179, %v5441
  %v5460 = vsub.f32 %v5183, %v5441
  %v5461 = vsub.f32 %v5187, %v5441
  %v5462 = vsub.f32 %v5191, %v5441
  %v5463 = vsub.f32 %v5195, %v5441
  %v5464 = vsub.f32 %v5199, %v5441
  %v5465 = vsub.f32 %v5203, %v5441
  %v5466 = vsub.f32 %v5207, %v5441
  %v5467 = vsub.f32 %v5211, %v5441
  %v5468 = vsub.f32 %v5215, %v5441
  %v5469 = vsub.f32 %v5219, %v5441
  %v5470 = vsub.f32 %v5223, %v5441
  %v5471 = vsub.f32 %v5227, %v5441
  %v5472 = vsub.f32 %v5231, %v5441
  %v5473 = vsub.f32 %v5235, %v5441
  %v5474 = vsub.f32 %v5239, %v5441
  %v5475 = vsub.f32 %v5243, %v5441
  %v5476 = vsub.f32 %v5247, %v5441
  %v5477 = vsub.f32 %v5251, %v5441
  %v5478 = vsub.f32 %v5255, %v5441
  %v5479 = vsub.f32 %v5259, %v5441
  %v5480 = vsub.f32 %v5263, %v5441
  %v5481 = vsub.f32 %v5267, %v5441
  %v5482 = vsub.f32 %v5271, %v5441
  %v5483 = vsub.f32 %v5275, %v5441
  %v5484 = vsub.f32 %v5279, %v5441
  %v5485 = vsub.f32 %v5283, %v5441
  %v5486 = vsub.f32 %v5287, %v5441
  %v5487 = vsub.f32 %v5291, %v5441
  %v5488 = vsub.f32 %v5295, %v5441
  %v5489 = vsub.f32 %v5299, %v5441
  %v5490 = vsub.f32 %v5303, %v5441
  %v5491 = vsub.f32 %v5307, %v5441
  %v5492 = vsub.f32 %v5311, %v5441
  %v5493 = vsub.f32 %v5315, %v5441
  %v5494 = vsub.f32 %v5319, %v5441
  %v5495 = vsub.f32 %v5323, %v5441
  %v5496 = vsub.f32 %v5327, %v5441
  %v5497 = vsub.f32 %v5331, %v5441
  %v5498 = vsub.f32 %v5335, %v5441
  %v5499 = vsub.f32 %v5339, %v5441
  %v5500 = vsub.f32 %v5343, %v5441
  %v5501 = vsub.f32 %v5347, %v5441
  %v5502 = vsub.f32 %v5351, %v5441
  %v5503 = vsub.f32 %v5355, %v5441
  %v5504 = vsub.f32 %v5359, %v5441
  %v5505 = vsub.f32 %v5363, %v5441
  %v5506 = vmul.f32 %v5442, %v5442
  %v5507 = vmul.f32 %v5443, %v5443
  %v5508 = vmul.f32 %v5444, %v5444
  %v5509 = vmul.f32 %v5445, %v5445
  %v5510 = vmul.f32 %v5446, %v5446
  %v5511 = vmul.f32 %v5447, %v5447
  %v5512 = vmul.f32 %v5448, %v5448
  %v5513 = vmul.f32 %v5449, %v5449
  %v5514 = vmul.f32 %v5450, %v5450
  %v5515 = vmul.f32 %v5451, %v5451
  %v5516 = vmul.f32 %v5452, %v5452
  %v5517 = vmul.f32 %v5453, %v5453
  %v5518 = vmul.f32 %v5454, %v5454
  %v5519 = vmul.f32 %v5455, %v5455
  %v5520 = vmul.f32 %v5456, %v5456
  %v5521 = vmul.f32 %v5457, %v5457
  %v5522 = vmul.f32 %v5458, %v5458
  %v5523 = vmul.f32 %v5459, %v5459
  %v5524 = vmul.f32 %v5460, %v5460
  %v5525 = vmul.f32 %v5461, %v5461
  %v5526 = vmul.f32 %v5462, %v5462
  %v5527 = vmul.f32 %v5463, %v5463
  %v5528 = vmul.f32 %v5464, %v5464
  %v5529 = vmul.f32 %v5465, %v5465
  %v5530 = vmul.f32 %v5466, %v5466
  %v5531 = vmul.f32 %v5467, %v5467
  %v5532 = vmul.f32 %v5468, %v5468
  %v5533 = vmul.f32 %v5469, %v5469
  %v5534 = vmul.f32 %v5470, %v5470
  %v5535 = vmul.f32 %v5471, %v5471
  %v5536 = vmul.f32 %v5472, %v5472
  %v5537 = vmul.f32 %v5473, %v5473
  %v5538 = vmul.f32 %v5474, %v5474
  %v5539 = vmul.f32 %v5475, %v5475
  %v5540 = vmul.f32 %v5476, %v5476
  %v5541 = vmul.f32 %v5477, %v5477
  %v5542 = vmul.f32 %v5478, %v5478
  %v5543 = vmul.f32 %v5479, %v5479
  %v5544 = vmul.f32 %v5480, %v5480
  %v5545 = vmul.f32 %v5481, %v5481
  %v5546 = vmul.f32 %v5482, %v5482
  %v5547 = vmul.f32 %v5483, %v5483
  %v5548 = vmul.f32 %v5484, %v5484
  %v5549 = vmul.f32 %v5485, %v5485
  %v5550 = vmul.f32 %v5486, %v5486
  %v5551 = vmul.f32 %v5487, %v5487
  %v5552 = vmul.f32 %v5488, %v5488
  %v5553 = vmul.f32 %v5489, %v5489
  %v5554 = vmul.f32 %v5490, %v5490
  %v5555 = vmul.f32 %v5491, %v5491
  %v5556 = vmul.f32 %v5492, %v5492
  %v5557 = vmul.f32 %v5493, %v5493
  %v5558 = vmul.f32 %v5494, %v5494
  %v5559 = vmul.f32 %v5495, %v5495
  %v5560 = vmul.f32 %v5496, %v5496
  %v5561 = vmul.f32 %v5497, %v5497
  %v5562 = vmul.f32 %v5498, %v5498
  %v5563 = vmul.f32 %v5499, %v5499
  %v5564 = vmul.f32 %v5500, %v5500
  %v5565 = vmul.f32 %v5501, %v5501
  %v5566 = vmul.f32 %v5502, %v5502
  %v5567 = vmul.f32 %v5503, %v5503
  %v5568 = vmul.f32 %v5504, %v5504
  %v5569 = vmul.f32 %v5505, %v5505
  %v5570 = vadd.f32 %v5506, %v5507
  %v5571 = vadd.f32 %v5570, %v5508
  %v5572 = vadd.f32 %v5571, %v5509
  %v5573 = vadd.f32 %v5572, %v5510
  %v5574 = vadd.f32 %v5573, %v5511
  %v5575 = vadd.f32 %v5574, %v5512
  %v5576 = vadd.f32 %v5575, %v5513
  %v5577 = vadd.f32 %v5576, %v5514
  %v5578 = vadd.f32 %v5577, %v5515
  %v5579 = vadd.f32 %v5578, %v5516
  %v5580 = vadd.f32 %v5579, %v5517
  %v5581 = vadd.f32 %v5580, %v5518
  %v5582 = vadd.f32 %v5581, %v5519
  %v5583 = vadd.f32 %v5582, %v5520
  %v5584 = vadd.f32 %v5583, %v5521
  %v5585 = vadd.f32 %v5584, %v5522
  %v5586 = vadd.f32 %v5585, %v5523
  %v5587 = vadd.f32 %v5586, %v5524
  %v5588 = vadd.f32 %v5587, %v5525
  %v5589 = vadd.f32 %v5588, %v5526
  %v5590 = vadd.f32 %v5589, %v5527
  %v5591 = vadd.f32 %v5590, %v5528
  %v5592 = vadd.f32 %v5591, %v5529
  %v5593 = vadd.f32 %v5592, %v5530
  %v5594 = vadd.f32 %v5593, %v5531
  %v5595 = vadd.f32 %v5594, %v5532
  %v5596 = vadd.f32 %v5595, %v5533
  %v5597 = vadd.f32 %v5596, %v5534
  %v5598 = vadd.f32 %v5597, %v5535
  %v5599 = vadd.f32 %v5598, %v5536
  %v5600 = vadd.f32 %v5599, %v5537
  %v5601 = vadd.f32 %v5600, %v5538
  %v5602 = vadd.f32 %v5601, %v5539
  %v5603 = vadd.f32 %v5602, %v5540
  %v5604 = vadd.f32 %v5603, %v5541
  %v5605 = vadd.f32 %v5604, %v5542
  %v5606 = vadd.f32 %v5605, %v5543
  %v5607 = vadd.f32 %v5606, %v5544
  %v5608 = vadd.f32 %v5607, %v5545
  %v5609 = vadd.f32 %v5608, %v5546
  %v5610 = vadd.f32 %v5609, %v5547
  %v5611 = vadd.f32 %v5610, %v5548
  %v5612 = vadd.f32 %v5611, %v5549
  %v5613 = vadd.f32 %v5612, %v5550
  %v5614 = vadd.f32 %v5613, %v5551
  %v5615 = vadd.f32 %v5614, %v5552
  %v5616 = vadd.f32 %v5615, %v5553
  %v5617 = vadd.f32 %v5616, %v5554
  %v5618 = vadd.f32 %v5617, %v5555
  %v5619 = vadd.f32 %v5618, %v5556
  %v5620 = vadd.f32 %v5619, %v5557
  %v5621 = vadd.f32 %v5620, %v5558
  %v5622 = vadd.f32 %v5621, %v5559
  %v5623 = vadd.f32 %v5622, %v5560
  %v5624 = vadd.f32 %v5623, %v5561
  %v5625 = vadd.f32 %v5624, %v5562
  %v5626 = vadd.f32 %v5625, %v5563
  %v5627 = vadd.f32 %v5626, %v5564
  %v5628 = vadd.f32 %v5627, %v5565
  %v5629 = vadd.f32 %v5628, %v5566
  %v5630 = vadd.f32 %v5629, %v5567
  %v5631 = vadd.f32 %v5630, %v5568
  %v5632 = vadd.f32 %v5631, %v5569
  %v5633 = vrot.slane %v5632, 4
  %v5634 = vadd.f32 %v5632, %v5633
  %v5635 = vrot.slane %v5634, 2
  %v5636 = vadd.f32 %v5634, %v5635
  %v5637 = vrot.slane %v5636, 1
  %v5638 = vadd.f32 %v5636, %v5637
  %v5639 = vmul.f32 %v5638, %v5440
  %v5640 = vadd.f32 %v5639, 0.001
  %v5641 = vrsqrt.pop %v5640
  %v5642 = vmul.f32 %v5641, %v5640
  %v5643 = vmul.f32 %v5642, %v5641
  %v5644 = vmul.f32 0.5, %v5643
  %v5645 = vsub.f32 1.5, %v5644
  %v5646 = vmul.f32 %v5641, %v5645
  %vm5647 = vweird.f32 %v5640
  %vm5648 = vweird.f32 %v5641
  %vm5649 = vmor %vm5647, %vm5648
  %v5650 = vsel %vm5649, %v5641, %v5646
  %v5651 = vmul.f32 %v5442, %v5650
  %v5652 = vmul.f32 %v5443, %v5650
  %v5653 = vmul.f32 %v5444, %v5650
  %v5654 = vmul.f32 %v5445, %v5650
  %v5655 = vmul.f32 %v5446, %v5650
  %v5656 = vmul.f32 %v5447, %v5650
  %v5657 = vmul.f32 %v5448, %v5650
  %v5658 = vmul.f32 %v5449, %v5650
  %v5659 = vmul.f32 %v5450, %v5650
  %v5660 = vmul.f32 %v5451, %v5650
  %v5661 = vmul.f32 %v5452, %v5650
  %v5662 = vmul.f32 %v5453, %v5650
  %v5663 = vmul.f32 %v5454, %v5650
  %v5664 = vmul.f32 %v5455, %v5650
  %v5665 = vmul.f32 %v5456, %v5650
  %v5666 = vmul.f32 %v5457, %v5650
  %v5667 = vmul.f32 %v5458, %v5650
  %v5668 = vmul.f32 %v5459, %v5650
  %v5669 = vmul.f32 %v5460, %v5650
  %v5670 = vmul.f32 %v5461, %v5650
  %v5671 = vmul.f32 %v5462, %v5650
  %v5672 = vmul.f32 %v5463, %v5650
  %v5673 = vmul.f32 %v5464, %v5650
  %v5674 = vmul.f32 %v5465, %v5650
  %v5675 = vmul.f32 %v5466, %v5650
  %v5676 = vmul.f32 %v5467, %v5650
  %v5677 = vmul.f32 %v5468, %v5650
  %v5678 = vmul.f32 %v5469, %v5650
  %v5679 = vmul.f32 %v5470, %v5650
  %v5680 = vmul.f32 %v5471, %v5650
  %v5681 = vmul.f32 %v5472, %v5650
  %v5682 = vmul.f32 %v5473, %v5650
  %v5683 = vmul.f32 %v5474, %v5650
  %v5684 = vmul.f32 %v5475, %v5650
  %v5685 = vmul.f32 %v5476, %v5650
  %v5686 = vmul.f32 %v5477, %v5650
  %v5687 = vmul.f32 %v5478, %v5650
  %v5688 = vmul.f32 %v5479, %v5650
  %v5689 = vmul.f32 %v5480, %v5650
  %v5690 = vmul.f32 %v5481, %v5650
  %v5691 = vmul.f32 %v5482, %v5650
  %v5692 = vmul.f32 %v5483, %v5650
  %v5693 = vmul.f32 %v5484, %v5650
  %v5694 = vmul.f32 %v5485, %v5650
  %v5695 = vmul.f32 %v5486, %v5650
  %v5696 = vmul.f32 %v5487, %v5650
  %v5697 = vmul.f32 %v5488, %v5650
  %v5698 = vmul.f32 %v5489, %v5650
  %v5699 = vmul.f32 %v5490, %v5650
  %v5700 = vmul.f32 %v5491, %v5650
  %v5701 = vmul.f32 %v5492, %v5650
  %v5702 = vmul.f32 %v5493, %v5650
  %v5703 = vmul.f32 %v5494, %v5650
  %v5704 = vmul.f32 %v5495, %v5650
  %v5705 = vmul.f32 %v5496, %v5650
  %v5706 = vmul.f32 %v5497, %v5650
  %v5707 = vmul.f32 %v5498, %v5650
  %v5708 = vmul.f32 %v5499, %v5650
  %v5709 = vmul.f32 %v5500, %v5650
  %v5710 = vmul.f32 %v5501, %v5650
  %v5711 = vmul.f32 %v5502, %v5650
  %v5712 = vmul.f32 %v5503, %v5650
  %v5713 = vmul.f32 %v5504, %v5650
  %v5714 = vmul.f32 %v5505, %v5650
  %v5715 = vmax.f32 %v5651, 0.0
  %v5716 = vmax.f32 %v5652, 0.0
  %v5717 = vmax.f32 %v5653, 0.0
  %v5718 = vmax.f32 %v5654, 0.0
  %v5719 = vmax.f32 %v5655, 0.0
  %v5720 = vmax.f32 %v5656, 0.0
  %v5721 = vmax.f32 %v5657, 0.0
  %v5722 = vmax.f32 %v5658, 0.0
  %v5723 = vmax.f32 %v5659, 0.0
  %v5724 = vmax.f32 %v5660, 0.0
  %v5725 = vmax.f32 %v5661, 0.0
  %v5726 = vmax.f32 %v5662, 0.0
  %v5727 = vmax.f32 %v5663, 0.0
  %v5728 = vmax.f32 %v5664, 0.0
  %v5729 = vmax.f32 %v5665, 0.0
  %v5730 = vmax.f32 %v5666, 0.0
  %v5731 = vmax.f32 %v5667, 0.0
  %v5732 = vmax.f32 %v5668, 0.0
  %v5733 = vmax.f32 %v5669, 0.0
  %v5734 = vmax.f32 %v5670, 0.0
  %v5735 = vmax.f32 %v5671, 0.0
  %v5736 = vmax.f32 %v5672, 0.0
  %v5737 = vmax.f32 %v5673, 0.0
  %v5738 = vmax.f32 %v5674, 0.0
  %v5739 = vmax.f32 %v5675, 0.0
  %v5740 = vmax.f32 %v5676, 0.0
  %v5741 = vmax.f32 %v5677, 0.0
  %v5742 = vmax.f32 %v5678, 0.0
  %v5743 = vmax.f32 %v5679, 0.0
  %v5744 = vmax.f32 %v5680, 0.0
  %v5745 = vmax.f32 %v5681, 0.0
  %v5746 = vmax.f32 %v5682, 0.0
  %v5747 = vmax.f32 %v5683, 0.0
  %v5748 = vmax.f32 %v5684, 0.0
  %v5749 = vmax.f32 %v5685, 0.0
  %v5750 = vmax.f32 %v5686, 0.0
  %v5751 = vmax.f32 %v5687, 0.0
  %v5752 = vmax.f32 %v5688, 0.0
  %v5753 = vmax.f32 %v5689, 0.0
  %v5754 = vmax.f32 %v5690, 0.0
  %v5755 = vmax.f32 %v5691, 0.0
  %v5756 = vmax.f32 %v5692, 0.0
  %v5757 = vmax.f32 %v5693, 0.0
  %v5758 = vmax.f32 %v5694, 0.0
  %v5759 = vmax.f32 %v5695, 0.0
  %v5760 = vmax.f32 %v5696, 0.0
  %v5761 = vmax.f32 %v5697, 0.0
  %v5762 = vmax.f32 %v5698, 0.0
  %v5763 = vmax.f32 %v5699, 0.0
  %v5764 = vmax.f32 %v5700, 0.0
  %v5765 = vmax.f32 %v5701, 0.0
  %v5766 = vmax.f32 %v5702, 0.0
  %v5767 = vmax.f32 %v5703, 0.0
  %v5768 = vmax.f32 %v5704, 0.0
  %v5769 = vmax.f32 %v5705, 0.0
  %v5770 = vmax.f32 %v5706, 0.0
  %v5771 = vmax.f32 %v5707, 0.0
  %v5772 = vmax.f32 %v5708, 0.0
  %v5773 = vmax.f32 %v5709, 0.0
  %v5774 = vmax.f32 %v5710, 0.0
  %v5775 = vmax.f32 %v5711, 0.0
  %v5776 = vmax.f32 %v5712, 0.0
  %v5777 = vmax.f32 %v5713, 0.0
  %v5778 = vmax.f32 %v5714, 0.0
  %5779 = vst [vmem:[%s2] sm:$0xff] %v5715
  %5780 = vst [vmem:[%s2 + $0x8] sm:$0xff] %v5716
  %5781 = vst [vmem:[%s2 + $0x10] sm:$0xff] %v5717
  %5782 = vst [vmem:[%s2 + $0x18] sm:$0xff] %v5718
  %5783 = vst [vmem:[%s2 + $0x20] sm:$0xff] %v5719
  %5784 = vst [vmem:[%s2 + $0x28] sm:$0xff] %v5720
  %5785 = vst [vmem:[%s2 + $0x30] sm:$0xff] %v5721
  %5786 = vst [vmem:[%s2 + $0x38] sm:$0xff] %v5722
  %5787 = vst [vmem:[%s2 + $0x40] sm:$0xff] %v5723
  %5788 = vst [vmem:[%s2 + $0x48] sm:$0xff] %v5724
  %5789 = vst [vmem:[%s2 + $0x50] sm:$0xff] %v5725
  %5790 = vst [vmem:[%s2 + $0x58] sm:$0xff] %v5726
  %5791 = vst [vmem:[%s2 + $0x60] sm:$0xff] %v5727
  %5792 = vst [vmem:[%s2 + $0x68] sm:$0xff] %v5728
  %5793 = vst [vmem:[%s2 + $0x70] sm:$0xff] %v5729
  %5794 = vst [vmem:[%s2 + $0x78] sm:$0xff] %v5730
  %5795 = vst [vmem:[%s2 + $0x80] sm:$0xff] %v5731
  %5796 = vst [vmem:[%s2 + $0x88] sm:$0xff] %v5732
  %5797 = vst [vmem:[%s2 + $0x90] sm:$0xff] %v5733
  %5798 = vst [vmem:[%s2 + $0x98] sm:$0xff] %v5734
  %5799 = vst [vmem:[%s2 + $0xa0] sm:$0xff] %v5735
  %5800 = vst [vmem:[%s2 + $0xa8] sm:$0xff] %v5736
  %5801 = vst [vmem:[%s2 + $0xb0] sm:$0xff] %v5737
  %5802 = vst [vmem:[%s2 + $0xb8] sm:$0xff] %v5738
  %5803 = vst [vmem:[%s2 + $0xc0] sm:$0xff] %v5739
  %5804 = vst [vmem:[%s2 + $0xc8] sm:$0xff] %v5740
  %5805 = vst [vmem:[%s2 + $0xd0] sm:$0xff] %v5741
  %5806 = vst [vmem:[%s2 + $0xd8] sm:$0xff] %v5742
  %5807 = vst [vmem:[%s2 + $0xe0] sm:$0xff] %v5743
  %5808 = vst [vmem:[%s2 + $0xe8] sm:$0xff] %v5744
  %5809 = vst [vmem:[%s2 + $0xf0] sm:$0xff] %v5745
  %5810 = vst [vmem:[%s2 + $0xf8] sm:$0xff] %v5746
  %5811 = vst [vmem:[%s2 + $0x100] sm:$0xff] %v5747
  %5812 = vst [vmem:[%s2 + $0x108] sm:$0xff] %v5748
  %5813 = vst [vmem:[%s2 + $0x110] sm:$0xff] %v5749
  %5814 = vst [vmem:[%s2 + $0x118] sm:$0xff] %v5750
  %5815 = vst [vmem:[%s2 + $0x120] sm:$0xff] %v5751
  %5816 = vst [vmem:[%s2 + $0x128] sm:$0xff] %v5752
  %5817 = vst [vmem:[%s2 + $0x130] sm:$0xff] %v5753
  %5818 = vst [vmem:[%s2 + $0x138] sm:$0xff] %v5754
  %5819 = vst [vmem:[%s2 + $0x140] sm:$0xff] %v5755
  %5820 = vst [vmem:[%s2 + $0x148] sm:$0xff] %v5756
  %5821 = vst [vmem:[%s2 + $0x150] sm:$0xff] %v5757
  %5822 = vst [vmem:[%s2 + $0x158] sm:$0xff] %v5758
  %5823 = vst [vmem:[%s2 + $0x160] sm:$0xff] %v5759
  %5824 = vst [vmem:[%s2 + $0x168] sm:$0xff] %v5760
  %5825 = vst [vmem:[%s2 + $0x170] sm:$0xff] %v5761
  %5826 = vst [vmem:[%s2 + $0x178] sm:$0xff] %v5762
  %5827 = vst [vmem:[%s2 + $0x180] sm:$0xff] %v5763
  %5828 = vst [vmem:[%s2 + $0x188] sm:$0xff] %v5764
  %5829 = vst [vmem:[%s2 + $0x190] sm:$0xff] %v5765
  %5830 = vst [vmem:[%s2 + $0x198] sm:$0xff] %v5766
  %5831 = vst [vmem:[%s2 + $0x1a0] sm:$0xff] %v5767
  %5832 = vst [vmem:[%s2 + $0x1a8] sm:$0xff] %v5768
  %5833 = vst [vmem:[%s2 + $0x1b0] sm:$0xff] %v5769
  %5834 = vst [vmem:[%s2 + $0x1b8] sm:$0xff] %v5770
  %5835 = vst [vmem:[%s2 + $0x1c0] sm:$0xff] %v5771
  %5836 = vst [vmem:[%s2 + $0x1c8] sm:$0xff] %v5772
  %5837 = vst [vmem:[%s2 + $0x1d0] sm:$0xff] %v5773
  %5838 = vst [vmem:[%s2 + $0x1d8] sm:$0xff] %v5774
  %5839 = vst [vmem:[%s2 + $0x1e0] sm:$0xff] %v5775
  %5840 = vst [vmem:[%s2 + $0x1e8] sm:$0xff] %v5776
  %5841 = vst [vmem:[%s2 + $0x1f0] sm:$0xff] %v5777
  %5842 = vst [vmem:[%s2 + $0x1f8] sm:$0xff] %v5778
  // Predicated region
  $region10: #{basic_conv2d_forward.1} parent=0 // pred_check
    _
  $region11: #{basic_conv2d_forward.1} parent=0 // pred_check_branch
    %5844 = sbr.rel (0) target = $region13
  $region12: #{basic_conv2d_forward.1} parent=0 // pred_region
    _
  $region13: #{basic_conv2d_forward.1} parent=0 // pred_fallthru
    _
  // Predicated region
  $region14: #{basic_conv2d_forward.1} parent=0 // pred_check
    _
  $region15: #{basic_conv2d_forward.1} parent=0 // pred_check_branch
    %5846 = sbr.rel (0) target = $region17
  $region16: #{basic_conv2d_forward.1} parent=0 // pred_region
    _
  $region17: #{basic_conv2d_forward.1} parent=0 // pred_fallthru
    _

</llo_original>
